<compile_context>
chip_gen: v7x
topology: tpu7x:2x2x1
jax: 0.10.0
libtpu: 0.0.40
codegen_flags: <defaults>
</compile_context>

<pallas_src>
import jax
import jax.numpy as jnp
from jax import lax
from jax.experimental import pallas as pl
from jax.experimental.pallas import tpu as pltpu

IN_DIM = 784            # hard-coded input width of OneUp's WeightGenerator
HID = 64                # hidden width of the weight generator
K_AUG = HID + 1         # hidden + constant-1 row (carries b2 / bg)
A_PAD = 896             # augmented width 784 (+1 ones col) zero-padded to a multiple of 128


# ---------------------------------------------------------------------------
# Fused kernel, single grid step: generate all T target rows, apply to the batch.
# ---------------------------------------------------------------------------
def oneup_fused_kernel(raw_aug_ref, w1full_ref, w2full_ref, y_ref):
    # raw_aug : (B, 896)      [raw | 1 | 0-pad]   (lane-dense, per-call)
    # w1full  : (65, 896)     rows 0..63 = [W1 | b1 | 0], row 64 = e_784
    # w2full  : (T, 65, 896)  per-target-row generator blocks (b2 folded as K-row 64)
    # y       : (B, T)
    raw_aug = raw_aug_ref[...]                                            # (B, A)

    # h_aug = [relu(raw[0] @ W1.T + b1), 1]; b1 and the trailing constant 1 both come
    # from raw_aug's ones column (relu(1) == 1).
    h_aug = jnp.maximum(
        lax.dot_general(raw_aug[0:1, :], w1full_ref[...],
                        (((1,), (1,)), ((), ())),
                        preferred_element_type=jnp.float32),
        0.0,
    )                                                                     # (1, 65)

    # Generated augmented target rows [Wg[t, :784] | bg[t] | 0-pad]; T is tiny and
    # static, so unroll and assemble a single (T, A) operand for one apply matmul.
    T = w2full_ref.shape[0]
    wg = jnp.concatenate(
        [jnp.dot(h_aug, w2full_ref[t].astype(jnp.float32),
                 preferred_element_type=jnp.float32)
         for t in range(T)],
        axis=0,
    )                                                                     # (T, A)

    # y = raw_aug @ wg.T  (the ones column of raw_aug picks up bg; pad lanes are 0)
    y_ref[...] = lax.dot_general(raw_aug, wg,
                                 (((1,), (1,)), ((), ())),
                                 preferred_element_type=jnp.float32)      # (B, T)


# ---------------------------------------------------------------------------
# One-time, offline reorganization of the static generator parameters.
# (Kept OUT of the per-call hot path.)
# ---------------------------------------------------------------------------
def prepare_params(W1, b1, W2, b2, target_out_dim, w2_dtype=jnp.float32):
    T = target_out_dim
    P = IN_DIM * T + T
    assert W1.shape == (HID, IN_DIM) and b1.shape == (HID,)
    assert W2.shape == (P, HID) and b2.shape == (P,)

    # W1full (65, 896): rows 0..63 = [W1 | b1 | 0-pad]; row 64 = e_{784} so that
    # relu(raw_aug[0] @ W1full.T) ends in a constant 1 (which then selects the b2 row of W2full).
    W1full = jnp.zeros((K_AUG, A_PAD), jnp.float32)
    W1full = W1full.at[:HID, :IN_DIM].set(W1.astype(jnp.float32))
    W1full = W1full.at[:HID, IN_DIM].set(b1.astype(jnp.float32))
    W1full = W1full.at[HID, IN_DIM].set(1.0)

    # W2full (T, 65, 896):
    #   W2full[t, k<64, a<784] = W2[t*784 + a, k]      (generates Wg[t, a])
    #   W2full[t, k<64, 784]   = W2[784*T + t, k]      (generates bg[t])
    #   W2full[t, 64,   a]     = matching b2 entries   (b2 folded via h_aug's constant 1)
    W2w = W2[: IN_DIM * T].reshape(T, IN_DIM, HID).transpose(0, 2, 1)     # (T, 64, 784)
    W2b = W2[IN_DIM * T: P][:, :, None]                                   # (T, 64, 1)
    b2w = b2[: IN_DIM * T].reshape(T, 1, IN_DIM)                          # (T, 1, 784)
    b2b = b2[IN_DIM * T: P].reshape(T, 1, 1)                              # (T, 1, 1)
    W2full = jnp.concatenate(
        [jnp.concatenate([W2w, W2b], axis=2),
         jnp.concatenate([b2w, b2b], axis=2)],
        axis=1,
    )                                                                     # (T, 65, 785)
    W2full = jnp.pad(W2full, ((0, 0), (0, 0), (0, A_PAD - (IN_DIM + 1))))  # (T, 65, 896)
    # Optional v5e traffic win: w2_dtype=jnp.bfloat16 (kernel accumulates in f32 regardless).
    return W1full, W2full.astype(w2_dtype)


# ---------------------------------------------------------------------------
# Forward pass (hot path): one single-step fused pallas_call, minimal glue.
# ---------------------------------------------------------------------------
def one_up_forward(raw, W1full, W2full):
    B, in_dim = raw.shape
    K, A = W1full.shape
    T, K2, A2 = W2full.shape
    assert in_dim == IN_DIM and K == K_AUG and A == A_PAD and K2 == K and A2 == A

    # Per-call glue (tiny, lane-dense, no transpose): append ones column + zero pad.
    raw_aug = jnp.concatenate(
        [raw.astype(jnp.float32),
         jnp.ones((B, 1), jnp.float32),
         jnp.zeros((B, A_PAD - IN_DIM - 1), jnp.float32)],
        axis=1,
    )                                                                     # (B, 896)

    flops = 2 * (A * K + T * K * A + B * A * T)
    bytes_accessed = (B * A * 4
                      + K * A * W1full.dtype.itemsize
                      + T * K * A * W2full.dtype.itemsize
                      + B * T * 4)

    # Single grid step: total traffic ~2 MB, compute ~1 MFLOP -> per-step overhead dominates,
    # so one fat step beats streaming.  (v7x megacore variant: grid=(2,), W2full block
    # (T//2, K, A), out block (B, T//2), dimension_semantics=("parallel",).)
    return pl.pallas_call(
        oneup_fused_kernel,
        out_shape=jax.ShapeDtypeStruct((B, T), jnp.float32),
        grid=(1,),
        in_specs=[
            pl.BlockSpec((B, A), lambda i: (0, 0)),        # raw_aug
            pl.BlockSpec((K, A), lambda i: (0, 0)),        # W1full
            pl.BlockSpec((T, K, A), lambda i: (0, 0, 0)),  # W2full
        ],
        out_specs=pl.BlockSpec((B, T), lambda i: (0, 0)),
        compiler_params=pltpu.CompilerParams(
            dimension_semantics=("arbitrary",),
        ),
        cost_estimate=pl.CostEstimate(flops=flops, transcendentals=0,
                                      bytes_accessed=bytes_accessed),
    )(raw_aug, W1full, W2full)


one_up_forward_jit = jax.jit(one_up_forward)


# ---------------------------------------------------------------------------
# Pure-JAX reference mirroring the original PyTorch semantics exactly.
# ---------------------------------------------------------------------------
def one_up_reference(raw, W1, b1, W2, b2, target_out_dim):
    h = jnp.maximum(raw @ W1.T + b1, 0.0)
    out = h @ W2.T + b2
    flat = out.reshape(-1)
    T = target_out_dim
    Wg = flat[: IN_DIM * T].reshape(T, IN_DIM)
    bg = flat[IN_DIM * T: IN_DIM * T + T]
    return raw @ Wg.T + bg


if __name__ == "__main__":
    key = jax.random.PRNGKey(0)
    B = 2                    # batch
    T = 8                    # target network: nn.Linear(784, 8)
    P = IN_DIM * T + T       # number of params to estimate = 6280

    k_raw, k_w1, k_b1, k_w2, k_b2 = jax.random.split(key, 5)

    raw = jax.random.normal(k_raw, (B, IN_DIM), dtype=jnp.float32)
    W1 = jax.random.normal(k_w1, (HID, IN_DIM), dtype=jnp.float32) / jnp.sqrt(IN_DIM)
    b1 = jax.random.normal(k_b1, (HID,), dtype=jnp.float32) * 0.01
    W2 = jax.random.normal(k_w2, (P, HID), dtype=jnp.float32) / jnp.sqrt(HID)
    b2 = jax.random.normal(k_b2, (P,), dtype=jnp.float32) * 0.01

    # One-time offline parameter reorg (outside the per-call hot path).
    W1full, W2full = prepare_params(W1, b1, W2, b2, T)
    W1full, W2full = jax.block_until_ready((W1full, W2full))

    y = one_up_forward_jit(raw, W1full, W2full)
    y = jax.block_until_ready(y)

    y_ref = one_up_reference(raw, W1, b1, W2, b2, T)
    assert y.shape == (B, T)
    assert jnp.allclose(y, y_ref, rtol=1e-4, atol=1e-3), "mismatch vs reference"

    print("KERNEL_OK")
</pallas_src>

<mosaic_0001>
module attributes {stable_mosaic.version = 11 : i64} {
  func.func @oneup_fused_kernel(%arg0: i32, %arg1: memref<2x896xf32, #tpu.memory_space<vmem>>, %arg2: memref<65x896xf32, #tpu.memory_space<vmem>>, %arg3: memref<8x65x896xf32, #tpu.memory_space<vmem>>, %arg4: memref<2x8xf32, #tpu.memory_space<vmem>>) attributes {dimension_semantics = [#tpu.dimension_semantics<arbitrary>], iteration_bounds = array<i64: 1>, scalar_prefetch = 0 : i64, scratch_operands = 0 : i64, tpu.core_type = #tpu.core_type<tc>, window_params = [{pipeline_mode = #tpu.pipeline_mode<synchronous>, transform_indices = @transform_0, window_bounds = array<i64: 2, 896>}, {pipeline_mode = #tpu.pipeline_mode<synchronous>, transform_indices = @transform_1, window_bounds = array<i64: 65, 896>}, {pipeline_mode = #tpu.pipeline_mode<synchronous>, transform_indices = @transform_2, window_bounds = array<i64: 8, 65, 896>}, {pipeline_mode = #tpu.pipeline_mode<synchronous>, transform_indices = @transform_3, window_bounds = array<i64: 2, 8>}]} {
    %c0 = arith.constant 0 : index
    %c0_0 = arith.constant 0 : index
    %0 = vector.load %arg1[%c0, %c0_0] : memref<2x896xf32, #tpu.memory_space<vmem>>, vector<2x896xf32>
    %1 = vector.extract_strided_slice %0 {offsets = [0, 0], sizes = [1, 896], strides = [1, 1]} : vector<2x896xf32> to vector<1x896xf32>
    %c0_1 = arith.constant 0 : index
    %c0_2 = arith.constant 0 : index
    %2 = vector.load %arg2[%c0_1, %c0_2] : memref<65x896xf32, #tpu.memory_space<vmem>>, vector<65x896xf32>
    %cst = arith.constant dense<0.000000e+00> : vector<1x65xf32>
    %3 = tpu.matmul %1, %2, %cst {dimension_numbers = #tpu.dot_dimension_numbers<[1], [1], [0], [0], [0, 0, 1, 0], [], []>} : vector<1x896xf32>, vector<65x896xf32>, vector<1x65xf32> -> vector<1x65xf32>
    %cst_3 = arith.constant 0.000000e+00 : f32
    %4 = vector.broadcast %cst_3 : f32 to vector<1x65xf32>
    %5 = arith.maximumf %3, %4 : vector<1x65xf32>
    %c0_4 = arith.constant 0 : index
    %c0_5 = arith.constant 0 : index
    %c0_6 = arith.constant 0 : index
    %6 = vector.load %arg3[%c0_4, %c0_5, %c0_6] : memref<8x65x896xf32, #tpu.memory_space<vmem>>, vector<1x65x896xf32>
    %7 = vector.shape_cast %6 : vector<1x65x896xf32> to vector<65x896xf32>
    %cst_7 = arith.constant dense<0.000000e+00> : vector<1x896xf32>
    %8 = tpu.matmul %5, %7, %cst_7 {dimension_numbers = #tpu.dot_dimension_numbers<[1], [0], [0], [1], [0, 0, 1, 1], [], []>} : vector<1x65xf32>, vector<65x896xf32>, vector<1x896xf32> -> vector<1x896xf32>
    %c1 = arith.constant 1 : index
    %c0_8 = arith.constant 0 : index
    %c0_9 = arith.constant 0 : index
    %9 = vector.load %arg3[%c1, %c0_8, %c0_9] : memref<8x65x896xf32, #tpu.memory_space<vmem>>, vector<1x65x896xf32>
    %10 = vector.shape_cast %9 : vector<1x65x896xf32> to vector<65x896xf32>
    %cst_10 = arith.constant dense<0.000000e+00> : vector<1x896xf32>
    %11 = tpu.matmul %5, %10, %cst_10 {dimension_numbers = #tpu.dot_dimension_numbers<[1], [0], [0], [1], [0, 0, 1, 1], [], []>} : vector<1x65xf32>, vector<65x896xf32>, vector<1x896xf32> -> vector<1x896xf32>
    %c2 = arith.constant 2 : index
    %c0_11 = arith.constant 0 : index
    %c0_12 = arith.constant 0 : index
    %12 = vector.load %arg3[%c2, %c0_11, %c0_12] : memref<8x65x896xf32, #tpu.memory_space<vmem>>, vector<1x65x896xf32>
    %13 = vector.shape_cast %12 : vector<1x65x896xf32> to vector<65x896xf32>
    %cst_13 = arith.constant dense<0.000000e+00> : vector<1x896xf32>
    %14 = tpu.matmul %5, %13, %cst_13 {dimension_numbers = #tpu.dot_dimension_numbers<[1], [0], [0], [1], [0, 0, 1, 1], [], []>} : vector<1x65xf32>, vector<65x896xf32>, vector<1x896xf32> -> vector<1x896xf32>
    %c3 = arith.constant 3 : index
    %c0_14 = arith.constant 0 : index
    %c0_15 = arith.constant 0 : index
    %15 = vector.load %arg3[%c3, %c0_14, %c0_15] : memref<8x65x896xf32, #tpu.memory_space<vmem>>, vector<1x65x896xf32>
    %16 = vector.shape_cast %15 : vector<1x65x896xf32> to vector<65x896xf32>
    %cst_16 = arith.constant dense<0.000000e+00> : vector<1x896xf32>
    %17 = tpu.matmul %5, %16, %cst_16 {dimension_numbers = #tpu.dot_dimension_numbers<[1], [0], [0], [1], [0, 0, 1, 1], [], []>} : vector<1x65xf32>, vector<65x896xf32>, vector<1x896xf32> -> vector<1x896xf32>
    %c4 = arith.constant 4 : index
    %c0_17 = arith.constant 0 : index
    %c0_18 = arith.constant 0 : index
    %18 = vector.load %arg3[%c4, %c0_17, %c0_18] : memref<8x65x896xf32, #tpu.memory_space<vmem>>, vector<1x65x896xf32>
    %19 = vector.shape_cast %18 : vector<1x65x896xf32> to vector<65x896xf32>
    %cst_19 = arith.constant dense<0.000000e+00> : vector<1x896xf32>
    %20 = tpu.matmul %5, %19, %cst_19 {dimension_numbers = #tpu.dot_dimension_numbers<[1], [0], [0], [1], [0, 0, 1, 1], [], []>} : vector<1x65xf32>, vector<65x896xf32>, vector<1x896xf32> -> vector<1x896xf32>
    %c5 = arith.constant 5 : index
    %c0_20 = arith.constant 0 : index
    %c0_21 = arith.constant 0 : index
    %21 = vector.load %arg3[%c5, %c0_20, %c0_21] : memref<8x65x896xf32, #tpu.memory_space<vmem>>, vector<1x65x896xf32>
    %22 = vector.shape_cast %21 : vector<1x65x896xf32> to vector<65x896xf32>
    %cst_22 = arith.constant dense<0.000000e+00> : vector<1x896xf32>
    %23 = tpu.matmul %5, %22, %cst_22 {dimension_numbers = #tpu.dot_dimension_numbers<[1], [0], [0], [1], [0, 0, 1, 1], [], []>} : vector<1x65xf32>, vector<65x896xf32>, vector<1x896xf32> -> vector<1x896xf32>
    %c6 = arith.constant 6 : index
    %c0_23 = arith.constant 0 : index
    %c0_24 = arith.constant 0 : index
    %24 = vector.load %arg3[%c6, %c0_23, %c0_24] : memref<8x65x896xf32, #tpu.memory_space<vmem>>, vector<1x65x896xf32>
    %25 = vector.shape_cast %24 : vector<1x65x896xf32> to vector<65x896xf32>
    %cst_25 = arith.constant dense<0.000000e+00> : vector<1x896xf32>
    %26 = tpu.matmul %5, %25, %cst_25 {dimension_numbers = #tpu.dot_dimension_numbers<[1], [0], [0], [1], [0, 0, 1, 1], [], []>} : vector<1x65xf32>, vector<65x896xf32>, vector<1x896xf32> -> vector<1x896xf32>
    %c7 = arith.constant 7 : index
    %c0_26 = arith.constant 0 : index
    %c0_27 = arith.constant 0 : index
    %27 = vector.load %arg3[%c7, %c0_26, %c0_27] : memref<8x65x896xf32, #tpu.memory_space<vmem>>, vector<1x65x896xf32>
    %28 = vector.shape_cast %27 : vector<1x65x896xf32> to vector<65x896xf32>
    %cst_28 = arith.constant dense<0.000000e+00> : vector<1x896xf32>
    %29 = tpu.matmul %5, %28, %cst_28 {dimension_numbers = #tpu.dot_dimension_numbers<[1], [0], [0], [1], [0, 0, 1, 1], [], []>} : vector<1x65xf32>, vector<65x896xf32>, vector<1x896xf32> -> vector<1x896xf32>
    %30 = tpu.concatenate %8, %11, %14, %17, %20, %23, %26, %29 in 0 : vector<1x896xf32>, vector<1x896xf32>, vector<1x896xf32>, vector<1x896xf32>, vector<1x896xf32>, vector<1x896xf32>, vector<1x896xf32>, vector<1x896xf32> -> vector<8x896xf32>
    %cst_29 = arith.constant dense<0.000000e+00> : vector<2x8xf32>
    %31 = tpu.matmul %0, %30, %cst_29 {dimension_numbers = #tpu.dot_dimension_numbers<[1], [1], [0], [0], [0, 0, 1, 0], [], []>} : vector<2x896xf32>, vector<8x896xf32>, vector<2x8xf32> -> vector<2x8xf32>
    %c0_30 = arith.constant 0 : index
    %c0_31 = arith.constant 0 : index
    %32 = vector.load %arg4[%c0_30, %c0_31] : memref<2x8xf32, #tpu.memory_space<vmem>>, vector<2x8xf32>
    tpu.vector_store %arg4[%c0_30, %c0_31], %31 {strides = array<i32>} : memref<2x8xf32, #tpu.memory_space<vmem>>, vector<2x8xf32>,
    return
  }
  func.func @transform_0(%arg0: i32) -> (i32, i32) {
    %c0_i32 = arith.constant 0 : i32
    %c0_i32_0 = arith.constant 0 : i32
    %c0_i32_1 = arith.constant 0 : i32
    return %c0_i32, %c0_i32_0 : i32, i32
  }
  func.func @transform_1(%arg0: i32) -> (i32, i32) {
    %c0_i32 = arith.constant 0 : i32
    %c0_i32_0 = arith.constant 0 : i32
    %c0_i32_1 = arith.constant 0 : i32
    return %c0_i32, %c0_i32_0 : i32, i32
  }
  func.func @transform_2(%arg0: i32) -> (i32, i32, i32) {
    %c0_i32 = arith.constant 0 : i32
    %c0_i32_0 = arith.constant 0 : i32
    %c0_i32_1 = arith.constant 0 : i32
    %c0_i32_2 = arith.constant 0 : i32
    return %c0_i32, %c0_i32_0, %c0_i32_1 : i32, i32, i32
  }
  func.func @transform_3(%arg0: i32) -> (i32, i32) {
    %c0_i32 = arith.constant 0 : i32
    %c0_i32_0 = arith.constant 0 : i32
    %c0_i32_1 = arith.constant 0 : i32
    return %c0_i32, %c0_i32_0 : i32, i32
  }
}

</mosaic_0001>

<llo_original>
// kernel: one_up_forward.1
$region0: #{one_up_forward.1}
  #allocation0 [shape = 'u32[]', space=smem, size = 0x4, offset = 0x4, fixed_abs, tag = 'smem constant byte address 0x4 - core index']
  #allocation1 [shape = 'u32[144,128]{1,0:T(1,128)}', space=vmem, size = 0x12000, scoped, tag = 'internal scratch']
  %s0 = inlined_call_operand.vmem [shape: f32[2,896], index: 0, kind: input, shape index: {}]
  %s1 = inlined_call_operand.vmem [shape: f32[65,896], index: 1, kind: input, shape index: {}]
  %s2 = inlined_call_operand.vmem [shape: f32[8,65,896], index: 2, kind: input, shape index: {}]
  %s3 = inlined_call_operand.hbm [shape: f32[2,8], index: 3, kind: output, shape index: {}]
  %s4 = sld [smem:[#allocation0]]
  $region22: #{one_up_forward.1} parent=0
    _
  %s6 = ssub.s32 1, %s4
  %s7 = scalar_select 0, %s6, %s4
  $region1: #{one_up_forward.1} parent=0
    #allocation2 [shape = 'u8[1024]{0}', space=vmem, size = 0x400, scoped, tag = 'output window, operand 0, single buffered']
    #allocation3 [shape = 's32[1]{0}', space=sflag, size = 0x4, scoped, tag = 'scoped memory for one_up_forward.1']
    %8 = vsyncpa [#allocation3], 0
    // Predicated region
    $region2: #{one_up_forward.1} parent=1 // pred_check
      _
    $region3: #{one_up_forward.1} parent=1 // pred_check_branch
      %10 = sbr.rel (0) target = $region5
    $region4: #{one_up_forward.1} parent=1 // pred_region
      _
    $region5: #{one_up_forward.1} parent=1 // pred_fallthru
      _
    // Predicated region
    $region6: #{one_up_forward.1} parent=1 // pred_check
      _
    $region7: #{one_up_forward.1} parent=1 // pred_check_branch
      %12 = sbr.rel (0) target = $region9
    $region8: #{one_up_forward.1} parent=1 // pred_region
      _
    $region9: #{one_up_forward.1} parent=1 // pred_fallthru
      _
    // Predicated region
    $region10: #{one_up_forward.1} parent=1 // pred_check
      _
    $region11: #{one_up_forward.1} parent=1 // pred_check_branch
      %14 = sbr.rel (0) target = $region13
    $region12: #{one_up_forward.1} parent=1 // pred_region
      _
    $region13: #{one_up_forward.1} parent=1 // pred_fallthru
      _
    %v15 = vld [vmem:[%s0] sm:$0xff]
    %v16 = vld [vmem:[%s0 + $0x8] sm:$0x3f]
    %v17 = vld [vmem:[%s1] sm:$0xff]
    %v18 = vld [vmem:[%s1 + $0x8] sm:$0xff]
    %v19 = vld [vmem:[%s1 + $0x10] sm:$0xff]
    %v20 = vld [vmem:[%s1 + $0x18] sm:$0xff]
    %v21 = vld [vmem:[%s1 + $0x20] sm:$0xff]
    %v22 = vld [vmem:[%s1 + $0x28] sm:$0xff]
    %v23 = vld [vmem:[%s1 + $0x30] sm:$0xff]
    %v24 = vld [vmem:[%s1 + $0x38] sm:$0xff]
    %v25 = vld [vmem:[%s1 + $0x40] sm:$0xff]
    %v26 = vld [vmem:[%s1 + $0x48] sm:$0xff]
    %v27 = vld [vmem:[%s1 + $0x50] sm:$0xff]
    %v28 = vld [vmem:[%s1 + $0x58] sm:$0xff]
    %v29 = vld [vmem:[%s1 + $0x60] sm:$0xff]
    %v30 = vld [vmem:[%s1 + $0x68] sm:$0xff]
    %v31 = vld [vmem:[%s1 + $0x70] sm:$0xff]
    %v32 = vld [vmem:[%s1 + $0x78] sm:$0xff]
    %v33 = vld [vmem:[%s1 + $0x80] sm:$0xff]
    %v34 = vld [vmem:[%s1 + $0x88] sm:$0xff]
    %v35 = vld [vmem:[%s1 + $0x90] sm:$0xff]
    %v36 = vld [vmem:[%s1 + $0x98] sm:$0xff]
    %v37 = vld [vmem:[%s1 + $0xa0] sm:$0xff]
    %v38 = vld [vmem:[%s1 + $0xa8] sm:$0xff]
    %v39 = vld [vmem:[%s1 + $0xb0] sm:$0xff]
    %v40 = vld [vmem:[%s1 + $0xb8] sm:$0xff]
    %v41 = vld [vmem:[%s1 + $0xc0] sm:$0xff]
    %v42 = vld [vmem:[%s1 + $0xc8] sm:$0xff]
    %v43 = vld [vmem:[%s1 + $0xd0] sm:$0xff]
    %v44 = vld [vmem:[%s1 + $0xd8] sm:$0xff]
    %v45 = vld [vmem:[%s1 + $0xe0] sm:$0xff]
    %v46 = vld [vmem:[%s1 + $0xe8] sm:$0xff]
    %v47 = vld [vmem:[%s1 + $0xf0] sm:$0xff]
    %v48 = vld [vmem:[%s1 + $0xf8] sm:$0xff]
    %v49 = vld [vmem:[%s1 + $0x100] sm:$0xff]
    %v50 = vld [vmem:[%s1 + $0x108] sm:$0xff]
    %v51 = vld [vmem:[%s1 + $0x110] sm:$0xff]
    %v52 = vld [vmem:[%s1 + $0x118] sm:$0xff]
    %v53 = vld [vmem:[%s1 + $0x120] sm:$0xff]
    %v54 = vld [vmem:[%s1 + $0x128] sm:$0xff]
    %v55 = vld [vmem:[%s1 + $0x130] sm:$0xff]
    %v56 = vld [vmem:[%s1 + $0x138] sm:$0xff]
    %v57 = vld [vmem:[%s1 + $0x140] sm:$0xff]
    %v58 = vld [vmem:[%s1 + $0x148] sm:$0xff]
    %v59 = vld [vmem:[%s1 + $0x150] sm:$0xff]
    %v60 = vld [vmem:[%s1 + $0x158] sm:$0xff]
    %v61 = vld [vmem:[%s1 + $0x160] sm:$0xff]
    %v62 = vld [vmem:[%s1 + $0x168] sm:$0xff]
    %v63 = vld [vmem:[%s1 + $0x170] sm:$0xff]
    %v64 = vld [vmem:[%s1 + $0x178] sm:$0xff]
    %v65 = vld [vmem:[%s1 + $0x180] sm:$0xff]
    %v66 = vld [vmem:[%s1 + $0x188] sm:$0xff]
    %v67 = vld [vmem:[%s1 + $0x190] sm:$0xff]
    %v68 = vld [vmem:[%s1 + $0x198] sm:$0xff]
    %v69 = vld [vmem:[%s1 + $0x1a0] sm:$0xff]
    %v70 = vld [vmem:[%s1 + $0x1a8] sm:$0xff]
    %v71 = vld [vmem:[%s1 + $0x1b0] sm:$0xff]
    %v72 = vld [vmem:[%s1 + $0x1b8] sm:$0xff]
    %v73 = vld [vmem:[%s1 + $0x1c0] sm:$0x1]
    %v74 = vld [vmem:[%s1 + $0x1c8] sm:$0x1]
    %v75 = vld [vmem:[%s1 + $0x1d0] sm:$0x1]
    %v76 = vld [vmem:[%s1 + $0x1d8] sm:$0x1]
    %v77 = vld [vmem:[%s1 + $0x1e0] sm:$0x1]
    %v78 = vld [vmem:[%s1 + $0x1e8] sm:$0x1]
    %v79 = vld [vmem:[%s1 + $0x1f0] sm:$0x1]
    %v82 = vlaneseq
    %v83 = vshrl.u32 %v82, 7
    %v84 = vsub.s32 0, %v83
    %v85 = vrot.slane %v15, %v84
    %v86 = vlaneseq
    %v87 = vshrl.u32 %v86, 7
    %v88 = vsub.s32 2, %v87
    %v89 = vrot.slane %v15, %v88
    %v90 = vlaneseq
    %v91 = vshrl.u32 %v90, 7
    %v92 = vsub.s32 4, %v91
    %v93 = vrot.slane %v15, %v92
    %v94 = vlaneseq
    %v95 = vshrl.u32 %v94, 7
    %v96 = vsub.s32 6, %v95
    %v97 = vrot.slane %v15, %v96
    %v98 = vlaneseq
    %v99 = vshrl.u32 %v98, 7
    %v100 = vsub.s32 0, %v99
    %v101 = vrot.slane %v16, %v100
    %v102 = vlaneseq
    %v103 = vshrl.u32 %v102, 7
    %v104 = vsub.s32 2, %v103
    %v105 = vrot.slane %v16, %v104
    %v106 = vlaneseq
    %v107 = vshrl.u32 %v106, 7
    %v108 = vsub.s32 4, %v107
    %v109 = vrot.slane %v16, %v108
    %117 = vmatprep.subr.mxu0 %v18
    %118 = vmatpush1.xpose.msra.mxu0 %v17
    %119 = vmatprep.subr.mxu0 %v25
    %120 = vmatpush1.xpose.msra.mxu0 %v24
    %121 = vmatprep.subr.mxu0 %v32
    %122 = vmatpush1.xpose.msra.mxu0 %v31
    %123 = vmatprep.subr.mxu0 %v39
    %124 = vmatpush1.xpose.msra.mxu0 %v38
    %125 = vmatprep.subr.mxu0 %v46
    %126 = vmatpush1.xpose.msra.mxu0 %v45
    %127 = vmatprep.subr.mxu0 %v53
    %128 = vmatpush1.xpose.msra.mxu0 %v52
    %129 = vmatprep.subr.mxu0 %v60
    %130 = vmatpush1.xpose.msra.mxu0 %v59
    %131 = vmatprep.subr.mxu0 %v67
    %132 = vmatpush1.xpose.msra.mxu0 %v66
    %133 = vmatprep.subr.mxu0 %v74
    %134 = vmatpush1.xpose.msra.mxu0 %v73
    %135 = vmatprep.subr.mxu0 0.0
    %136 = vmatpush1.xpose.msra.mxu0 0.0
    %137 = vmatprep.subr.mxu0 0.0
    %138 = vmatpush1.xpose.msra.mxu0 0.0
    %139 = vmatprep.subr.mxu0 0.0
    %140 = vmatpush1.xpose.msra.mxu0 0.0
    %141 = vmatprep.subr.mxu0 0.0
    %142 = vmatpush1.xpose.msra.mxu0 0.0
    %143 = vmatprep.subr.mxu0 0.0
    %144 = vmatpush1.xpose.msra.mxu0 0.0
    %145 = vmatprep.subr.mxu0 0.0
    %146 = vmatpush1.xpose.msra.mxu0 0.0
    %147 = vmatprep.subr.mxu0 0.0
    %148 = vmatpush1.xpose.msra.mxu0 0.0
    %149 = vmatprep.subr.mxu0 0.0
    %150 = vmatpush1.xpose.msra.mxu0 0.0
    %151 = vmatprep.subr.mxu0 0.0
    %152 = vmatpush1.xpose.msra.mxu0 0.0
    %153 = vmatprep.subr.mxu0 0.0
    %154 = vmatpush1.xpose.msra.mxu0 0.0
    %155 = vmatprep.subr.mxu0 0.0
    %156 = vmatpush1.xpose.msra.mxu0 0.0
    %157 = vmatprep.subr.mxu0 0.0
    %158 = vmatpush1.xpose.msra.mxu0 0.0
    %159 = vmatprep.subr.mxu0 0.0
    %160 = vmatpush1.xpose.msra.mxu0 0.0
    %161 = vmatprep.subr.mxu0 0.0
    %162 = vmatpush1.xpose.msra.mxu0 0.0
    %163 = vmatprep.subr.mxu0 0.0
    %164 = vmatpush1.xpose.msra.mxu0 0.0
    %165 = vmatprep.subr.mxu0 0.0
    %166 = vmatpush1.xpose.msra.mxu0 0.0
    %167 = vmatprep.subr.mxu0 0.0
    %168 = vmatpush1.xpose.msra.mxu0 0.0
    %169 = vmatprep.subr.mxu0 0.0
    %170 = vmatpush1.xpose.msra.mxu0 0.0
    %171 = vmatprep.subr.mxu0 0.0
    %172 = vmatpush1.xpose.msra.mxu0 0.0
    %173 = vmatprep.subr.mxu0 0.0
    %174 = vmatpush1.xpose.msra.mxu0 0.0
    %175 = vmatprep.subr.mxu0 0.0
    %176 = vmatpush1.xpose.msra.mxu0 0.0
    %177 = vmatprep.subr.mxu0 0.0
    %178 = vmatpush1.xpose.msra.mxu0 0.0
    %179 = vmatprep.subr.mxu0 0.0
    %180 = vmatpush1.xpose.msra.mxu0 0.0
    %181 = vmatprep.mubr.f32.mxu0 %v89
    %182 = vmatmul.mubr.f32.gmra.mrb[0].mxu0 %v85
    %v183 = vpop.f32.mrb[0].mxu0
    %v184 = vadd.f32 0.0, %v183
    %v185 = vpop.f32.mrb[0].mxu0
    %186 = vdwg.mxu0
    %187 = vmatprep.subr.mxu0 %v20
    %188 = vmatpush1.xpose.msra.mxu0 %v19
    %189 = vmatprep.subr.mxu0 %v27
    %190 = vmatpush1.xpose.msra.mxu0 %v26
    %191 = vmatprep.subr.mxu0 %v34
    %192 = vmatpush1.xpose.msra.mxu0 %v33
    %193 = vmatprep.subr.mxu0 %v41
    %194 = vmatpush1.xpose.msra.mxu0 %v40
    %195 = vmatprep.subr.mxu0 %v48
    %196 = vmatpush1.xpose.msra.mxu0 %v47
    %197 = vmatprep.subr.mxu0 %v55
    %198 = vmatpush1.xpose.msra.mxu0 %v54
    %199 = vmatprep.subr.mxu0 %v62
    %200 = vmatpush1.xpose.msra.mxu0 %v61
    %201 = vmatprep.subr.mxu0 %v69
    %202 = vmatpush1.xpose.msra.mxu0 %v68
    %203 = vmatprep.subr.mxu0 %v76
    %204 = vmatpush1.xpose.msra.mxu0 %v75
    %205 = vmatprep.subr.mxu0 0.0
    %206 = vmatpush1.xpose.msra.mxu0 0.0
    %207 = vmatprep.subr.mxu0 0.0
    %208 = vmatpush1.xpose.msra.mxu0 0.0
    %209 = vmatprep.subr.mxu0 0.0
    %210 = vmatpush1.xpose.msra.mxu0 0.0
    %211 = vmatprep.subr.mxu0 0.0
    %212 = vmatpush1.xpose.msra.mxu0 0.0
    %213 = vmatprep.subr.mxu0 0.0
    %214 = vmatpush1.xpose.msra.mxu0 0.0
    %215 = vmatprep.subr.mxu0 0.0
    %216 = vmatpush1.xpose.msra.mxu0 0.0
    %217 = vmatprep.subr.mxu0 0.0
    %218 = vmatpush1.xpose.msra.mxu0 0.0
    %219 = vmatprep.subr.mxu0 0.0
    %220 = vmatpush1.xpose.msra.mxu0 0.0
    %221 = vmatprep.subr.mxu0 0.0
    %222 = vmatpush1.xpose.msra.mxu0 0.0
    %223 = vmatprep.subr.mxu0 0.0
    %224 = vmatpush1.xpose.msra.mxu0 0.0
    %225 = vmatprep.subr.mxu0 0.0
    %226 = vmatpush1.xpose.msra.mxu0 0.0
    %227 = vmatprep.subr.mxu0 0.0
    %228 = vmatpush1.xpose.msra.mxu0 0.0
    %229 = vmatprep.subr.mxu0 0.0
    %230 = vmatpush1.xpose.msra.mxu0 0.0
    %231 = vmatprep.subr.mxu0 0.0
    %232 = vmatpush1.xpose.msra.mxu0 0.0
    %233 = vmatprep.subr.mxu0 0.0
    %234 = vmatpush1.xpose.msra.mxu0 0.0
    %235 = vmatprep.subr.mxu0 0.0
    %236 = vmatpush1.xpose.msra.mxu0 0.0
    %237 = vmatprep.subr.mxu0 0.0
    %238 = vmatpush1.xpose.msra.mxu0 0.0
    %239 = vmatprep.subr.mxu0 0.0
    %240 = vmatpush1.xpose.msra.mxu0 0.0
    %241 = vmatprep.subr.mxu0 0.0
    %242 = vmatpush1.xpose.msra.mxu0 0.0
    %243 = vmatprep.subr.mxu0 0.0
    %244 = vmatpush1.xpose.msra.mxu0 0.0
    %245 = vmatprep.subr.mxu0 0.0
    %246 = vmatpush1.xpose.msra.mxu0 0.0
    %247 = vmatprep.subr.mxu0 0.0
    %248 = vmatpush1.xpose.msra.mxu0 0.0
    %249 = vmatprep.subr.mxu0 0.0
    %250 = vmatpush1.xpose.msra.mxu0 0.0
    %251 = vmatprep.mubr.f32.mxu0 %v97
    %252 = vmatmul.mubr.f32.gmra.mrb[0].mxu0 %v93
    %v253 = vpop.f32.mrb[0].mxu0
    %v254 = vadd.f32 %v184, %v253
    %v255 = vpop.f32.mrb[0].mxu0
    %256 = vdwg.mxu0
    %257 = vmatprep.subr.mxu0 %v22
    %258 = vmatpush1.xpose.msra.mxu0 %v21
    %259 = vmatprep.subr.mxu0 %v29
    %260 = vmatpush1.xpose.msra.mxu0 %v28
    %261 = vmatprep.subr.mxu0 %v36
    %262 = vmatpush1.xpose.msra.mxu0 %v35
    %263 = vmatprep.subr.mxu0 %v43
    %264 = vmatpush1.xpose.msra.mxu0 %v42
    %265 = vmatprep.subr.mxu0 %v50
    %266 = vmatpush1.xpose.msra.mxu0 %v49
    %267 = vmatprep.subr.mxu0 %v57
    %268 = vmatpush1.xpose.msra.mxu0 %v56
    %269 = vmatprep.subr.mxu0 %v64
    %270 = vmatpush1.xpose.msra.mxu0 %v63
    %271 = vmatprep.subr.mxu0 %v71
    %272 = vmatpush1.xpose.msra.mxu0 %v70
    %273 = vmatprep.subr.mxu0 %v78
    %274 = vmatpush1.xpose.msra.mxu0 %v77
    %275 = vmatprep.subr.mxu0 0.0
    %276 = vmatpush1.xpose.msra.mxu0 0.0
    %277 = vmatprep.subr.mxu0 0.0
    %278 = vmatpush1.xpose.msra.mxu0 0.0
    %279 = vmatprep.subr.mxu0 0.0
    %280 = vmatpush1.xpose.msra.mxu0 0.0
    %281 = vmatprep.subr.mxu0 0.0
    %282 = vmatpush1.xpose.msra.mxu0 0.0
    %283 = vmatprep.subr.mxu0 0.0
    %284 = vmatpush1.xpose.msra.mxu0 0.0
    %285 = vmatprep.subr.mxu0 0.0
    %286 = vmatpush1.xpose.msra.mxu0 0.0
    %287 = vmatprep.subr.mxu0 0.0
    %288 = vmatpush1.xpose.msra.mxu0 0.0
    %289 = vmatprep.subr.mxu0 0.0
    %290 = vmatpush1.xpose.msra.mxu0 0.0
    %291 = vmatprep.subr.mxu0 0.0
    %292 = vmatpush1.xpose.msra.mxu0 0.0
    %293 = vmatprep.subr.mxu0 0.0
    %294 = vmatpush1.xpose.msra.mxu0 0.0
    %295 = vmatprep.subr.mxu0 0.0
    %296 = vmatpush1.xpose.msra.mxu0 0.0
    %297 = vmatprep.subr.mxu0 0.0
    %298 = vmatpush1.xpose.msra.mxu0 0.0
    %299 = vmatprep.subr.mxu0 0.0
    %300 = vmatpush1.xpose.msra.mxu0 0.0
    %301 = vmatprep.subr.mxu0 0.0
    %302 = vmatpush1.xpose.msra.mxu0 0.0
    %303 = vmatprep.subr.mxu0 0.0
    %304 = vmatpush1.xpose.msra.mxu0 0.0
    %305 = vmatprep.subr.mxu0 0.0
    %306 = vmatpush1.xpose.msra.mxu0 0.0
    %307 = vmatprep.subr.mxu0 0.0
    %308 = vmatpush1.xpose.msra.mxu0 0.0
    %309 = vmatprep.subr.mxu0 0.0
    %310 = vmatpush1.xpose.msra.mxu0 0.0
    %311 = vmatprep.subr.mxu0 0.0
    %312 = vmatpush1.xpose.msra.mxu0 0.0
    %313 = vmatprep.subr.mxu0 0.0
    %314 = vmatpush1.xpose.msra.mxu0 0.0
    %315 = vmatprep.subr.mxu0 0.0
    %316 = vmatpush1.xpose.msra.mxu0 0.0
    %317 = vmatprep.subr.mxu0 0.0
    %318 = vmatpush1.xpose.msra.mxu0 0.0
    %319 = vmatprep.subr.mxu0 0.0
    %320 = vmatpush1.xpose.msra.mxu0 0.0
    %321 = vmatprep.mubr.f32.mxu0 %v105
    %322 = vmatmul.mubr.f32.gmra.mrb[0].mxu0 %v101
    %v323 = vpop.f32.mrb[0].mxu0
    %v324 = vadd.f32 %v254, %v323
    %v325 = vpop.f32.mrb[0].mxu0
    %326 = vdwg.mxu0
    %327 = vmatprep.subr.mxu0 0.0
    %328 = vmatpush1.xpose.msra.mxu0 %v23
    %329 = vmatprep.subr.mxu0 0.0
    %330 = vmatpush1.xpose.msra.mxu0 %v30
    %331 = vmatprep.subr.mxu0 0.0
    %332 = vmatpush1.xpose.msra.mxu0 %v37
    %333 = vmatprep.subr.mxu0 0.0
    %334 = vmatpush1.xpose.msra.mxu0 %v44
    %335 = vmatprep.subr.mxu0 0.0
    %336 = vmatpush1.xpose.msra.mxu0 %v51
    %337 = vmatprep.subr.mxu0 0.0
    %338 = vmatpush1.xpose.msra.mxu0 %v58
    %339 = vmatprep.subr.mxu0 0.0
    %340 = vmatpush1.xpose.msra.mxu0 %v65
    %341 = vmatprep.subr.mxu0 0.0
    %342 = vmatpush1.xpose.msra.mxu0 %v72
    %343 = vmatprep.subr.mxu0 0.0
    %344 = vmatpush1.xpose.msra.mxu0 %v79
    %345 = vmatprep.subr.mxu0 0.0
    %346 = vmatpush1.xpose.msra.mxu0 0.0
    %347 = vmatprep.subr.mxu0 0.0
    %348 = vmatpush1.xpose.msra.mxu0 0.0
    %349 = vmatprep.subr.mxu0 0.0
    %350 = vmatpush1.xpose.msra.mxu0 0.0
    %351 = vmatprep.subr.mxu0 0.0
    %352 = vmatpush1.xpose.msra.mxu0 0.0
    %353 = vmatprep.subr.mxu0 0.0
    %354 = vmatpush1.xpose.msra.mxu0 0.0
    %355 = vmatprep.subr.mxu0 0.0
    %356 = vmatpush1.xpose.msra.mxu0 0.0
    %357 = vmatprep.subr.mxu0 0.0
    %358 = vmatpush1.xpose.msra.mxu0 0.0
    %359 = vmatprep.subr.mxu0 0.0
    %360 = vmatpush1.xpose.msra.mxu0 0.0
    %361 = vmatprep.subr.mxu0 0.0
    %362 = vmatpush1.xpose.msra.mxu0 0.0
    %363 = vmatprep.subr.mxu0 0.0
    %364 = vmatpush1.xpose.msra.mxu0 0.0
    %365 = vmatprep.subr.mxu0 0.0
    %366 = vmatpush1.xpose.msra.mxu0 0.0
    %367 = vmatprep.subr.mxu0 0.0
    %368 = vmatpush1.xpose.msra.mxu0 0.0
    %369 = vmatprep.subr.mxu0 0.0
    %370 = vmatpush1.xpose.msra.mxu0 0.0
    %371 = vmatprep.subr.mxu0 0.0
    %372 = vmatpush1.xpose.msra.mxu0 0.0
    %373 = vmatprep.subr.mxu0 0.0
    %374 = vmatpush1.xpose.msra.mxu0 0.0
    %375 = vmatprep.subr.mxu0 0.0
    %376 = vmatpush1.xpose.msra.mxu0 0.0
    %377 = vmatprep.subr.mxu0 0.0
    %378 = vmatpush1.xpose.msra.mxu0 0.0
    %379 = vmatprep.subr.mxu0 0.0
    %380 = vmatpush1.xpose.msra.mxu0 0.0
    %381 = vmatprep.subr.mxu0 0.0
    %382 = vmatpush1.xpose.msra.mxu0 0.0
    %383 = vmatprep.subr.mxu0 0.0
    %384 = vmatpush1.xpose.msra.mxu0 0.0
    %385 = vmatprep.subr.mxu0 0.0
    %386 = vmatpush1.xpose.msra.mxu0 0.0
    %387 = vmatprep.subr.mxu0 0.0
    %388 = vmatpush1.xpose.msra.mxu0 0.0
    %389 = vmatprep.subr.mxu0 0.0
    %390 = vmatpush1.xpose.msra.mxu0 0.0
    %391 = vmatprep.mubr.f32.mxu0 0.0
    %392 = vmatmul.mubr.f32.gmra.mrb[0].mxu0 %v109
    %v393 = vpop.f32.mrb[0].mxu0
    %v394 = vadd.f32 %v324, %v393
    %v395 = vpop.f32.mrb[0].mxu0
    %396 = vdwg.mxu0
    %v397 = vmax.f32 %v394, 0.0
    %v398 = vld [vmem:[%s2] sm:$0xff]
    %v399 = vld [vmem:[%s2 + $0x8] sm:$0xff]
    %v400 = vld [vmem:[%s2 + $0x10] sm:$0xff]
    %v401 = vld [vmem:[%s2 + $0x18] sm:$0xff]
    %v402 = vld [vmem:[%s2 + $0x20] sm:$0xff]
    %v403 = vld [vmem:[%s2 + $0x28] sm:$0xff]
    %v404 = vld [vmem:[%s2 + $0x30] sm:$0xff]
    %v405 = vld [vmem:[%s2 + $0x38] sm:$0xff]
    %v406 = vld [vmem:[%s2 + $0x40] sm:$0xff]
    %v407 = vld [vmem:[%s2 + $0x48] sm:$0xff]
    %v408 = vld [vmem:[%s2 + $0x50] sm:$0xff]
    %v409 = vld [vmem:[%s2 + $0x58] sm:$0xff]
    %v410 = vld [vmem:[%s2 + $0x60] sm:$0xff]
    %v411 = vld [vmem:[%s2 + $0x68] sm:$0xff]
    %v412 = vld [vmem:[%s2 + $0x70] sm:$0xff]
    %v413 = vld [vmem:[%s2 + $0x78] sm:$0xff]
    %v414 = vld [vmem:[%s2 + $0x80] sm:$0xff]
    %v415 = vld [vmem:[%s2 + $0x88] sm:$0xff]
    %v416 = vld [vmem:[%s2 + $0x90] sm:$0xff]
    %v417 = vld [vmem:[%s2 + $0x98] sm:$0xff]
    %v418 = vld [vmem:[%s2 + $0xa0] sm:$0xff]
    %v419 = vld [vmem:[%s2 + $0xa8] sm:$0xff]
    %v420 = vld [vmem:[%s2 + $0xb0] sm:$0xff]
    %v421 = vld [vmem:[%s2 + $0xb8] sm:$0xff]
    %v422 = vld [vmem:[%s2 + $0xc0] sm:$0xff]
    %v423 = vld [vmem:[%s2 + $0xc8] sm:$0xff]
    %v424 = vld [vmem:[%s2 + $0xd0] sm:$0xff]
    %v425 = vld [vmem:[%s2 + $0xd8] sm:$0xff]
    %v426 = vld [vmem:[%s2 + $0xe0] sm:$0xff]
    %v427 = vld [vmem:[%s2 + $0xe8] sm:$0xff]
    %v428 = vld [vmem:[%s2 + $0xf0] sm:$0xff]
    %v429 = vld [vmem:[%s2 + $0xf8] sm:$0xff]
    %v430 = vld [vmem:[%s2 + $0x100] sm:$0xff]
    %v431 = vld [vmem:[%s2 + $0x108] sm:$0xff]
    %v432 = vld [vmem:[%s2 + $0x110] sm:$0xff]
    %v433 = vld [vmem:[%s2 + $0x118] sm:$0xff]
    %v434 = vld [vmem:[%s2 + $0x120] sm:$0xff]
    %v435 = vld [vmem:[%s2 + $0x128] sm:$0xff]
    %v436 = vld [vmem:[%s2 + $0x130] sm:$0xff]
    %v437 = vld [vmem:[%s2 + $0x138] sm:$0xff]
    %v438 = vld [vmem:[%s2 + $0x140] sm:$0xff]
    %v439 = vld [vmem:[%s2 + $0x148] sm:$0xff]
    %v440 = vld [vmem:[%s2 + $0x150] sm:$0xff]
    %v441 = vld [vmem:[%s2 + $0x158] sm:$0xff]
    %v442 = vld [vmem:[%s2 + $0x160] sm:$0xff]
    %v443 = vld [vmem:[%s2 + $0x168] sm:$0xff]
    %v444 = vld [vmem:[%s2 + $0x170] sm:$0xff]
    %v445 = vld [vmem:[%s2 + $0x178] sm:$0xff]
    %v446 = vld [vmem:[%s2 + $0x180] sm:$0xff]
    %v447 = vld [vmem:[%s2 + $0x188] sm:$0xff]
    %v448 = vld [vmem:[%s2 + $0x190] sm:$0xff]
    %v449 = vld [vmem:[%s2 + $0x198] sm:$0xff]
    %v450 = vld [vmem:[%s2 + $0x1a0] sm:$0xff]
    %v451 = vld [vmem:[%s2 + $0x1a8] sm:$0xff]
    %v452 = vld [vmem:[%s2 + $0x1b0] sm:$0xff]
    %v453 = vld [vmem:[%s2 + $0x1b8] sm:$0xff]
    %v454 = vld [vmem:[%s2 + $0x1c0] sm:$0x1]
    %v455 = vld [vmem:[%s2 + $0x1c8] sm:$0x1]
    %v456 = vld [vmem:[%s2 + $0x1d0] sm:$0x1]
    %v457 = vld [vmem:[%s2 + $0x1d8] sm:$0x1]
    %v458 = vld [vmem:[%s2 + $0x1e0] sm:$0x1]
    %v459 = vld [vmem:[%s2 + $0x1e8] sm:$0x1]
    %v460 = vld [vmem:[%s2 + $0x1f0] sm:$0x1]
    %vm461 = vcmask 531456
    %v463 = vsel %vm461, %v397, 0
    %vm465 = vcmask 1040384
    %v467 = vsel %vm465, %v454, 0
    %v470 = vsel %vm465, %v455, 0
    %v473 = vsel %vm465, %v456, 0
    %v476 = vsel %vm465, %v457, 0
    %v479 = vsel %vm465, %v458, 0
    %v482 = vsel %vm465, %v459, 0
    %v485 = vsel %vm465, %v460, 0
    %487 = vmatprep.subr.mxu0 %v399
    %488 = vmatpush1.msra.mxu0 %v398
    %489 = vmatprep.subr.mxu0 %v406
    %490 = vmatpush1.msra.mxu0 %v405
    %491 = vmatprep.subr.mxu0 %v413
    %492 = vmatpush1.msra.mxu0 %v412
    %493 = vmatprep.subr.mxu0 %v420
    %494 = vmatpush1.msra.mxu0 %v419
    %495 = vmatprep.subr.mxu0 %v427
    %496 = vmatpush1.msra.mxu0 %v426
    %497 = vmatprep.subr.mxu0 %v434
    %498 = vmatpush1.msra.mxu0 %v433
    %499 = vmatprep.subr.mxu0 %v441
    %500 = vmatpush1.msra.mxu0 %v440
    %501 = vmatprep.subr.mxu0 %v448
    %502 = vmatpush1.msra.mxu0 %v447
    %503 = vmatprep.subr.mxu0 %v470
    %504 = vmatpush1.msra.mxu0 %v467
    %505 = vmatprep.subr.mxu0 0.0
    %506 = vmatpush1.msra.mxu0 0.0
    %507 = vmatprep.subr.mxu0 0.0
    %508 = vmatpush1.msra.mxu0 0.0
    %509 = vmatprep.subr.mxu0 0.0
    %510 = vmatpush1.msra.mxu0 0.0
    %511 = vmatprep.subr.mxu0 0.0
    %512 = vmatpush1.msra.mxu0 0.0
    %513 = vmatprep.subr.mxu0 0.0
    %514 = vmatpush1.msra.mxu0 0.0
    %515 = vmatprep.subr.mxu0 0.0
    %516 = vmatpush1.msra.mxu0 0.0
    %517 = vmatprep.subr.mxu0 0.0
    %518 = vmatpush1.msra.mxu0 0.0
    %519 = vmatprep.subr.mxu0 0.0
    %520 = vmatpush1.msra.mxu0 0.0
    %521 = vmatprep.subr.mxu0 0.0
    %522 = vmatpush1.msra.mxu0 0.0
    %523 = vmatprep.subr.mxu0 0.0
    %524 = vmatpush1.msra.mxu0 0.0
    %525 = vmatprep.subr.mxu0 0.0
    %526 = vmatpush1.msra.mxu0 0.0
    %527 = vmatprep.subr.mxu0 0.0
    %528 = vmatpush1.msra.mxu0 0.0
    %529 = vmatprep.subr.mxu0 0.0
    %530 = vmatpush1.msra.mxu0 0.0
    %531 = vmatprep.subr.mxu0 0.0
    %532 = vmatpush1.msra.mxu0 0.0
    %533 = vmatprep.subr.mxu0 0.0
    %534 = vmatpush1.msra.mxu0 0.0
    %535 = vmatprep.subr.mxu0 0.0
    %536 = vmatpush1.msra.mxu0 0.0
    %537 = vmatprep.subr.mxu0 0.0
    %538 = vmatpush1.msra.mxu0 0.0
    %539 = vmatprep.subr.mxu0 0.0
    %540 = vmatpush1.msra.mxu0 0.0
    %541 = vmatprep.subr.mxu0 0.0
    %542 = vmatpush1.msra.mxu0 0.0
    %543 = vmatprep.subr.mxu0 0.0
    %544 = vmatpush1.msra.mxu0 0.0
    %545 = vmatprep.subr.mxu0 0.0
    %546 = vmatpush1.msra.mxu0 0.0
    %547 = vmatprep.subr.mxu0 0.0
    %548 = vmatpush1.msra.mxu0 0.0
    %549 = vmatprep.subr.mxu0 0.0
    %550 = vmatpush1.msra.mxu0 0.0
    %551 = vmatprep.mubr.f32.mxu0 0.0
    %552 = vmatmul.mubr.f32.gmra.mrb[0].mxu0 %v463
    %v553 = vpop.f32.mrb[0].mxu0
    %v554 = vadd.f32 0.0, %v553
    %v555 = vpop.f32.mrb[0].mxu0
    %v556 = vadd.f32 0.0, %v555
    %557 = vdwg.mxu0
    %558 = vmatprep.subr.mxu0 %v401
    %559 = vmatpush1.msra.mxu0 %v400
    %560 = vmatprep.subr.mxu0 %v408
    %561 = vmatpush1.msra.mxu0 %v407
    %562 = vmatprep.subr.mxu0 %v415
    %563 = vmatpush1.msra.mxu0 %v414
    %564 = vmatprep.subr.mxu0 %v422
    %565 = vmatpush1.msra.mxu0 %v421
    %566 = vmatprep.subr.mxu0 %v429
    %567 = vmatpush1.msra.mxu0 %v428
    %568 = vmatprep.subr.mxu0 %v436
    %569 = vmatpush1.msra.mxu0 %v435
    %570 = vmatprep.subr.mxu0 %v443
    %571 = vmatpush1.msra.mxu0 %v442
    %572 = vmatprep.subr.mxu0 %v450
    %573 = vmatpush1.msra.mxu0 %v449
    %574 = vmatprep.subr.mxu0 %v476
    %575 = vmatpush1.msra.mxu0 %v473
    %576 = vmatprep.subr.mxu0 0.0
    %577 = vmatpush1.msra.mxu0 0.0
    %578 = vmatprep.subr.mxu0 0.0
    %579 = vmatpush1.msra.mxu0 0.0
    %580 = vmatprep.subr.mxu0 0.0
    %581 = vmatpush1.msra.mxu0 0.0
    %582 = vmatprep.subr.mxu0 0.0
    %583 = vmatpush1.msra.mxu0 0.0
    %584 = vmatprep.subr.mxu0 0.0
    %585 = vmatpush1.msra.mxu0 0.0
    %586 = vmatprep.subr.mxu0 0.0
    %587 = vmatpush1.msra.mxu0 0.0
    %588 = vmatprep.subr.mxu0 0.0
    %589 = vmatpush1.msra.mxu0 0.0
    %590 = vmatprep.subr.mxu0 0.0
    %591 = vmatpush1.msra.mxu0 0.0
    %592 = vmatprep.subr.mxu0 0.0
    %593 = vmatpush1.msra.mxu0 0.0
    %594 = vmatprep.subr.mxu0 0.0
    %595 = vmatpush1.msra.mxu0 0.0
    %596 = vmatprep.subr.mxu0 0.0
    %597 = vmatpush1.msra.mxu0 0.0
    %598 = vmatprep.subr.mxu0 0.0
    %599 = vmatpush1.msra.mxu0 0.0
    %600 = vmatprep.subr.mxu0 0.0
    %601 = vmatpush1.msra.mxu0 0.0
    %602 = vmatprep.subr.mxu0 0.0
    %603 = vmatpush1.msra.mxu0 0.0
    %604 = vmatprep.subr.mxu0 0.0
    %605 = vmatpush1.msra.mxu0 0.0
    %606 = vmatprep.subr.mxu0 0.0
    %607 = vmatpush1.msra.mxu0 0.0
    %608 = vmatprep.subr.mxu0 0.0
    %609 = vmatpush1.msra.mxu0 0.0
    %610 = vmatprep.subr.mxu0 0.0
    %611 = vmatpush1.msra.mxu0 0.0
    %612 = vmatprep.subr.mxu0 0.0
    %613 = vmatpush1.msra.mxu0 0.0
    %614 = vmatprep.subr.mxu0 0.0
    %615 = vmatpush1.msra.mxu0 0.0
    %616 = vmatprep.subr.mxu0 0.0
    %617 = vmatpush1.msra.mxu0 0.0
    %618 = vmatprep.subr.mxu0 0.0
    %619 = vmatpush1.msra.mxu0 0.0
    %620 = vmatprep.subr.mxu0 0.0
    %621 = vmatpush1.msra.mxu0 0.0
    %622 = vmatprep.mubr.f32.mxu0 0.0
    %623 = vmatmul.mubr.f32.gmra.mrb[0].mxu0 %v463
    %v624 = vpop.f32.mrb[0].mxu0
    %v625 = vadd.f32 0.0, %v624
    %v626 = vpop.f32.mrb[0].mxu0
    %v627 = vadd.f32 0.0, %v626
    %628 = vdwg.mxu0
    %629 = vmatprep.subr.mxu0 %v403
    %630 = vmatpush1.msra.mxu0 %v402
    %631 = vmatprep.subr.mxu0 %v410
    %632 = vmatpush1.msra.mxu0 %v409
    %633 = vmatprep.subr.mxu0 %v417
    %634 = vmatpush1.msra.mxu0 %v416
    %635 = vmatprep.subr.mxu0 %v424
    %636 = vmatpush1.msra.mxu0 %v423
    %637 = vmatprep.subr.mxu0 %v431
    %638 = vmatpush1.msra.mxu0 %v430
    %639 = vmatprep.subr.mxu0 %v438
    %640 = vmatpush1.msra.mxu0 %v437
    %641 = vmatprep.subr.mxu0 %v445
    %642 = vmatpush1.msra.mxu0 %v444
    %643 = vmatprep.subr.mxu0 %v452
    %644 = vmatpush1.msra.mxu0 %v451
    %645 = vmatprep.subr.mxu0 %v482
    %646 = vmatpush1.msra.mxu0 %v479
    %647 = vmatprep.subr.mxu0 0.0
    %648 = vmatpush1.msra.mxu0 0.0
    %649 = vmatprep.subr.mxu0 0.0
    %650 = vmatpush1.msra.mxu0 0.0
    %651 = vmatprep.subr.mxu0 0.0
    %652 = vmatpush1.msra.mxu0 0.0
    %653 = vmatprep.subr.mxu0 0.0
    %654 = vmatpush1.msra.mxu0 0.0
    %655 = vmatprep.subr.mxu0 0.0
    %656 = vmatpush1.msra.mxu0 0.0
    %657 = vmatprep.subr.mxu0 0.0
    %658 = vmatpush1.msra.mxu0 0.0
    %659 = vmatprep.subr.mxu0 0.0
    %660 = vmatpush1.msra.mxu0 0.0
    %661 = vmatprep.subr.mxu0 0.0
    %662 = vmatpush1.msra.mxu0 0.0
    %663 = vmatprep.subr.mxu0 0.0
    %664 = vmatpush1.msra.mxu0 0.0
    %665 = vmatprep.subr.mxu0 0.0
    %666 = vmatpush1.msra.mxu0 0.0
    %667 = vmatprep.subr.mxu0 0.0
    %668 = vmatpush1.msra.mxu0 0.0
    %669 = vmatprep.subr.mxu0 0.0
    %670 = vmatpush1.msra.mxu0 0.0
    %671 = vmatprep.subr.mxu0 0.0
    %672 = vmatpush1.msra.mxu0 0.0
    %673 = vmatprep.subr.mxu0 0.0
    %674 = vmatpush1.msra.mxu0 0.0
    %675 = vmatprep.subr.mxu0 0.0
    %676 = vmatpush1.msra.mxu0 0.0
    %677 = vmatprep.subr.mxu0 0.0
    %678 = vmatpush1.msra.mxu0 0.0
    %679 = vmatprep.subr.mxu0 0.0
    %680 = vmatpush1.msra.mxu0 0.0
    %681 = vmatprep.subr.mxu0 0.0
    %682 = vmatpush1.msra.mxu0 0.0
    %683 = vmatprep.subr.mxu0 0.0
    %684 = vmatpush1.msra.mxu0 0.0
    %685 = vmatprep.subr.mxu0 0.0
    %686 = vmatpush1.msra.mxu0 0.0
    %687 = vmatprep.subr.mxu0 0.0
    %688 = vmatpush1.msra.mxu0 0.0
    %689 = vmatprep.subr.mxu0 0.0
    %690 = vmatpush1.msra.mxu0 0.0
    %691 = vmatprep.subr.mxu0 0.0
    %692 = vmatpush1.msra.mxu0 0.0
    %693 = vmatprep.mubr.f32.mxu0 0.0
    %694 = vmatmul.mubr.f32.gmra.mrb[0].mxu0 %v463
    %v695 = vpop.f32.mrb[0].mxu0
    %v696 = vadd.f32 0.0, %v695
    %v697 = vpop.f32.mrb[0].mxu0
    %v698 = vadd.f32 0.0, %v697
    %699 = vdwg.mxu0
    %700 = vmatprep.subr.mxu0 0.0
    %701 = vmatpush1.msra.mxu0 %v404
    %702 = vmatprep.subr.mxu0 0.0
    %703 = vmatpush1.msra.mxu0 %v411
    %704 = vmatprep.subr.mxu0 0.0
    %705 = vmatpush1.msra.mxu0 %v418
    %706 = vmatprep.subr.mxu0 0.0
    %707 = vmatpush1.msra.mxu0 %v425
    %708 = vmatprep.subr.mxu0 0.0
    %709 = vmatpush1.msra.mxu0 %v432
    %710 = vmatprep.subr.mxu0 0.0
    %711 = vmatpush1.msra.mxu0 %v439
    %712 = vmatprep.subr.mxu0 0.0
    %713 = vmatpush1.msra.mxu0 %v446
    %714 = vmatprep.subr.mxu0 0.0
    %715 = vmatpush1.msra.mxu0 %v453
    %716 = vmatprep.subr.mxu0 0.0
    %717 = vmatpush1.msra.mxu0 %v485
    %718 = vmatprep.subr.mxu0 0.0
    %719 = vmatpush1.msra.mxu0 0.0
    %720 = vmatprep.subr.mxu0 0.0
    %721 = vmatpush1.msra.mxu0 0.0
    %722 = vmatprep.subr.mxu0 0.0
    %723 = vmatpush1.msra.mxu0 0.0
    %724 = vmatprep.subr.mxu0 0.0
    %725 = vmatpush1.msra.mxu0 0.0
    %726 = vmatprep.subr.mxu0 0.0
    %727 = vmatpush1.msra.mxu0 0.0
    %728 = vmatprep.subr.mxu0 0.0
    %729 = vmatpush1.msra.mxu0 0.0
    %730 = vmatprep.subr.mxu0 0.0
    %731 = vmatpush1.msra.mxu0 0.0
    %732 = vmatprep.subr.mxu0 0.0
    %733 = vmatpush1.msra.mxu0 0.0
    %734 = vmatprep.subr.mxu0 0.0
    %735 = vmatpush1.msra.mxu0 0.0
    %736 = vmatprep.subr.mxu0 0.0
    %737 = vmatpush1.msra.mxu0 0.0
    %738 = vmatprep.subr.mxu0 0.0
    %739 = vmatpush1.msra.mxu0 0.0
    %740 = vmatprep.subr.mxu0 0.0
    %741 = vmatpush1.msra.mxu0 0.0
    %742 = vmatprep.subr.mxu0 0.0
    %743 = vmatpush1.msra.mxu0 0.0
    %744 = vmatprep.subr.mxu0 0.0
    %745 = vmatpush1.msra.mxu0 0.0
    %746 = vmatprep.subr.mxu0 0.0
    %747 = vmatpush1.msra.mxu0 0.0
    %748 = vmatprep.subr.mxu0 0.0
    %749 = vmatpush1.msra.mxu0 0.0
    %750 = vmatprep.subr.mxu0 0.0
    %751 = vmatpush1.msra.mxu0 0.0
    %752 = vmatprep.subr.mxu0 0.0
    %753 = vmatpush1.msra.mxu0 0.0
    %754 = vmatprep.subr.mxu0 0.0
    %755 = vmatpush1.msra.mxu0 0.0
    %756 = vmatprep.subr.mxu0 0.0
    %757 = vmatpush1.msra.mxu0 0.0
    %758 = vmatprep.subr.mxu0 0.0
    %759 = vmatpush1.msra.mxu0 0.0
    %760 = vmatprep.subr.mxu0 0.0
    %761 = vmatpush1.msra.mxu0 0.0
    %762 = vmatprep.subr.mxu0 0.0
    %763 = vmatpush1.msra.mxu0 0.0
    %764 = vmatprep.mubr.f32.mxu0 0.0
    %765 = vmatmul.mubr.f32.gmra.mrb[0].mxu0 %v463
    %v766 = vpop.f32.mrb[0].mxu0
    %v767 = vadd.f32 0.0, %v766
    %v768 = vpop.f32.mrb[0].mxu0
    %769 = vdwg.mxu0
    %s770 = scalar_lea.vmem %s2, 504
    %v771 = vld [vmem:[%s770] sm:$0xff]
    %v772 = vld [vmem:[%s770 + $0x8] sm:$0xff]
    %v773 = vld [vmem:[%s770 + $0x10] sm:$0xff]
    %v774 = vld [vmem:[%s770 + $0x18] sm:$0xff]
    %v775 = vld [vmem:[%s770 + $0x20] sm:$0xff]
    %v776 = vld [vmem:[%s770 + $0x28] sm:$0xff]
    %v777 = vld [vmem:[%s770 + $0x30] sm:$0xff]
    %v778 = vld [vmem:[%s770 + $0x38] sm:$0xff]
    %v779 = vld [vmem:[%s770 + $0x40] sm:$0xff]
    %v780 = vld [vmem:[%s770 + $0x48] sm:$0xff]
    %v781 = vld [vmem:[%s770 + $0x50] sm:$0xff]
    %v782 = vld [vmem:[%s770 + $0x58] sm:$0xff]
    %v783 = vld [vmem:[%s770 + $0x60] sm:$0xff]
    %v784 = vld [vmem:[%s770 + $0x68] sm:$0xff]
    %v785 = vld [vmem:[%s770 + $0x70] sm:$0xff]
    %v786 = vld [vmem:[%s770 + $0x78] sm:$0xff]
    %v787 = vld [vmem:[%s770 + $0x80] sm:$0xff]
    %v788 = vld [vmem:[%s770 + $0x88] sm:$0xff]
    %v789 = vld [vmem:[%s770 + $0x90] sm:$0xff]
    %v790 = vld [vmem:[%s770 + $0x98] sm:$0xff]
    %v791 = vld [vmem:[%s770 + $0xa0] sm:$0xff]
    %v792 = vld [vmem:[%s770 + $0xa8] sm:$0xff]
    %v793 = vld [vmem:[%s770 + $0xb0] sm:$0xff]
    %v794 = vld [vmem:[%s770 + $0xb8] sm:$0xff]
    %v795 = vld [vmem:[%s770 + $0xc0] sm:$0xff]
    %v796 = vld [vmem:[%s770 + $0xc8] sm:$0xff]
    %v797 = vld [vmem:[%s770 + $0xd0] sm:$0xff]
    %v798 = vld [vmem:[%s770 + $0xd8] sm:$0xff]
    %v799 = vld [vmem:[%s770 + $0xe0] sm:$0xff]
    %v800 = vld [vmem:[%s770 + $0xe8] sm:$0xff]
    %v801 = vld [vmem:[%s770 + $0xf0] sm:$0xff]
    %v802 = vld [vmem:[%s770 + $0xf8] sm:$0xff]
    %v803 = vld [vmem:[%s770 + $0x100] sm:$0xff]
    %v804 = vld [vmem:[%s770 + $0x108] sm:$0xff]
    %v805 = vld [vmem:[%s770 + $0x110] sm:$0xff]
    %v806 = vld [vmem:[%s770 + $0x118] sm:$0xff]
    %v807 = vld [vmem:[%s770 + $0x120] sm:$0xff]
    %v808 = vld [vmem:[%s770 + $0x128] sm:$0xff]
    %v809 = vld [vmem:[%s770 + $0x130] sm:$0xff]
    %v810 = vld [vmem:[%s770 + $0x138] sm:$0xff]
    %v811 = vld [vmem:[%s770 + $0x140] sm:$0xff]
    %v812 = vld [vmem:[%s770 + $0x148] sm:$0xff]
    %v813 = vld [vmem:[%s770 + $0x150] sm:$0xff]
    %v814 = vld [vmem:[%s770 + $0x158] sm:$0xff]
    %v815 = vld [vmem:[%s770 + $0x160] sm:$0xff]
    %v816 = vld [vmem:[%s770 + $0x168] sm:$0xff]
    %v817 = vld [vmem:[%s770 + $0x170] sm:$0xff]
    %v818 = vld [vmem:[%s770 + $0x178] sm:$0xff]
    %v819 = vld [vmem:[%s770 + $0x180] sm:$0xff]
    %v820 = vld [vmem:[%s770 + $0x188] sm:$0xff]
    %v821 = vld [vmem:[%s770 + $0x190] sm:$0xff]
    %v822 = vld [vmem:[%s770 + $0x198] sm:$0xff]
    %v823 = vld [vmem:[%s770 + $0x1a0] sm:$0xff]
    %v824 = vld [vmem:[%s770 + $0x1a8] sm:$0xff]
    %v825 = vld [vmem:[%s770 + $0x1b0] sm:$0xff]
    %v826 = vld [vmem:[%s770 + $0x1b8] sm:$0xff]
    %v827 = vld [vmem:[%s770 + $0x1c0] sm:$0x1]
    %v828 = vld [vmem:[%s770 + $0x1c8] sm:$0x1]
    %v829 = vld [vmem:[%s770 + $0x1d0] sm:$0x1]
    %v830 = vld [vmem:[%s770 + $0x1d8] sm:$0x1]
    %v831 = vld [vmem:[%s770 + $0x1e0] sm:$0x1]
    %v832 = vld [vmem:[%s770 + $0x1e8] sm:$0x1]
    %v833 = vld [vmem:[%s770 + $0x1f0] sm:$0x1]
    %v835 = vsel %vm465, %v827, 0
    %v838 = vsel %vm465, %v828, 0
    %v841 = vsel %vm465, %v829, 0
    %v844 = vsel %vm465, %v830, 0
    %v847 = vsel %vm465, %v831, 0
    %v850 = vsel %vm465, %v832, 0
    %v853 = vsel %vm465, %v833, 0
    %855 = vmatprep.subr.mxu0 %v772
    %856 = vmatpush1.msra.mxu0 %v771
    %857 = vmatprep.subr.mxu0 %v779
    %858 = vmatpush1.msra.mxu0 %v778
    %859 = vmatprep.subr.mxu0 %v786
    %860 = vmatpush1.msra.mxu0 %v785
    %861 = vmatprep.subr.mxu0 %v793
    %862 = vmatpush1.msra.mxu0 %v792
    %863 = vmatprep.subr.mxu0 %v800
    %864 = vmatpush1.msra.mxu0 %v799
    %865 = vmatprep.subr.mxu0 %v807
    %866 = vmatpush1.msra.mxu0 %v806
    %867 = vmatprep.subr.mxu0 %v814
    %868 = vmatpush1.msra.mxu0 %v813
    %869 = vmatprep.subr.mxu0 %v821
    %870 = vmatpush1.msra.mxu0 %v820
    %871 = vmatprep.subr.mxu0 %v838
    %872 = vmatpush1.msra.mxu0 %v835
    %873 = vmatprep.subr.mxu0 0.0
    %874 = vmatpush1.msra.mxu0 0.0
    %875 = vmatprep.subr.mxu0 0.0
    %876 = vmatpush1.msra.mxu0 0.0
    %877 = vmatprep.subr.mxu0 0.0
    %878 = vmatpush1.msra.mxu0 0.0
    %879 = vmatprep.subr.mxu0 0.0
    %880 = vmatpush1.msra.mxu0 0.0
    %881 = vmatprep.subr.mxu0 0.0
    %882 = vmatpush1.msra.mxu0 0.0
    %883 = vmatprep.subr.mxu0 0.0
    %884 = vmatpush1.msra.mxu0 0.0
    %885 = vmatprep.subr.mxu0 0.0
    %886 = vmatpush1.msra.mxu0 0.0
    %887 = vmatprep.subr.mxu0 0.0
    %888 = vmatpush1.msra.mxu0 0.0
    %889 = vmatprep.subr.mxu0 0.0
    %890 = vmatpush1.msra.mxu0 0.0
    %891 = vmatprep.subr.mxu0 0.0
    %892 = vmatpush1.msra.mxu0 0.0
    %893 = vmatprep.subr.mxu0 0.0
    %894 = vmatpush1.msra.mxu0 0.0
    %895 = vmatprep.subr.mxu0 0.0
    %896 = vmatpush1.msra.mxu0 0.0
    %897 = vmatprep.subr.mxu0 0.0
    %898 = vmatpush1.msra.mxu0 0.0
    %899 = vmatprep.subr.mxu0 0.0
    %900 = vmatpush1.msra.mxu0 0.0
    %901 = vmatprep.subr.mxu0 0.0
    %902 = vmatpush1.msra.mxu0 0.0
    %903 = vmatprep.subr.mxu0 0.0
    %904 = vmatpush1.msra.mxu0 0.0
    %905 = vmatprep.subr.mxu0 0.0
    %906 = vmatpush1.msra.mxu0 0.0
    %907 = vmatprep.subr.mxu0 0.0
    %908 = vmatpush1.msra.mxu0 0.0
    %909 = vmatprep.subr.mxu0 0.0
    %910 = vmatpush1.msra.mxu0 0.0
    %911 = vmatprep.subr.mxu0 0.0
    %912 = vmatpush1.msra.mxu0 0.0
    %913 = vmatprep.subr.mxu0 0.0
    %914 = vmatpush1.msra.mxu0 0.0
    %915 = vmatprep.subr.mxu0 0.0
    %916 = vmatpush1.msra.mxu0 0.0
    %917 = vmatprep.subr.mxu0 0.0
    %918 = vmatpush1.msra.mxu0 0.0
    %919 = vmatprep.mubr.f32.mxu0 0.0
    %920 = vmatmul.mubr.f32.gmra.mrb[0].mxu0 %v463
    %v921 = vpop.f32.mrb[0].mxu0
    %v922 = vadd.f32 0.0, %v921
    %v923 = vpop.f32.mrb[0].mxu0
    %v924 = vadd.f32 0.0, %v923
    %925 = vdwg.mxu0
    %926 = vmatprep.subr.mxu0 %v774
    %927 = vmatpush1.msra.mxu0 %v773
    %928 = vmatprep.subr.mxu0 %v781
    %929 = vmatpush1.msra.mxu0 %v780
    %930 = vmatprep.subr.mxu0 %v788
    %931 = vmatpush1.msra.mxu0 %v787
    %932 = vmatprep.subr.mxu0 %v795
    %933 = vmatpush1.msra.mxu0 %v794
    %934 = vmatprep.subr.mxu0 %v802
    %935 = vmatpush1.msra.mxu0 %v801
    %936 = vmatprep.subr.mxu0 %v809
    %937 = vmatpush1.msra.mxu0 %v808
    %938 = vmatprep.subr.mxu0 %v816
    %939 = vmatpush1.msra.mxu0 %v815
    %940 = vmatprep.subr.mxu0 %v823
    %941 = vmatpush1.msra.mxu0 %v822
    %942 = vmatprep.subr.mxu0 %v844
    %943 = vmatpush1.msra.mxu0 %v841
    %944 = vmatprep.subr.mxu0 0.0
    %945 = vmatpush1.msra.mxu0 0.0
    %946 = vmatprep.subr.mxu0 0.0
    %947 = vmatpush1.msra.mxu0 0.0
    %948 = vmatprep.subr.mxu0 0.0
    %949 = vmatpush1.msra.mxu0 0.0
    %950 = vmatprep.subr.mxu0 0.0
    %951 = vmatpush1.msra.mxu0 0.0
    %952 = vmatprep.subr.mxu0 0.0
    %953 = vmatpush1.msra.mxu0 0.0
    %954 = vmatprep.subr.mxu0 0.0
    %955 = vmatpush1.msra.mxu0 0.0
    %956 = vmatprep.subr.mxu0 0.0
    %957 = vmatpush1.msra.mxu0 0.0
    %958 = vmatprep.subr.mxu0 0.0
    %959 = vmatpush1.msra.mxu0 0.0
    %960 = vmatprep.subr.mxu0 0.0
    %961 = vmatpush1.msra.mxu0 0.0
    %962 = vmatprep.subr.mxu0 0.0
    %963 = vmatpush1.msra.mxu0 0.0
    %964 = vmatprep.subr.mxu0 0.0
    %965 = vmatpush1.msra.mxu0 0.0
    %966 = vmatprep.subr.mxu0 0.0
    %967 = vmatpush1.msra.mxu0 0.0
    %968 = vmatprep.subr.mxu0 0.0
    %969 = vmatpush1.msra.mxu0 0.0
    %970 = vmatprep.subr.mxu0 0.0
    %971 = vmatpush1.msra.mxu0 0.0
    %972 = vmatprep.subr.mxu0 0.0
    %973 = vmatpush1.msra.mxu0 0.0
    %974 = vmatprep.subr.mxu0 0.0
    %975 = vmatpush1.msra.mxu0 0.0
    %976 = vmatprep.subr.mxu0 0.0
    %977 = vmatpush1.msra.mxu0 0.0
    %978 = vmatprep.subr.mxu0 0.0
    %979 = vmatpush1.msra.mxu0 0.0
    %980 = vmatprep.subr.mxu0 0.0
    %981 = vmatpush1.msra.mxu0 0.0
    %982 = vmatprep.subr.mxu0 0.0
    %983 = vmatpush1.msra.mxu0 0.0
    %984 = vmatprep.subr.mxu0 0.0
    %985 = vmatpush1.msra.mxu0 0.0
    %986 = vmatprep.subr.mxu0 0.0
    %987 = vmatpush1.msra.mxu0 0.0
    %988 = vmatprep.subr.mxu0 0.0
    %989 = vmatpush1.msra.mxu0 0.0
    %990 = vmatprep.mubr.f32.mxu0 0.0
    %991 = vmatmul.mubr.f32.gmra.mrb[0].mxu0 %v463
    %v992 = vpop.f32.mrb[0].mxu0
    %v993 = vadd.f32 0.0, %v992
    %v994 = vpop.f32.mrb[0].mxu0
    %v995 = vadd.f32 0.0, %v994
    %996 = vdwg.mxu0
    %997 = vmatprep.subr.mxu0 %v776
    %998 = vmatpush1.msra.mxu0 %v775
    %999 = vmatprep.subr.mxu0 %v783
    %1000 = vmatpush1.msra.mxu0 %v782
    %1001 = vmatprep.subr.mxu0 %v790
    %1002 = vmatpush1.msra.mxu0 %v789
    %1003 = vmatprep.subr.mxu0 %v797
    %1004 = vmatpush1.msra.mxu0 %v796
    %1005 = vmatprep.subr.mxu0 %v804
    %1006 = vmatpush1.msra.mxu0 %v803
    %1007 = vmatprep.subr.mxu0 %v811
    %1008 = vmatpush1.msra.mxu0 %v810
    %1009 = vmatprep.subr.mxu0 %v818
    %1010 = vmatpush1.msra.mxu0 %v817
    %1011 = vmatprep.subr.mxu0 %v825
    %1012 = vmatpush1.msra.mxu0 %v824
    %1013 = vmatprep.subr.mxu0 %v850
    %1014 = vmatpush1.msra.mxu0 %v847
    %1015 = vmatprep.subr.mxu0 0.0
    %1016 = vmatpush1.msra.mxu0 0.0
    %1017 = vmatprep.subr.mxu0 0.0
    %1018 = vmatpush1.msra.mxu0 0.0
    %1019 = vmatprep.subr.mxu0 0.0
    %1020 = vmatpush1.msra.mxu0 0.0
    %1021 = vmatprep.subr.mxu0 0.0
    %1022 = vmatpush1.msra.mxu0 0.0
    %1023 = vmatprep.subr.mxu0 0.0
    %1024 = vmatpush1.msra.mxu0 0.0
    %1025 = vmatprep.subr.mxu0 0.0
    %1026 = vmatpush1.msra.mxu0 0.0
    %1027 = vmatprep.subr.mxu0 0.0
    %1028 = vmatpush1.msra.mxu0 0.0
    %1029 = vmatprep.subr.mxu0 0.0
    %1030 = vmatpush1.msra.mxu0 0.0
    %1031 = vmatprep.subr.mxu0 0.0
    %1032 = vmatpush1.msra.mxu0 0.0
    %1033 = vmatprep.subr.mxu0 0.0
    %1034 = vmatpush1.msra.mxu0 0.0
    %1035 = vmatprep.subr.mxu0 0.0
    %1036 = vmatpush1.msra.mxu0 0.0
    %1037 = vmatprep.subr.mxu0 0.0
    %1038 = vmatpush1.msra.mxu0 0.0
    %1039 = vmatprep.subr.mxu0 0.0
    %1040 = vmatpush1.msra.mxu0 0.0
    %1041 = vmatprep.subr.mxu0 0.0
    %1042 = vmatpush1.msra.mxu0 0.0
    %1043 = vmatprep.subr.mxu0 0.0
    %1044 = vmatpush1.msra.mxu0 0.0
    %1045 = vmatprep.subr.mxu0 0.0
    %1046 = vmatpush1.msra.mxu0 0.0
    %1047 = vmatprep.subr.mxu0 0.0
    %1048 = vmatpush1.msra.mxu0 0.0
    %1049 = vmatprep.subr.mxu0 0.0
    %1050 = vmatpush1.msra.mxu0 0.0
    %1051 = vmatprep.subr.mxu0 0.0
    %1052 = vmatpush1.msra.mxu0 0.0
    %1053 = vmatprep.subr.mxu0 0.0
    %1054 = vmatpush1.msra.mxu0 0.0
    %1055 = vmatprep.subr.mxu0 0.0
    %1056 = vmatpush1.msra.mxu0 0.0
    %1057 = vmatprep.subr.mxu0 0.0
    %1058 = vmatpush1.msra.mxu0 0.0
    %1059 = vmatprep.subr.mxu0 0.0
    %1060 = vmatpush1.msra.mxu0 0.0
    %1061 = vmatprep.mubr.f32.mxu0 0.0
    %1062 = vmatmul.mubr.f32.gmra.mrb[0].mxu0 %v463
    %v1063 = vpop.f32.mrb[0].mxu0
    %v1064 = vadd.f32 0.0, %v1063
    %v1065 = vpop.f32.mrb[0].mxu0
    %v1066 = vadd.f32 0.0, %v1065
    %1067 = vdwg.mxu0
    %1068 = vmatprep.subr.mxu0 0.0
    %1069 = vmatpush1.msra.mxu0 %v777
    %1070 = vmatprep.subr.mxu0 0.0
    %1071 = vmatpush1.msra.mxu0 %v784
    %1072 = vmatprep.subr.mxu0 0.0
    %1073 = vmatpush1.msra.mxu0 %v791
    %1074 = vmatprep.subr.mxu0 0.0
    %1075 = vmatpush1.msra.mxu0 %v798
    %1076 = vmatprep.subr.mxu0 0.0
    %1077 = vmatpush1.msra.mxu0 %v805
    %1078 = vmatprep.subr.mxu0 0.0
    %1079 = vmatpush1.msra.mxu0 %v812
    %1080 = vmatprep.subr.mxu0 0.0
    %1081 = vmatpush1.msra.mxu0 %v819
    %1082 = vmatprep.subr.mxu0 0.0
    %1083 = vmatpush1.msra.mxu0 %v826
    %1084 = vmatprep.subr.mxu0 0.0
    %1085 = vmatpush1.msra.mxu0 %v853
    %1086 = vmatprep.subr.mxu0 0.0
    %1087 = vmatpush1.msra.mxu0 0.0
    %1088 = vmatprep.subr.mxu0 0.0
    %1089 = vmatpush1.msra.mxu0 0.0
    %1090 = vmatprep.subr.mxu0 0.0
    %1091 = vmatpush1.msra.mxu0 0.0
    %1092 = vmatprep.subr.mxu0 0.0
    %1093 = vmatpush1.msra.mxu0 0.0
    %1094 = vmatprep.subr.mxu0 0.0
    %1095 = vmatpush1.msra.mxu0 0.0
    %1096 = vmatprep.subr.mxu0 0.0
    %1097 = vmatpush1.msra.mxu0 0.0
    %1098 = vmatprep.subr.mxu0 0.0
    %1099 = vmatpush1.msra.mxu0 0.0
    %1100 = vmatprep.subr.mxu0 0.0
    %1101 = vmatpush1.msra.mxu0 0.0
    %1102 = vmatprep.subr.mxu0 0.0
    %1103 = vmatpush1.msra.mxu0 0.0
    %1104 = vmatprep.subr.mxu0 0.0
    %1105 = vmatpush1.msra.mxu0 0.0
    %1106 = vmatprep.subr.mxu0 0.0
    %1107 = vmatpush1.msra.mxu0 0.0
    %1108 = vmatprep.subr.mxu0 0.0
    %1109 = vmatpush1.msra.mxu0 0.0
    %1110 = vmatprep.subr.mxu0 0.0
    %1111 = vmatpush1.msra.mxu0 0.0
    %1112 = vmatprep.subr.mxu0 0.0
    %1113 = vmatpush1.msra.mxu0 0.0
    %1114 = vmatprep.subr.mxu0 0.0
    %1115 = vmatpush1.msra.mxu0 0.0
    %1116 = vmatprep.subr.mxu0 0.0
    %1117 = vmatpush1.msra.mxu0 0.0
    %1118 = vmatprep.subr.mxu0 0.0
    %1119 = vmatpush1.msra.mxu0 0.0
    %1120 = vmatprep.subr.mxu0 0.0
    %1121 = vmatpush1.msra.mxu0 0.0
    %1122 = vmatprep.subr.mxu0 0.0
    %1123 = vmatpush1.msra.mxu0 0.0
    %1124 = vmatprep.subr.mxu0 0.0
    %1125 = vmatpush1.msra.mxu0 0.0
    %1126 = vmatprep.subr.mxu0 0.0
    %1127 = vmatpush1.msra.mxu0 0.0
    %1128 = vmatprep.subr.mxu0 0.0
    %1129 = vmatpush1.msra.mxu0 0.0
    %1130 = vmatprep.subr.mxu0 0.0
    %1131 = vmatpush1.msra.mxu0 0.0
    %1132 = vmatprep.mubr.f32.mxu0 0.0
    %1133 = vmatmul.mubr.f32.gmra.mrb[0].mxu0 %v463
    %v1134 = vpop.f32.mrb[0].mxu0
    %v1135 = vadd.f32 0.0, %v1134
    %v1136 = vpop.f32.mrb[0].mxu0
    %1137 = vdwg.mxu0
    %s1138 = scalar_lea.vmem %s2, 1008
    %v1139 = vld [vmem:[%s1138] sm:$0xff]
    %v1140 = vld [vmem:[%s1138 + $0x8] sm:$0xff]
    %v1141 = vld [vmem:[%s1138 + $0x10] sm:$0xff]
    %v1142 = vld [vmem:[%s1138 + $0x18] sm:$0xff]
    %v1143 = vld [vmem:[%s1138 + $0x20] sm:$0xff]
    %v1144 = vld [vmem:[%s1138 + $0x28] sm:$0xff]
    %v1145 = vld [vmem:[%s1138 + $0x30] sm:$0xff]
    %v1146 = vld [vmem:[%s1138 + $0x38] sm:$0xff]
    %v1147 = vld [vmem:[%s1138 + $0x40] sm:$0xff]
    %v1148 = vld [vmem:[%s1138 + $0x48] sm:$0xff]
    %v1149 = vld [vmem:[%s1138 + $0x50] sm:$0xff]
    %v1150 = vld [vmem:[%s1138 + $0x58] sm:$0xff]
    %v1151 = vld [vmem:[%s1138 + $0x60] sm:$0xff]
    %v1152 = vld [vmem:[%s1138 + $0x68] sm:$0xff]
    %v1153 = vld [vmem:[%s1138 + $0x70] sm:$0xff]
    %v1154 = vld [vmem:[%s1138 + $0x78] sm:$0xff]
    %v1155 = vld [vmem:[%s1138 + $0x80] sm:$0xff]
    %v1156 = vld [vmem:[%s1138 + $0x88] sm:$0xff]
    %v1157 = vld [vmem:[%s1138 + $0x90] sm:$0xff]
    %v1158 = vld [vmem:[%s1138 + $0x98] sm:$0xff]
    %v1159 = vld [vmem:[%s1138 + $0xa0] sm:$0xff]
    %v1160 = vld [vmem:[%s1138 + $0xa8] sm:$0xff]
    %v1161 = vld [vmem:[%s1138 + $0xb0] sm:$0xff]
    %v1162 = vld [vmem:[%s1138 + $0xb8] sm:$0xff]
    %v1163 = vld [vmem:[%s1138 + $0xc0] sm:$0xff]
    %v1164 = vld [vmem:[%s1138 + $0xc8] sm:$0xff]
    %v1165 = vld [vmem:[%s1138 + $0xd0] sm:$0xff]
    %v1166 = vld [vmem:[%s1138 + $0xd8] sm:$0xff]
    %v1167 = vld [vmem:[%s1138 + $0xe0] sm:$0xff]
    %v1168 = vld [vmem:[%s1138 + $0xe8] sm:$0xff]
    %v1169 = vld [vmem:[%s1138 + $0xf0] sm:$0xff]
    %v1170 = vld [vmem:[%s1138 + $0xf8] sm:$0xff]
    %v1171 = vld [vmem:[%s1138 + $0x100] sm:$0xff]
    %v1172 = vld [vmem:[%s1138 + $0x108] sm:$0xff]
    %v1173 = vld [vmem:[%s1138 + $0x110] sm:$0xff]
    %v1174 = vld [vmem:[%s1138 + $0x118] sm:$0xff]
    %v1175 = vld [vmem:[%s1138 + $0x120] sm:$0xff]
    %v1176 = vld [vmem:[%s1138 + $0x128] sm:$0xff]
    %v1177 = vld [vmem:[%s1138 + $0x130] sm:$0xff]
    %v1178 = vld [vmem:[%s1138 + $0x138] sm:$0xff]
    %v1179 = vld [vmem:[%s1138 + $0x140] sm:$0xff]
    %v1180 = vld [vmem:[%s1138 + $0x148] sm:$0xff]
    %v1181 = vld [vmem:[%s1138 + $0x150] sm:$0xff]
    %v1182 = vld [vmem:[%s1138 + $0x158] sm:$0xff]
    %v1183 = vld [vmem:[%s1138 + $0x160] sm:$0xff]
    %v1184 = vld [vmem:[%s1138 + $0x168] sm:$0xff]
    %v1185 = vld [vmem:[%s1138 + $0x170] sm:$0xff]
    %v1186 = vld [vmem:[%s1138 + $0x178] sm:$0xff]
    %v1187 = vld [vmem:[%s1138 + $0x180] sm:$0xff]
    %v1188 = vld [vmem:[%s1138 + $0x188] sm:$0xff]
    %v1189 = vld [vmem:[%s1138 + $0x190] sm:$0xff]
    %v1190 = vld [vmem:[%s1138 + $0x198] sm:$0xff]
    %v1191 = vld [vmem:[%s1138 + $0x1a0] sm:$0xff]
    %v1192 = vld [vmem:[%s1138 + $0x1a8] sm:$0xff]
    %v1193 = vld [vmem:[%s1138 + $0x1b0] sm:$0xff]
    %v1194 = vld [vmem:[%s1138 + $0x1b8] sm:$0xff]
    %v1195 = vld [vmem:[%s1138 + $0x1c0] sm:$0x1]
    %v1196 = vld [vmem:[%s1138 + $0x1c8] sm:$0x1]
    %v1197 = vld [vmem:[%s1138 + $0x1d0] sm:$0x1]
    %v1198 = vld [vmem:[%s1138 + $0x1d8] sm:$0x1]
    %v1199 = vld [vmem:[%s1138 + $0x1e0] sm:$0x1]
    %v1200 = vld [vmem:[%s1138 + $0x1e8] sm:$0x1]
    %v1201 = vld [vmem:[%s1138 + $0x1f0] sm:$0x1]
    %v1203 = vsel %vm465, %v1195, 0
    %v1206 = vsel %vm465, %v1196, 0
    %v1209 = vsel %vm465, %v1197, 0
    %v1212 = vsel %vm465, %v1198, 0
    %v1215 = vsel %vm465, %v1199, 0
    %v1218 = vsel %vm465, %v1200, 0
    %v1221 = vsel %vm465, %v1201, 0
    %1223 = vmatprep.subr.mxu0 %v1140
    %1224 = vmatpush1.msra.mxu0 %v1139
    %1225 = vmatprep.subr.mxu0 %v1147
    %1226 = vmatpush1.msra.mxu0 %v1146
    %1227 = vmatprep.subr.mxu0 %v1154
    %1228 = vmatpush1.msra.mxu0 %v1153
    %1229 = vmatprep.subr.mxu0 %v1161
    %1230 = vmatpush1.msra.mxu0 %v1160
    %1231 = vmatprep.subr.mxu0 %v1168
    %1232 = vmatpush1.msra.mxu0 %v1167
    %1233 = vmatprep.subr.mxu0 %v1175
    %1234 = vmatpush1.msra.mxu0 %v1174
    %1235 = vmatprep.subr.mxu0 %v1182
    %1236 = vmatpush1.msra.mxu0 %v1181
    %1237 = vmatprep.subr.mxu0 %v1189
    %1238 = vmatpush1.msra.mxu0 %v1188
    %1239 = vmatprep.subr.mxu0 %v1206
    %1240 = vmatpush1.msra.mxu0 %v1203
    %1241 = vmatprep.subr.mxu0 0.0
    %1242 = vmatpush1.msra.mxu0 0.0
    %1243 = vmatprep.subr.mxu0 0.0
    %1244 = vmatpush1.msra.mxu0 0.0
    %1245 = vmatprep.subr.mxu0 0.0
    %1246 = vmatpush1.msra.mxu0 0.0
    %1247 = vmatprep.subr.mxu0 0.0
    %1248 = vmatpush1.msra.mxu0 0.0
    %1249 = vmatprep.subr.mxu0 0.0
    %1250 = vmatpush1.msra.mxu0 0.0
    %1251 = vmatprep.subr.mxu0 0.0
    %1252 = vmatpush1.msra.mxu0 0.0
    %1253 = vmatprep.subr.mxu0 0.0
    %1254 = vmatpush1.msra.mxu0 0.0
    %1255 = vmatprep.subr.mxu0 0.0
    %1256 = vmatpush1.msra.mxu0 0.0
    %1257 = vmatprep.subr.mxu0 0.0
    %1258 = vmatpush1.msra.mxu0 0.0
    %1259 = vmatprep.subr.mxu0 0.0
    %1260 = vmatpush1.msra.mxu0 0.0
    %1261 = vmatprep.subr.mxu0 0.0
    %1262 = vmatpush1.msra.mxu0 0.0
    %1263 = vmatprep.subr.mxu0 0.0
    %1264 = vmatpush1.msra.mxu0 0.0
    %1265 = vmatprep.subr.mxu0 0.0
    %1266 = vmatpush1.msra.mxu0 0.0
    %1267 = vmatprep.subr.mxu0 0.0
    %1268 = vmatpush1.msra.mxu0 0.0
    %1269 = vmatprep.subr.mxu0 0.0
    %1270 = vmatpush1.msra.mxu0 0.0
    %1271 = vmatprep.subr.mxu0 0.0
    %1272 = vmatpush1.msra.mxu0 0.0
    %1273 = vmatprep.subr.mxu0 0.0
    %1274 = vmatpush1.msra.mxu0 0.0
    %1275 = vmatprep.subr.mxu0 0.0
    %1276 = vmatpush1.msra.mxu0 0.0
    %1277 = vmatprep.subr.mxu0 0.0
    %1278 = vmatpush1.msra.mxu0 0.0
    %1279 = vmatprep.subr.mxu0 0.0
    %1280 = vmatpush1.msra.mxu0 0.0
    %1281 = vmatprep.subr.mxu0 0.0
    %1282 = vmatpush1.msra.mxu0 0.0
    %1283 = vmatprep.subr.mxu0 0.0
    %1284 = vmatpush1.msra.mxu0 0.0
    %1285 = vmatprep.subr.mxu0 0.0
    %1286 = vmatpush1.msra.mxu0 0.0
    %1287 = vmatprep.mubr.f32.mxu0 0.0
    %1288 = vmatmul.mubr.f32.gmra.mrb[0].mxu0 %v463
    %v1289 = vpop.f32.mrb[0].mxu0
    %v1290 = vadd.f32 0.0, %v1289
    %v1291 = vpop.f32.mrb[0].mxu0
    %v1292 = vadd.f32 0.0, %v1291
    %1293 = vdwg.mxu0
    %1294 = vmatprep.subr.mxu0 %v1142
    %1295 = vmatpush1.msra.mxu0 %v1141
    %1296 = vmatprep.subr.mxu0 %v1149
    %1297 = vmatpush1.msra.mxu0 %v1148
    %1298 = vmatprep.subr.mxu0 %v1156
    %1299 = vmatpush1.msra.mxu0 %v1155
    %1300 = vmatprep.subr.mxu0 %v1163
    %1301 = vmatpush1.msra.mxu0 %v1162
    %1302 = vmatprep.subr.mxu0 %v1170
    %1303 = vmatpush1.msra.mxu0 %v1169
    %1304 = vmatprep.subr.mxu0 %v1177
    %1305 = vmatpush1.msra.mxu0 %v1176
    %1306 = vmatprep.subr.mxu0 %v1184
    %1307 = vmatpush1.msra.mxu0 %v1183
    %1308 = vmatprep.subr.mxu0 %v1191
    %1309 = vmatpush1.msra.mxu0 %v1190
    %1310 = vmatprep.subr.mxu0 %v1212
    %1311 = vmatpush1.msra.mxu0 %v1209
    %1312 = vmatprep.subr.mxu0 0.0
    %1313 = vmatpush1.msra.mxu0 0.0
    %1314 = vmatprep.subr.mxu0 0.0
    %1315 = vmatpush1.msra.mxu0 0.0
    %1316 = vmatprep.subr.mxu0 0.0
    %1317 = vmatpush1.msra.mxu0 0.0
    %1318 = vmatprep.subr.mxu0 0.0
    %1319 = vmatpush1.msra.mxu0 0.0
    %1320 = vmatprep.subr.mxu0 0.0
    %1321 = vmatpush1.msra.mxu0 0.0
    %1322 = vmatprep.subr.mxu0 0.0
    %1323 = vmatpush1.msra.mxu0 0.0
    %1324 = vmatprep.subr.mxu0 0.0
    %1325 = vmatpush1.msra.mxu0 0.0
    %1326 = vmatprep.subr.mxu0 0.0
    %1327 = vmatpush1.msra.mxu0 0.0
    %1328 = vmatprep.subr.mxu0 0.0
    %1329 = vmatpush1.msra.mxu0 0.0
    %1330 = vmatprep.subr.mxu0 0.0
    %1331 = vmatpush1.msra.mxu0 0.0
    %1332 = vmatprep.subr.mxu0 0.0
    %1333 = vmatpush1.msra.mxu0 0.0
    %1334 = vmatprep.subr.mxu0 0.0
    %1335 = vmatpush1.msra.mxu0 0.0
    %1336 = vmatprep.subr.mxu0 0.0
    %1337 = vmatpush1.msra.mxu0 0.0
    %1338 = vmatprep.subr.mxu0 0.0
    %1339 = vmatpush1.msra.mxu0 0.0
    %1340 = vmatprep.subr.mxu0 0.0
    %1341 = vmatpush1.msra.mxu0 0.0
    %1342 = vmatprep.subr.mxu0 0.0
    %1343 = vmatpush1.msra.mxu0 0.0
    %1344 = vmatprep.subr.mxu0 0.0
    %1345 = vmatpush1.msra.mxu0 0.0
    %1346 = vmatprep.subr.mxu0 0.0
    %1347 = vmatpush1.msra.mxu0 0.0
    %1348 = vmatprep.subr.mxu0 0.0
    %1349 = vmatpush1.msra.mxu0 0.0
    %1350 = vmatprep.subr.mxu0 0.0
    %1351 = vmatpush1.msra.mxu0 0.0
    %1352 = vmatprep.subr.mxu0 0.0
    %1353 = vmatpush1.msra.mxu0 0.0
    %1354 = vmatprep.subr.mxu0 0.0
    %1355 = vmatpush1.msra.mxu0 0.0
    %1356 = vmatprep.subr.mxu0 0.0
    %1357 = vmatpush1.msra.mxu0 0.0
    %1358 = vmatprep.mubr.f32.mxu0 0.0
    %1359 = vmatmul.mubr.f32.gmra.mrb[0].mxu0 %v463
    %v1360 = vpop.f32.mrb[0].mxu0
    %v1361 = vadd.f32 0.0, %v1360
    %v1362 = vpop.f32.mrb[0].mxu0
    %v1363 = vadd.f32 0.0, %v1362
    %1364 = vdwg.mxu0
    %1365 = vmatprep.subr.mxu0 %v1144
    %1366 = vmatpush1.msra.mxu0 %v1143
    %1367 = vmatprep.subr.mxu0 %v1151
    %1368 = vmatpush1.msra.mxu0 %v1150
    %1369 = vmatprep.subr.mxu0 %v1158
    %1370 = vmatpush1.msra.mxu0 %v1157
    %1371 = vmatprep.subr.mxu0 %v1165
    %1372 = vmatpush1.msra.mxu0 %v1164
    %1373 = vmatprep.subr.mxu0 %v1172
    %1374 = vmatpush1.msra.mxu0 %v1171
    %1375 = vmatprep.subr.mxu0 %v1179
    %1376 = vmatpush1.msra.mxu0 %v1178
    %1377 = vmatprep.subr.mxu0 %v1186
    %1378 = vmatpush1.msra.mxu0 %v1185
    %1379 = vmatprep.subr.mxu0 %v1193
    %1380 = vmatpush1.msra.mxu0 %v1192
    %1381 = vmatprep.subr.mxu0 %v1218
    %1382 = vmatpush1.msra.mxu0 %v1215
    %1383 = vmatprep.subr.mxu0 0.0
    %1384 = vmatpush1.msra.mxu0 0.0
    %1385 = vmatprep.subr.mxu0 0.0
    %1386 = vmatpush1.msra.mxu0 0.0
    %1387 = vmatprep.subr.mxu0 0.0
    %1388 = vmatpush1.msra.mxu0 0.0
    %1389 = vmatprep.subr.mxu0 0.0
    %1390 = vmatpush1.msra.mxu0 0.0
    %1391 = vmatprep.subr.mxu0 0.0
    %1392 = vmatpush1.msra.mxu0 0.0
    %1393 = vmatprep.subr.mxu0 0.0
    %1394 = vmatpush1.msra.mxu0 0.0
    %1395 = vmatprep.subr.mxu0 0.0
    %1396 = vmatpush1.msra.mxu0 0.0
    %1397 = vmatprep.subr.mxu0 0.0
    %1398 = vmatpush1.msra.mxu0 0.0
    %1399 = vmatprep.subr.mxu0 0.0
    %1400 = vmatpush1.msra.mxu0 0.0
    %1401 = vmatprep.subr.mxu0 0.0
    %1402 = vmatpush1.msra.mxu0 0.0
    %1403 = vmatprep.subr.mxu0 0.0
    %1404 = vmatpush1.msra.mxu0 0.0
    %1405 = vmatprep.subr.mxu0 0.0
    %1406 = vmatpush1.msra.mxu0 0.0
    %1407 = vmatprep.subr.mxu0 0.0
    %1408 = vmatpush1.msra.mxu0 0.0
    %1409 = vmatprep.subr.mxu0 0.0
    %1410 = vmatpush1.msra.mxu0 0.0
    %1411 = vmatprep.subr.mxu0 0.0
    %1412 = vmatpush1.msra.mxu0 0.0
    %1413 = vmatprep.subr.mxu0 0.0
    %1414 = vmatpush1.msra.mxu0 0.0
    %1415 = vmatprep.subr.mxu0 0.0
    %1416 = vmatpush1.msra.mxu0 0.0
    %1417 = vmatprep.subr.mxu0 0.0
    %1418 = vmatpush1.msra.mxu0 0.0
    %1419 = vmatprep.subr.mxu0 0.0
    %1420 = vmatpush1.msra.mxu0 0.0
    %1421 = vmatprep.subr.mxu0 0.0
    %1422 = vmatpush1.msra.mxu0 0.0
    %1423 = vmatprep.subr.mxu0 0.0
    %1424 = vmatpush1.msra.mxu0 0.0
    %1425 = vmatprep.subr.mxu0 0.0
    %1426 = vmatpush1.msra.mxu0 0.0
    %1427 = vmatprep.subr.mxu0 0.0
    %1428 = vmatpush1.msra.mxu0 0.0
    %1429 = vmatprep.mubr.f32.mxu0 0.0
    %1430 = vmatmul.mubr.f32.gmra.mrb[0].mxu0 %v463
    %v1431 = vpop.f32.mrb[0].mxu0
    %v1432 = vadd.f32 0.0, %v1431
    %v1433 = vpop.f32.mrb[0].mxu0
    %v1434 = vadd.f32 0.0, %v1433
    %1435 = vdwg.mxu0
    %1436 = vmatprep.subr.mxu0 0.0
    %1437 = vmatpush1.msra.mxu0 %v1145
    %1438 = vmatprep.subr.mxu0 0.0
    %1439 = vmatpush1.msra.mxu0 %v1152
    %1440 = vmatprep.subr.mxu0 0.0
    %1441 = vmatpush1.msra.mxu0 %v1159
    %1442 = vmatprep.subr.mxu0 0.0
    %1443 = vmatpush1.msra.mxu0 %v1166
    %1444 = vmatprep.subr.mxu0 0.0
    %1445 = vmatpush1.msra.mxu0 %v1173
    %1446 = vmatprep.subr.mxu0 0.0
    %1447 = vmatpush1.msra.mxu0 %v1180
    %1448 = vmatprep.subr.mxu0 0.0
    %1449 = vmatpush1.msra.mxu0 %v1187
    %1450 = vmatprep.subr.mxu0 0.0
    %1451 = vmatpush1.msra.mxu0 %v1194
    %1452 = vmatprep.subr.mxu0 0.0
    %1453 = vmatpush1.msra.mxu0 %v1221
    %1454 = vmatprep.subr.mxu0 0.0
    %1455 = vmatpush1.msra.mxu0 0.0
    %1456 = vmatprep.subr.mxu0 0.0
    %1457 = vmatpush1.msra.mxu0 0.0
    %1458 = vmatprep.subr.mxu0 0.0
    %1459 = vmatpush1.msra.mxu0 0.0
    %1460 = vmatprep.subr.mxu0 0.0
    %1461 = vmatpush1.msra.mxu0 0.0
    %1462 = vmatprep.subr.mxu0 0.0
    %1463 = vmatpush1.msra.mxu0 0.0
    %1464 = vmatprep.subr.mxu0 0.0
    %1465 = vmatpush1.msra.mxu0 0.0
    %1466 = vmatprep.subr.mxu0 0.0
    %1467 = vmatpush1.msra.mxu0 0.0
    %1468 = vmatprep.subr.mxu0 0.0
    %1469 = vmatpush1.msra.mxu0 0.0
    %1470 = vmatprep.subr.mxu0 0.0
    %1471 = vmatpush1.msra.mxu0 0.0
    %1472 = vmatprep.subr.mxu0 0.0
    %1473 = vmatpush1.msra.mxu0 0.0
    %1474 = vmatprep.subr.mxu0 0.0
    %1475 = vmatpush1.msra.mxu0 0.0
    %1476 = vmatprep.subr.mxu0 0.0
    %1477 = vmatpush1.msra.mxu0 0.0
    %1478 = vmatprep.subr.mxu0 0.0
    %1479 = vmatpush1.msra.mxu0 0.0
    %1480 = vmatprep.subr.mxu0 0.0
    %1481 = vmatpush1.msra.mxu0 0.0
    %1482 = vmatprep.subr.mxu0 0.0
    %1483 = vmatpush1.msra.mxu0 0.0
    %1484 = vmatprep.subr.mxu0 0.0
    %1485 = vmatpush1.msra.mxu0 0.0
    %1486 = vmatprep.subr.mxu0 0.0
    %1487 = vmatpush1.msra.mxu0 0.0
    %1488 = vmatprep.subr.mxu0 0.0
    %1489 = vmatpush1.msra.mxu0 0.0
    %1490 = vmatprep.subr.mxu0 0.0
    %1491 = vmatpush1.msra.mxu0 0.0
    %1492 = vmatprep.subr.mxu0 0.0
    %1493 = vmatpush1.msra.mxu0 0.0
    %1494 = vmatprep.subr.mxu0 0.0
    %1495 = vmatpush1.msra.mxu0 0.0
    %1496 = vmatprep.subr.mxu0 0.0
    %1497 = vmatpush1.msra.mxu0 0.0
    %1498 = vmatprep.subr.mxu0 0.0
    %1499 = vmatpush1.msra.mxu0 0.0
    %1500 = vmatprep.mubr.f32.mxu0 0.0
    %1501 = vmatmul.mubr.f32.gmra.mrb[0].mxu0 %v463
    %v1502 = vpop.f32.mrb[0].mxu0
    %v1503 = vadd.f32 0.0, %v1502
    %v1504 = vpop.f32.mrb[0].mxu0
    %1505 = vdwg.mxu0
    %s1506 = scalar_lea.vmem %s2, 1512
    %v1507 = vld [vmem:[%s1506] sm:$0xff]
    %v1508 = vld [vmem:[%s1506 + $0x8] sm:$0xff]
    %v1509 = vld [vmem:[%s1506 + $0x10] sm:$0xff]
    %v1510 = vld [vmem:[%s1506 + $0x18] sm:$0xff]
    %v1511 = vld [vmem:[%s1506 + $0x20] sm:$0xff]
    %v1512 = vld [vmem:[%s1506 + $0x28] sm:$0xff]
    %v1513 = vld [vmem:[%s1506 + $0x30] sm:$0xff]
    %v1514 = vld [vmem:[%s1506 + $0x38] sm:$0xff]
    %v1515 = vld [vmem:[%s1506 + $0x40] sm:$0xff]
    %v1516 = vld [vmem:[%s1506 + $0x48] sm:$0xff]
    %v1517 = vld [vmem:[%s1506 + $0x50] sm:$0xff]
    %v1518 = vld [vmem:[%s1506 + $0x58] sm:$0xff]
    %v1519 = vld [vmem:[%s1506 + $0x60] sm:$0xff]
    %v1520 = vld [vmem:[%s1506 + $0x68] sm:$0xff]
    %v1521 = vld [vmem:[%s1506 + $0x70] sm:$0xff]
    %v1522 = vld [vmem:[%s1506 + $0x78] sm:$0xff]
    %v1523 = vld [vmem:[%s1506 + $0x80] sm:$0xff]
    %v1524 = vld [vmem:[%s1506 + $0x88] sm:$0xff]
    %v1525 = vld [vmem:[%s1506 + $0x90] sm:$0xff]
    %v1526 = vld [vmem:[%s1506 + $0x98] sm:$0xff]
    %v1527 = vld [vmem:[%s1506 + $0xa0] sm:$0xff]
    %v1528 = vld [vmem:[%s1506 + $0xa8] sm:$0xff]
    %v1529 = vld [vmem:[%s1506 + $0xb0] sm:$0xff]
    %v1530 = vld [vmem:[%s1506 + $0xb8] sm:$0xff]
    %v1531 = vld [vmem:[%s1506 + $0xc0] sm:$0xff]
    %v1532 = vld [vmem:[%s1506 + $0xc8] sm:$0xff]
    %v1533 = vld [vmem:[%s1506 + $0xd0] sm:$0xff]
    %v1534 = vld [vmem:[%s1506 + $0xd8] sm:$0xff]
    %v1535 = vld [vmem:[%s1506 + $0xe0] sm:$0xff]
    %v1536 = vld [vmem:[%s1506 + $0xe8] sm:$0xff]
    %v1537 = vld [vmem:[%s1506 + $0xf0] sm:$0xff]
    %v1538 = vld [vmem:[%s1506 + $0xf8] sm:$0xff]
    %v1539 = vld [vmem:[%s1506 + $0x100] sm:$0xff]
    %v1540 = vld [vmem:[%s1506 + $0x108] sm:$0xff]
    %v1541 = vld [vmem:[%s1506 + $0x110] sm:$0xff]
    %v1542 = vld [vmem:[%s1506 + $0x118] sm:$0xff]
    %v1543 = vld [vmem:[%s1506 + $0x120] sm:$0xff]
    %v1544 = vld [vmem:[%s1506 + $0x128] sm:$0xff]
    %v1545 = vld [vmem:[%s1506 + $0x130] sm:$0xff]
    %v1546 = vld [vmem:[%s1506 + $0x138] sm:$0xff]
    %v1547 = vld [vmem:[%s1506 + $0x140] sm:$0xff]
    %v1548 = vld [vmem:[%s1506 + $0x148] sm:$0xff]
    %v1549 = vld [vmem:[%s1506 + $0x150] sm:$0xff]
    %v1550 = vld [vmem:[%s1506 + $0x158] sm:$0xff]
    %v1551 = vld [vmem:[%s1506 + $0x160] sm:$0xff]
    %v1552 = vld [vmem:[%s1506 + $0x168] sm:$0xff]
    %v1553 = vld [vmem:[%s1506 + $0x170] sm:$0xff]
    %v1554 = vld [vmem:[%s1506 + $0x178] sm:$0xff]
    %v1555 = vld [vmem:[%s1506 + $0x180] sm:$0xff]
    %v1556 = vld [vmem:[%s1506 + $0x188] sm:$0xff]
    %v1557 = vld [vmem:[%s1506 + $0x190] sm:$0xff]
    %v1558 = vld [vmem:[%s1506 + $0x198] sm:$0xff]
    %v1559 = vld [vmem:[%s1506 + $0x1a0] sm:$0xff]
    %v1560 = vld [vmem:[%s1506 + $0x1a8] sm:$0xff]
    %v1561 = vld [vmem:[%s1506 + $0x1b0] sm:$0xff]
    %v1562 = vld [vmem:[%s1506 + $0x1b8] sm:$0xff]
    %v1563 = vld [vmem:[%s1506 + $0x1c0] sm:$0x1]
    %v1564 = vld [vmem:[%s1506 + $0x1c8] sm:$0x1]
    %v1565 = vld [vmem:[%s1506 + $0x1d0] sm:$0x1]
    %v1566 = vld [vmem:[%s1506 + $0x1d8] sm:$0x1]
    %v1567 = vld [vmem:[%s1506 + $0x1e0] sm:$0x1]
    %v1568 = vld [vmem:[%s1506 + $0x1e8] sm:$0x1]
    %v1569 = vld [vmem:[%s1506 + $0x1f0] sm:$0x1]
    %v1571 = vsel %vm465, %v1563, 0
    %v1574 = vsel %vm465, %v1564, 0
    %v1577 = vsel %vm465, %v1565, 0
    %v1580 = vsel %vm465, %v1566, 0
    %v1583 = vsel %vm465, %v1567, 0
    %v1586 = vsel %vm465, %v1568, 0
    %v1589 = vsel %vm465, %v1569, 0
    %1591 = vmatprep.subr.mxu0 %v1508
    %1592 = vmatpush1.msra.mxu0 %v1507
    %1593 = vmatprep.subr.mxu0 %v1515
    %1594 = vmatpush1.msra.mxu0 %v1514
    %1595 = vmatprep.subr.mxu0 %v1522
    %1596 = vmatpush1.msra.mxu0 %v1521
    %1597 = vmatprep.subr.mxu0 %v1529
    %1598 = vmatpush1.msra.mxu0 %v1528
    %1599 = vmatprep.subr.mxu0 %v1536
    %1600 = vmatpush1.msra.mxu0 %v1535
    %1601 = vmatprep.subr.mxu0 %v1543
    %1602 = vmatpush1.msra.mxu0 %v1542
    %1603 = vmatprep.subr.mxu0 %v1550
    %1604 = vmatpush1.msra.mxu0 %v1549
    %1605 = vmatprep.subr.mxu0 %v1557
    %1606 = vmatpush1.msra.mxu0 %v1556
    %1607 = vmatprep.subr.mxu0 %v1574
    %1608 = vmatpush1.msra.mxu0 %v1571
    %1609 = vmatprep.subr.mxu0 0.0
    %1610 = vmatpush1.msra.mxu0 0.0
    %1611 = vmatprep.subr.mxu0 0.0
    %1612 = vmatpush1.msra.mxu0 0.0
    %1613 = vmatprep.subr.mxu0 0.0
    %1614 = vmatpush1.msra.mxu0 0.0
    %1615 = vmatprep.subr.mxu0 0.0
    %1616 = vmatpush1.msra.mxu0 0.0
    %1617 = vmatprep.subr.mxu0 0.0
    %1618 = vmatpush1.msra.mxu0 0.0
    %1619 = vmatprep.subr.mxu0 0.0
    %1620 = vmatpush1.msra.mxu0 0.0
    %1621 = vmatprep.subr.mxu0 0.0
    %1622 = vmatpush1.msra.mxu0 0.0
    %1623 = vmatprep.subr.mxu0 0.0
    %1624 = vmatpush1.msra.mxu0 0.0
    %1625 = vmatprep.subr.mxu0 0.0
    %1626 = vmatpush1.msra.mxu0 0.0
    %1627 = vmatprep.subr.mxu0 0.0
    %1628 = vmatpush1.msra.mxu0 0.0
    %1629 = vmatprep.subr.mxu0 0.0
    %1630 = vmatpush1.msra.mxu0 0.0
    %1631 = vmatprep.subr.mxu0 0.0
    %1632 = vmatpush1.msra.mxu0 0.0
    %1633 = vmatprep.subr.mxu0 0.0
    %1634 = vmatpush1.msra.mxu0 0.0
    %1635 = vmatprep.subr.mxu0 0.0
    %1636 = vmatpush1.msra.mxu0 0.0
    %1637 = vmatprep.subr.mxu0 0.0
    %1638 = vmatpush1.msra.mxu0 0.0
    %1639 = vmatprep.subr.mxu0 0.0
    %1640 = vmatpush1.msra.mxu0 0.0
    %1641 = vmatprep.subr.mxu0 0.0
    %1642 = vmatpush1.msra.mxu0 0.0
    %1643 = vmatprep.subr.mxu0 0.0
    %1644 = vmatpush1.msra.mxu0 0.0
    %1645 = vmatprep.subr.mxu0 0.0
    %1646 = vmatpush1.msra.mxu0 0.0
    %1647 = vmatprep.subr.mxu0 0.0
    %1648 = vmatpush1.msra.mxu0 0.0
    %1649 = vmatprep.subr.mxu0 0.0
    %1650 = vmatpush1.msra.mxu0 0.0
    %1651 = vmatprep.subr.mxu0 0.0
    %1652 = vmatpush1.msra.mxu0 0.0
    %1653 = vmatprep.subr.mxu0 0.0
    %1654 = vmatpush1.msra.mxu0 0.0
    %1655 = vmatprep.mubr.f32.mxu0 0.0
    %1656 = vmatmul.mubr.f32.gmra.mrb[0].mxu0 %v463
    %v1657 = vpop.f32.mrb[0].mxu0
    %v1658 = vadd.f32 0.0, %v1657
    %v1659 = vpop.f32.mrb[0].mxu0
    %v1660 = vadd.f32 0.0, %v1659
    %1661 = vdwg.mxu0
    %1662 = vmatprep.subr.mxu0 %v1510
    %1663 = vmatpush1.msra.mxu0 %v1509
    %1664 = vmatprep.subr.mxu0 %v1517
    %1665 = vmatpush1.msra.mxu0 %v1516
    %1666 = vmatprep.subr.mxu0 %v1524
    %1667 = vmatpush1.msra.mxu0 %v1523
    %1668 = vmatprep.subr.mxu0 %v1531
    %1669 = vmatpush1.msra.mxu0 %v1530
    %1670 = vmatprep.subr.mxu0 %v1538
    %1671 = vmatpush1.msra.mxu0 %v1537
    %1672 = vmatprep.subr.mxu0 %v1545
    %1673 = vmatpush1.msra.mxu0 %v1544
    %1674 = vmatprep.subr.mxu0 %v1552
    %1675 = vmatpush1.msra.mxu0 %v1551
    %1676 = vmatprep.subr.mxu0 %v1559
    %1677 = vmatpush1.msra.mxu0 %v1558
    %1678 = vmatprep.subr.mxu0 %v1580
    %1679 = vmatpush1.msra.mxu0 %v1577
    %1680 = vmatprep.subr.mxu0 0.0
    %1681 = vmatpush1.msra.mxu0 0.0
    %1682 = vmatprep.subr.mxu0 0.0
    %1683 = vmatpush1.msra.mxu0 0.0
    %1684 = vmatprep.subr.mxu0 0.0
    %1685 = vmatpush1.msra.mxu0 0.0
    %1686 = vmatprep.subr.mxu0 0.0
    %1687 = vmatpush1.msra.mxu0 0.0
    %1688 = vmatprep.subr.mxu0 0.0
    %1689 = vmatpush1.msra.mxu0 0.0
    %1690 = vmatprep.subr.mxu0 0.0
    %1691 = vmatpush1.msra.mxu0 0.0
    %1692 = vmatprep.subr.mxu0 0.0
    %1693 = vmatpush1.msra.mxu0 0.0
    %1694 = vmatprep.subr.mxu0 0.0
    %1695 = vmatpush1.msra.mxu0 0.0
    %1696 = vmatprep.subr.mxu0 0.0
    %1697 = vmatpush1.msra.mxu0 0.0
    %1698 = vmatprep.subr.mxu0 0.0
    %1699 = vmatpush1.msra.mxu0 0.0
    %1700 = vmatprep.subr.mxu0 0.0
    %1701 = vmatpush1.msra.mxu0 0.0
    %1702 = vmatprep.subr.mxu0 0.0
    %1703 = vmatpush1.msra.mxu0 0.0
    %1704 = vmatprep.subr.mxu0 0.0
    %1705 = vmatpush1.msra.mxu0 0.0
    %1706 = vmatprep.subr.mxu0 0.0
    %1707 = vmatpush1.msra.mxu0 0.0
    %1708 = vmatprep.subr.mxu0 0.0
    %1709 = vmatpush1.msra.mxu0 0.0
    %1710 = vmatprep.subr.mxu0 0.0
    %1711 = vmatpush1.msra.mxu0 0.0
    %1712 = vmatprep.subr.mxu0 0.0
    %1713 = vmatpush1.msra.mxu0 0.0
    %1714 = vmatprep.subr.mxu0 0.0
    %1715 = vmatpush1.msra.mxu0 0.0
    %1716 = vmatprep.subr.mxu0 0.0
    %1717 = vmatpush1.msra.mxu0 0.0
    %1718 = vmatprep.subr.mxu0 0.0
    %1719 = vmatpush1.msra.mxu0 0.0
    %1720 = vmatprep.subr.mxu0 0.0
    %1721 = vmatpush1.msra.mxu0 0.0
    %1722 = vmatprep.subr.mxu0 0.0
    %1723 = vmatpush1.msra.mxu0 0.0
    %1724 = vmatprep.subr.mxu0 0.0
    %1725 = vmatpush1.msra.mxu0 0.0
    %1726 = vmatprep.mubr.f32.mxu0 0.0
    %1727 = vmatmul.mubr.f32.gmra.mrb[0].mxu0 %v463
    %v1728 = vpop.f32.mrb[0].mxu0
    %v1729 = vadd.f32 0.0, %v1728
    %v1730 = vpop.f32.mrb[0].mxu0
    %v1731 = vadd.f32 0.0, %v1730
    %1732 = vdwg.mxu0
    %1733 = vmatprep.subr.mxu0 %v1512
    %1734 = vmatpush1.msra.mxu0 %v1511
    %1735 = vmatprep.subr.mxu0 %v1519
    %1736 = vmatpush1.msra.mxu0 %v1518
    %1737 = vmatprep.subr.mxu0 %v1526
    %1738 = vmatpush1.msra.mxu0 %v1525
    %1739 = vmatprep.subr.mxu0 %v1533
    %1740 = vmatpush1.msra.mxu0 %v1532
    %1741 = vmatprep.subr.mxu0 %v1540
    %1742 = vmatpush1.msra.mxu0 %v1539
    %1743 = vmatprep.subr.mxu0 %v1547
    %1744 = vmatpush1.msra.mxu0 %v1546
    %1745 = vmatprep.subr.mxu0 %v1554
    %1746 = vmatpush1.msra.mxu0 %v1553
    %1747 = vmatprep.subr.mxu0 %v1561
    %1748 = vmatpush1.msra.mxu0 %v1560
    %1749 = vmatprep.subr.mxu0 %v1586
    %1750 = vmatpush1.msra.mxu0 %v1583
    %1751 = vmatprep.subr.mxu0 0.0
    %1752 = vmatpush1.msra.mxu0 0.0
    %1753 = vmatprep.subr.mxu0 0.0
    %1754 = vmatpush1.msra.mxu0 0.0
    %1755 = vmatprep.subr.mxu0 0.0
    %1756 = vmatpush1.msra.mxu0 0.0
    %1757 = vmatprep.subr.mxu0 0.0
    %1758 = vmatpush1.msra.mxu0 0.0
    %1759 = vmatprep.subr.mxu0 0.0
    %1760 = vmatpush1.msra.mxu0 0.0
    %1761 = vmatprep.subr.mxu0 0.0
    %1762 = vmatpush1.msra.mxu0 0.0
    %1763 = vmatprep.subr.mxu0 0.0
    %1764 = vmatpush1.msra.mxu0 0.0
    %1765 = vmatprep.subr.mxu0 0.0
    %1766 = vmatpush1.msra.mxu0 0.0
    %1767 = vmatprep.subr.mxu0 0.0
    %1768 = vmatpush1.msra.mxu0 0.0
    %1769 = vmatprep.subr.mxu0 0.0
    %1770 = vmatpush1.msra.mxu0 0.0
    %1771 = vmatprep.subr.mxu0 0.0
    %1772 = vmatpush1.msra.mxu0 0.0
    %1773 = vmatprep.subr.mxu0 0.0
    %1774 = vmatpush1.msra.mxu0 0.0
    %1775 = vmatprep.subr.mxu0 0.0
    %1776 = vmatpush1.msra.mxu0 0.0
    %1777 = vmatprep.subr.mxu0 0.0
    %1778 = vmatpush1.msra.mxu0 0.0
    %1779 = vmatprep.subr.mxu0 0.0
    %1780 = vmatpush1.msra.mxu0 0.0
    %1781 = vmatprep.subr.mxu0 0.0
    %1782 = vmatpush1.msra.mxu0 0.0
    %1783 = vmatprep.subr.mxu0 0.0
    %1784 = vmatpush1.msra.mxu0 0.0
    %1785 = vmatprep.subr.mxu0 0.0
    %1786 = vmatpush1.msra.mxu0 0.0
    %1787 = vmatprep.subr.mxu0 0.0
    %1788 = vmatpush1.msra.mxu0 0.0
    %1789 = vmatprep.subr.mxu0 0.0
    %1790 = vmatpush1.msra.mxu0 0.0
    %1791 = vmatprep.subr.mxu0 0.0
    %1792 = vmatpush1.msra.mxu0 0.0
    %1793 = vmatprep.subr.mxu0 0.0
    %1794 = vmatpush1.msra.mxu0 0.0
    %1795 = vmatprep.subr.mxu0 0.0
    %1796 = vmatpush1.msra.mxu0 0.0
    %1797 = vmatprep.mubr.f32.mxu0 0.0
    %1798 = vmatmul.mubr.f32.gmra.mrb[0].mxu0 %v463
    %v1799 = vpop.f32.mrb[0].mxu0
    %v1800 = vadd.f32 0.0, %v1799
    %v1801 = vpop.f32.mrb[0].mxu0
    %v1802 = vadd.f32 0.0, %v1801
    %1803 = vdwg.mxu0
    %1804 = vmatprep.subr.mxu0 0.0
    %1805 = vmatpush1.msra.mxu0 %v1513
    %1806 = vmatprep.subr.mxu0 0.0
    %1807 = vmatpush1.msra.mxu0 %v1520
    %1808 = vmatprep.subr.mxu0 0.0
    %1809 = vmatpush1.msra.mxu0 %v1527
    %1810 = vmatprep.subr.mxu0 0.0
    %1811 = vmatpush1.msra.mxu0 %v1534
    %1812 = vmatprep.subr.mxu0 0.0
    %1813 = vmatpush1.msra.mxu0 %v1541
    %1814 = vmatprep.subr.mxu0 0.0
    %1815 = vmatpush1.msra.mxu0 %v1548
    %1816 = vmatprep.subr.mxu0 0.0
    %1817 = vmatpush1.msra.mxu0 %v1555
    %1818 = vmatprep.subr.mxu0 0.0
    %1819 = vmatpush1.msra.mxu0 %v1562
    %1820 = vmatprep.subr.mxu0 0.0
    %1821 = vmatpush1.msra.mxu0 %v1589
    %1822 = vmatprep.subr.mxu0 0.0
    %1823 = vmatpush1.msra.mxu0 0.0
    %1824 = vmatprep.subr.mxu0 0.0
    %1825 = vmatpush1.msra.mxu0 0.0
    %1826 = vmatprep.subr.mxu0 0.0
    %1827 = vmatpush1.msra.mxu0 0.0
    %1828 = vmatprep.subr.mxu0 0.0
    %1829 = vmatpush1.msra.mxu0 0.0
    %1830 = vmatprep.subr.mxu0 0.0
    %1831 = vmatpush1.msra.mxu0 0.0
    %1832 = vmatprep.subr.mxu0 0.0
    %1833 = vmatpush1.msra.mxu0 0.0
    %1834 = vmatprep.subr.mxu0 0.0
    %1835 = vmatpush1.msra.mxu0 0.0
    %1836 = vmatprep.subr.mxu0 0.0
    %1837 = vmatpush1.msra.mxu0 0.0
    %1838 = vmatprep.subr.mxu0 0.0
    %1839 = vmatpush1.msra.mxu0 0.0
    %1840 = vmatprep.subr.mxu0 0.0
    %1841 = vmatpush1.msra.mxu0 0.0
    %1842 = vmatprep.subr.mxu0 0.0
    %1843 = vmatpush1.msra.mxu0 0.0
    %1844 = vmatprep.subr.mxu0 0.0
    %1845 = vmatpush1.msra.mxu0 0.0
    %1846 = vmatprep.subr.mxu0 0.0
    %1847 = vmatpush1.msra.mxu0 0.0
    %1848 = vmatprep.subr.mxu0 0.0
    %1849 = vmatpush1.msra.mxu0 0.0
    %1850 = vmatprep.subr.mxu0 0.0
    %1851 = vmatpush1.msra.mxu0 0.0
    %1852 = vmatprep.subr.mxu0 0.0
    %1853 = vmatpush1.msra.mxu0 0.0
    %1854 = vmatprep.subr.mxu0 0.0
    %1855 = vmatpush1.msra.mxu0 0.0
    %1856 = vmatprep.subr.mxu0 0.0
    %1857 = vmatpush1.msra.mxu0 0.0
    %1858 = vmatprep.subr.mxu0 0.0
    %1859 = vmatpush1.msra.mxu0 0.0
    %1860 = vmatprep.subr.mxu0 0.0
    %1861 = vmatpush1.msra.mxu0 0.0
    %1862 = vmatprep.subr.mxu0 0.0
    %1863 = vmatpush1.msra.mxu0 0.0
    %1864 = vmatprep.subr.mxu0 0.0
    %1865 = vmatpush1.msra.mxu0 0.0
    %1866 = vmatprep.subr.mxu0 0.0
    %1867 = vmatpush1.msra.mxu0 0.0
    %1868 = vmatprep.mubr.f32.mxu0 0.0
    %1869 = vmatmul.mubr.f32.gmra.mrb[0].mxu0 %v463
    %v1870 = vpop.f32.mrb[0].mxu0
    %v1871 = vadd.f32 0.0, %v1870
    %v1872 = vpop.f32.mrb[0].mxu0
    %1873 = vdwg.mxu0
    %s1874 = scalar_lea.vmem %s2, 2016
    %v1875 = vld [vmem:[%s1874] sm:$0xff]
    %v1876 = vld [vmem:[%s1874 + $0x8] sm:$0xff]
    %v1877 = vld [vmem:[%s1874 + $0x10] sm:$0xff]
    %v1878 = vld [vmem:[%s1874 + $0x18] sm:$0xff]
    %v1879 = vld [vmem:[%s1874 + $0x20] sm:$0xff]
    %v1880 = vld [vmem:[%s1874 + $0x28] sm:$0xff]
    %v1881 = vld [vmem:[%s1874 + $0x30] sm:$0xff]
    %v1882 = vld [vmem:[%s1874 + $0x38] sm:$0xff]
    %v1883 = vld [vmem:[%s1874 + $0x40] sm:$0xff]
    %v1884 = vld [vmem:[%s1874 + $0x48] sm:$0xff]
    %v1885 = vld [vmem:[%s1874 + $0x50] sm:$0xff]
    %v1886 = vld [vmem:[%s1874 + $0x58] sm:$0xff]
    %v1887 = vld [vmem:[%s1874 + $0x60] sm:$0xff]
    %v1888 = vld [vmem:[%s1874 + $0x68] sm:$0xff]
    %v1889 = vld [vmem:[%s1874 + $0x70] sm:$0xff]
    %v1890 = vld [vmem:[%s1874 + $0x78] sm:$0xff]
    %v1891 = vld [vmem:[%s1874 + $0x80] sm:$0xff]
    %v1892 = vld [vmem:[%s1874 + $0x88] sm:$0xff]
    %v1893 = vld [vmem:[%s1874 + $0x90] sm:$0xff]
    %v1894 = vld [vmem:[%s1874 + $0x98] sm:$0xff]
    %v1895 = vld [vmem:[%s1874 + $0xa0] sm:$0xff]
    %v1896 = vld [vmem:[%s1874 + $0xa8] sm:$0xff]
    %v1897 = vld [vmem:[%s1874 + $0xb0] sm:$0xff]
    %v1898 = vld [vmem:[%s1874 + $0xb8] sm:$0xff]
    %v1899 = vld [vmem:[%s1874 + $0xc0] sm:$0xff]
    %v1900 = vld [vmem:[%s1874 + $0xc8] sm:$0xff]
    %v1901 = vld [vmem:[%s1874 + $0xd0] sm:$0xff]
    %v1902 = vld [vmem:[%s1874 + $0xd8] sm:$0xff]
    %v1903 = vld [vmem:[%s1874 + $0xe0] sm:$0xff]
    %v1904 = vld [vmem:[%s1874 + $0xe8] sm:$0xff]
    %v1905 = vld [vmem:[%s1874 + $0xf0] sm:$0xff]
    %v1906 = vld [vmem:[%s1874 + $0xf8] sm:$0xff]
    %v1907 = vld [vmem:[%s1874 + $0x100] sm:$0xff]
    %v1908 = vld [vmem:[%s1874 + $0x108] sm:$0xff]
    %v1909 = vld [vmem:[%s1874 + $0x110] sm:$0xff]
    %v1910 = vld [vmem:[%s1874 + $0x118] sm:$0xff]
    %v1911 = vld [vmem:[%s1874 + $0x120] sm:$0xff]
    %v1912 = vld [vmem:[%s1874 + $0x128] sm:$0xff]
    %v1913 = vld [vmem:[%s1874 + $0x130] sm:$0xff]
    %v1914 = vld [vmem:[%s1874 + $0x138] sm:$0xff]
    %v1915 = vld [vmem:[%s1874 + $0x140] sm:$0xff]
    %v1916 = vld [vmem:[%s1874 + $0x148] sm:$0xff]
    %v1917 = vld [vmem:[%s1874 + $0x150] sm:$0xff]
    %v1918 = vld [vmem:[%s1874 + $0x158] sm:$0xff]
    %v1919 = vld [vmem:[%s1874 + $0x160] sm:$0xff]
    %v1920 = vld [vmem:[%s1874 + $0x168] sm:$0xff]
    %v1921 = vld [vmem:[%s1874 + $0x170] sm:$0xff]
    %v1922 = vld [vmem:[%s1874 + $0x178] sm:$0xff]
    %v1923 = vld [vmem:[%s1874 + $0x180] sm:$0xff]
    %v1924 = vld [vmem:[%s1874 + $0x188] sm:$0xff]
    %v1925 = vld [vmem:[%s1874 + $0x190] sm:$0xff]
    %v1926 = vld [vmem:[%s1874 + $0x198] sm:$0xff]
    %v1927 = vld [vmem:[%s1874 + $0x1a0] sm:$0xff]
    %v1928 = vld [vmem:[%s1874 + $0x1a8] sm:$0xff]
    %v1929 = vld [vmem:[%s1874 + $0x1b0] sm:$0xff]
    %v1930 = vld [vmem:[%s1874 + $0x1b8] sm:$0xff]
    %v1931 = vld [vmem:[%s1874 + $0x1c0] sm:$0x1]
    %v1932 = vld [vmem:[%s1874 + $0x1c8] sm:$0x1]
    %v1933 = vld [vmem:[%s1874 + $0x1d0] sm:$0x1]
    %v1934 = vld [vmem:[%s1874 + $0x1d8] sm:$0x1]
    %v1935 = vld [vmem:[%s1874 + $0x1e0] sm:$0x1]
    %v1936 = vld [vmem:[%s1874 + $0x1e8] sm:$0x1]
    %v1937 = vld [vmem:[%s1874 + $0x1f0] sm:$0x1]
    %v1939 = vsel %vm465, %v1931, 0
    %v1942 = vsel %vm465, %v1932, 0
    %v1945 = vsel %vm465, %v1933, 0
    %v1948 = vsel %vm465, %v1934, 0
    %v1951 = vsel %vm465, %v1935, 0
    %v1954 = vsel %vm465, %v1936, 0
    %v1957 = vsel %vm465, %v1937, 0
    %1959 = vmatprep.subr.mxu0 %v1876
    %1960 = vmatpush1.msra.mxu0 %v1875
    %1961 = vmatprep.subr.mxu0 %v1883
    %1962 = vmatpush1.msra.mxu0 %v1882
    %1963 = vmatprep.subr.mxu0 %v1890
    %1964 = vmatpush1.msra.mxu0 %v1889
    %1965 = vmatprep.subr.mxu0 %v1897
    %1966 = vmatpush1.msra.mxu0 %v1896
    %1967 = vmatprep.subr.mxu0 %v1904
    %1968 = vmatpush1.msra.mxu0 %v1903
    %1969 = vmatprep.subr.mxu0 %v1911
    %1970 = vmatpush1.msra.mxu0 %v1910
    %1971 = vmatprep.subr.mxu0 %v1918
    %1972 = vmatpush1.msra.mxu0 %v1917
    %1973 = vmatprep.subr.mxu0 %v1925
    %1974 = vmatpush1.msra.mxu0 %v1924
    %1975 = vmatprep.subr.mxu0 %v1942
    %1976 = vmatpush1.msra.mxu0 %v1939
    %1977 = vmatprep.subr.mxu0 0.0
    %1978 = vmatpush1.msra.mxu0 0.0
    %1979 = vmatprep.subr.mxu0 0.0
    %1980 = vmatpush1.msra.mxu0 0.0
    %1981 = vmatprep.subr.mxu0 0.0
    %1982 = vmatpush1.msra.mxu0 0.0
    %1983 = vmatprep.subr.mxu0 0.0
    %1984 = vmatpush1.msra.mxu0 0.0
    %1985 = vmatprep.subr.mxu0 0.0
    %1986 = vmatpush1.msra.mxu0 0.0
    %1987 = vmatprep.subr.mxu0 0.0
    %1988 = vmatpush1.msra.mxu0 0.0
    %1989 = vmatprep.subr.mxu0 0.0
    %1990 = vmatpush1.msra.mxu0 0.0
    %1991 = vmatprep.subr.mxu0 0.0
    %1992 = vmatpush1.msra.mxu0 0.0
    %1993 = vmatprep.subr.mxu0 0.0
    %1994 = vmatpush1.msra.mxu0 0.0
    %1995 = vmatprep.subr.mxu0 0.0
    %1996 = vmatpush1.msra.mxu0 0.0
    %1997 = vmatprep.subr.mxu0 0.0
    %1998 = vmatpush1.msra.mxu0 0.0
    %1999 = vmatprep.subr.mxu0 0.0
    %2000 = vmatpush1.msra.mxu0 0.0
    %2001 = vmatprep.subr.mxu0 0.0
    %2002 = vmatpush1.msra.mxu0 0.0
    %2003 = vmatprep.subr.mxu0 0.0
    %2004 = vmatpush1.msra.mxu0 0.0
    %2005 = vmatprep.subr.mxu0 0.0
    %2006 = vmatpush1.msra.mxu0 0.0
    %2007 = vmatprep.subr.mxu0 0.0
    %2008 = vmatpush1.msra.mxu0 0.0
    %2009 = vmatprep.subr.mxu0 0.0
    %2010 = vmatpush1.msra.mxu0 0.0
    %2011 = vmatprep.subr.mxu0 0.0
    %2012 = vmatpush1.msra.mxu0 0.0
    %2013 = vmatprep.subr.mxu0 0.0
    %2014 = vmatpush1.msra.mxu0 0.0
    %2015 = vmatprep.subr.mxu0 0.0
    %2016 = vmatpush1.msra.mxu0 0.0
    %2017 = vmatprep.subr.mxu0 0.0
    %2018 = vmatpush1.msra.mxu0 0.0
    %2019 = vmatprep.subr.mxu0 0.0
    %2020 = vmatpush1.msra.mxu0 0.0
    %2021 = vmatprep.subr.mxu0 0.0
    %2022 = vmatpush1.msra.mxu0 0.0
    %2023 = vmatprep.mubr.f32.mxu0 0.0
    %2024 = vmatmul.mubr.f32.gmra.mrb[0].mxu0 %v463
    %v2025 = vpop.f32.mrb[0].mxu0
    %v2026 = vadd.f32 0.0, %v2025
    %v2027 = vpop.f32.mrb[0].mxu0
    %v2028 = vadd.f32 0.0, %v2027
    %2029 = vdwg.mxu0
    %2030 = vmatprep.subr.mxu0 %v1878
    %2031 = vmatpush1.msra.mxu0 %v1877
    %2032 = vmatprep.subr.mxu0 %v1885
    %2033 = vmatpush1.msra.mxu0 %v1884
    %2034 = vmatprep.subr.mxu0 %v1892
    %2035 = vmatpush1.msra.mxu0 %v1891
    %2036 = vmatprep.subr.mxu0 %v1899
    %2037 = vmatpush1.msra.mxu0 %v1898
    %2038 = vmatprep.subr.mxu0 %v1906
    %2039 = vmatpush1.msra.mxu0 %v1905
    %2040 = vmatprep.subr.mxu0 %v1913
    %2041 = vmatpush1.msra.mxu0 %v1912
    %2042 = vmatprep.subr.mxu0 %v1920
    %2043 = vmatpush1.msra.mxu0 %v1919
    %2044 = vmatprep.subr.mxu0 %v1927
    %2045 = vmatpush1.msra.mxu0 %v1926
    %2046 = vmatprep.subr.mxu0 %v1948
    %2047 = vmatpush1.msra.mxu0 %v1945
    %2048 = vmatprep.subr.mxu0 0.0
    %2049 = vmatpush1.msra.mxu0 0.0
    %2050 = vmatprep.subr.mxu0 0.0
    %2051 = vmatpush1.msra.mxu0 0.0
    %2052 = vmatprep.subr.mxu0 0.0
    %2053 = vmatpush1.msra.mxu0 0.0
    %2054 = vmatprep.subr.mxu0 0.0
    %2055 = vmatpush1.msra.mxu0 0.0
    %2056 = vmatprep.subr.mxu0 0.0
    %2057 = vmatpush1.msra.mxu0 0.0
    %2058 = vmatprep.subr.mxu0 0.0
    %2059 = vmatpush1.msra.mxu0 0.0
    %2060 = vmatprep.subr.mxu0 0.0
    %2061 = vmatpush1.msra.mxu0 0.0
    %2062 = vmatprep.subr.mxu0 0.0
    %2063 = vmatpush1.msra.mxu0 0.0
    %2064 = vmatprep.subr.mxu0 0.0
    %2065 = vmatpush1.msra.mxu0 0.0
    %2066 = vmatprep.subr.mxu0 0.0
    %2067 = vmatpush1.msra.mxu0 0.0
    %2068 = vmatprep.subr.mxu0 0.0
    %2069 = vmatpush1.msra.mxu0 0.0
    %2070 = vmatprep.subr.mxu0 0.0
    %2071 = vmatpush1.msra.mxu0 0.0
    %2072 = vmatprep.subr.mxu0 0.0
    %2073 = vmatpush1.msra.mxu0 0.0
    %2074 = vmatprep.subr.mxu0 0.0
    %2075 = vmatpush1.msra.mxu0 0.0
    %2076 = vmatprep.subr.mxu0 0.0
    %2077 = vmatpush1.msra.mxu0 0.0
    %2078 = vmatprep.subr.mxu0 0.0
    %2079 = vmatpush1.msra.mxu0 0.0
    %2080 = vmatprep.subr.mxu0 0.0
    %2081 = vmatpush1.msra.mxu0 0.0
    %2082 = vmatprep.subr.mxu0 0.0
    %2083 = vmatpush1.msra.mxu0 0.0
    %2084 = vmatprep.subr.mxu0 0.0
    %2085 = vmatpush1.msra.mxu0 0.0
    %2086 = vmatprep.subr.mxu0 0.0
    %2087 = vmatpush1.msra.mxu0 0.0
    %2088 = vmatprep.subr.mxu0 0.0
    %2089 = vmatpush1.msra.mxu0 0.0
    %2090 = vmatprep.subr.mxu0 0.0
    %2091 = vmatpush1.msra.mxu0 0.0
    %2092 = vmatprep.subr.mxu0 0.0
    %2093 = vmatpush1.msra.mxu0 0.0
    %2094 = vmatprep.mubr.f32.mxu0 0.0
    %2095 = vmatmul.mubr.f32.gmra.mrb[0].mxu0 %v463
    %v2096 = vpop.f32.mrb[0].mxu0
    %v2097 = vadd.f32 0.0, %v2096
    %v2098 = vpop.f32.mrb[0].mxu0
    %v2099 = vadd.f32 0.0, %v2098
    %2100 = vdwg.mxu0
    %2101 = vmatprep.subr.mxu0 %v1880
    %2102 = vmatpush1.msra.mxu0 %v1879
    %2103 = vmatprep.subr.mxu0 %v1887
    %2104 = vmatpush1.msra.mxu0 %v1886
    %2105 = vmatprep.subr.mxu0 %v1894
    %2106 = vmatpush1.msra.mxu0 %v1893
    %2107 = vmatprep.subr.mxu0 %v1901
    %2108 = vmatpush1.msra.mxu0 %v1900
    %2109 = vmatprep.subr.mxu0 %v1908
    %2110 = vmatpush1.msra.mxu0 %v1907
    %2111 = vmatprep.subr.mxu0 %v1915
    %2112 = vmatpush1.msra.mxu0 %v1914
    %2113 = vmatprep.subr.mxu0 %v1922
    %2114 = vmatpush1.msra.mxu0 %v1921
    %2115 = vmatprep.subr.mxu0 %v1929
    %2116 = vmatpush1.msra.mxu0 %v1928
    %2117 = vmatprep.subr.mxu0 %v1954
    %2118 = vmatpush1.msra.mxu0 %v1951
    %2119 = vmatprep.subr.mxu0 0.0
    %2120 = vmatpush1.msra.mxu0 0.0
    %2121 = vmatprep.subr.mxu0 0.0
    %2122 = vmatpush1.msra.mxu0 0.0
    %2123 = vmatprep.subr.mxu0 0.0
    %2124 = vmatpush1.msra.mxu0 0.0
    %2125 = vmatprep.subr.mxu0 0.0
    %2126 = vmatpush1.msra.mxu0 0.0
    %2127 = vmatprep.subr.mxu0 0.0
    %2128 = vmatpush1.msra.mxu0 0.0
    %2129 = vmatprep.subr.mxu0 0.0
    %2130 = vmatpush1.msra.mxu0 0.0
    %2131 = vmatprep.subr.mxu0 0.0
    %2132 = vmatpush1.msra.mxu0 0.0
    %2133 = vmatprep.subr.mxu0 0.0
    %2134 = vmatpush1.msra.mxu0 0.0
    %2135 = vmatprep.subr.mxu0 0.0
    %2136 = vmatpush1.msra.mxu0 0.0
    %2137 = vmatprep.subr.mxu0 0.0
    %2138 = vmatpush1.msra.mxu0 0.0
    %2139 = vmatprep.subr.mxu0 0.0
    %2140 = vmatpush1.msra.mxu0 0.0
    %2141 = vmatprep.subr.mxu0 0.0
    %2142 = vmatpush1.msra.mxu0 0.0
    %2143 = vmatprep.subr.mxu0 0.0
    %2144 = vmatpush1.msra.mxu0 0.0
    %2145 = vmatprep.subr.mxu0 0.0
    %2146 = vmatpush1.msra.mxu0 0.0
    %2147 = vmatprep.subr.mxu0 0.0
    %2148 = vmatpush1.msra.mxu0 0.0
    %2149 = vmatprep.subr.mxu0 0.0
    %2150 = vmatpush1.msra.mxu0 0.0
    %2151 = vmatprep.subr.mxu0 0.0
    %2152 = vmatpush1.msra.mxu0 0.0
    %2153 = vmatprep.subr.mxu0 0.0
    %2154 = vmatpush1.msra.mxu0 0.0
    %2155 = vmatprep.subr.mxu0 0.0
    %2156 = vmatpush1.msra.mxu0 0.0
    %2157 = vmatprep.subr.mxu0 0.0
    %2158 = vmatpush1.msra.mxu0 0.0
    %2159 = vmatprep.subr.mxu0 0.0
    %2160 = vmatpush1.msra.mxu0 0.0
    %2161 = vmatprep.subr.mxu0 0.0
    %2162 = vmatpush1.msra.mxu0 0.0
    %2163 = vmatprep.subr.mxu0 0.0
    %2164 = vmatpush1.msra.mxu0 0.0
    %2165 = vmatprep.mubr.f32.mxu0 0.0
    %2166 = vmatmul.mubr.f32.gmra.mrb[0].mxu0 %v463
    %v2167 = vpop.f32.mrb[0].mxu0
    %v2168 = vadd.f32 0.0, %v2167
    %v2169 = vpop.f32.mrb[0].mxu0
    %v2170 = vadd.f32 0.0, %v2169
    %2171 = vdwg.mxu0
    %2172 = vmatprep.subr.mxu0 0.0
    %2173 = vmatpush1.msra.mxu0 %v1881
    %2174 = vmatprep.subr.mxu0 0.0
    %2175 = vmatpush1.msra.mxu0 %v1888
    %2176 = vmatprep.subr.mxu0 0.0
    %2177 = vmatpush1.msra.mxu0 %v1895
    %2178 = vmatprep.subr.mxu0 0.0
    %2179 = vmatpush1.msra.mxu0 %v1902
    %2180 = vmatprep.subr.mxu0 0.0
    %2181 = vmatpush1.msra.mxu0 %v1909
    %2182 = vmatprep.subr.mxu0 0.0
    %2183 = vmatpush1.msra.mxu0 %v1916
    %2184 = vmatprep.subr.mxu0 0.0
    %2185 = vmatpush1.msra.mxu0 %v1923
    %2186 = vmatprep.subr.mxu0 0.0
    %2187 = vmatpush1.msra.mxu0 %v1930
    %2188 = vmatprep.subr.mxu0 0.0
    %2189 = vmatpush1.msra.mxu0 %v1957
    %2190 = vmatprep.subr.mxu0 0.0
    %2191 = vmatpush1.msra.mxu0 0.0
    %2192 = vmatprep.subr.mxu0 0.0
    %2193 = vmatpush1.msra.mxu0 0.0
    %2194 = vmatprep.subr.mxu0 0.0
    %2195 = vmatpush1.msra.mxu0 0.0
    %2196 = vmatprep.subr.mxu0 0.0
    %2197 = vmatpush1.msra.mxu0 0.0
    %2198 = vmatprep.subr.mxu0 0.0
    %2199 = vmatpush1.msra.mxu0 0.0
    %2200 = vmatprep.subr.mxu0 0.0
    %2201 = vmatpush1.msra.mxu0 0.0
    %2202 = vmatprep.subr.mxu0 0.0
    %2203 = vmatpush1.msra.mxu0 0.0
    %2204 = vmatprep.subr.mxu0 0.0
    %2205 = vmatpush1.msra.mxu0 0.0
    %2206 = vmatprep.subr.mxu0 0.0
    %2207 = vmatpush1.msra.mxu0 0.0
    %2208 = vmatprep.subr.mxu0 0.0
    %2209 = vmatpush1.msra.mxu0 0.0
    %2210 = vmatprep.subr.mxu0 0.0
    %2211 = vmatpush1.msra.mxu0 0.0
    %2212 = vmatprep.subr.mxu0 0.0
    %2213 = vmatpush1.msra.mxu0 0.0
    %2214 = vmatprep.subr.mxu0 0.0
    %2215 = vmatpush1.msra.mxu0 0.0
    %2216 = vmatprep.subr.mxu0 0.0
    %2217 = vmatpush1.msra.mxu0 0.0
    %2218 = vmatprep.subr.mxu0 0.0
    %2219 = vmatpush1.msra.mxu0 0.0
    %2220 = vmatprep.subr.mxu0 0.0
    %2221 = vmatpush1.msra.mxu0 0.0
    %2222 = vmatprep.subr.mxu0 0.0
    %2223 = vmatpush1.msra.mxu0 0.0
    %2224 = vmatprep.subr.mxu0 0.0
    %2225 = vmatpush1.msra.mxu0 0.0
    %2226 = vmatprep.subr.mxu0 0.0
    %2227 = vmatpush1.msra.mxu0 0.0
    %2228 = vmatprep.subr.mxu0 0.0
    %2229 = vmatpush1.msra.mxu0 0.0
    %2230 = vmatprep.subr.mxu0 0.0
    %2231 = vmatpush1.msra.mxu0 0.0
    %2232 = vmatprep.subr.mxu0 0.0
    %2233 = vmatpush1.msra.mxu0 0.0
    %2234 = vmatprep.subr.mxu0 0.0
    %2235 = vmatpush1.msra.mxu0 0.0
    %2236 = vmatprep.mubr.f32.mxu0 0.0
    %2237 = vmatmul.mubr.f32.gmra.mrb[0].mxu0 %v463
    %v2238 = vpop.f32.mrb[0].mxu0
    %v2239 = vadd.f32 0.0, %v2238
    %v2240 = vpop.f32.mrb[0].mxu0
    %2241 = vdwg.mxu0
    %s2242 = scalar_lea.vmem %s2, 2520
    %v2243 = vld [vmem:[%s2242] sm:$0xff]
    %v2244 = vld [vmem:[%s2242 + $0x8] sm:$0xff]
    %v2245 = vld [vmem:[%s2242 + $0x10] sm:$0xff]
    %v2246 = vld [vmem:[%s2242 + $0x18] sm:$0xff]
    %v2247 = vld [vmem:[%s2242 + $0x20] sm:$0xff]
    %v2248 = vld [vmem:[%s2242 + $0x28] sm:$0xff]
    %v2249 = vld [vmem:[%s2242 + $0x30] sm:$0xff]
    %v2250 = vld [vmem:[%s2242 + $0x38] sm:$0xff]
    %v2251 = vld [vmem:[%s2242 + $0x40] sm:$0xff]
    %v2252 = vld [vmem:[%s2242 + $0x48] sm:$0xff]
    %v2253 = vld [vmem:[%s2242 + $0x50] sm:$0xff]
    %v2254 = vld [vmem:[%s2242 + $0x58] sm:$0xff]
    %v2255 = vld [vmem:[%s2242 + $0x60] sm:$0xff]
    %v2256 = vld [vmem:[%s2242 + $0x68] sm:$0xff]
    %v2257 = vld [vmem:[%s2242 + $0x70] sm:$0xff]
    %v2258 = vld [vmem:[%s2242 + $0x78] sm:$0xff]
    %v2259 = vld [vmem:[%s2242 + $0x80] sm:$0xff]
    %v2260 = vld [vmem:[%s2242 + $0x88] sm:$0xff]
    %v2261 = vld [vmem:[%s2242 + $0x90] sm:$0xff]
    %v2262 = vld [vmem:[%s2242 + $0x98] sm:$0xff]
    %v2263 = vld [vmem:[%s2242 + $0xa0] sm:$0xff]
    %v2264 = vld [vmem:[%s2242 + $0xa8] sm:$0xff]
    %v2265 = vld [vmem:[%s2242 + $0xb0] sm:$0xff]
    %v2266 = vld [vmem:[%s2242 + $0xb8] sm:$0xff]
    %v2267 = vld [vmem:[%s2242 + $0xc0] sm:$0xff]
    %v2268 = vld [vmem:[%s2242 + $0xc8] sm:$0xff]
    %v2269 = vld [vmem:[%s2242 + $0xd0] sm:$0xff]
    %v2270 = vld [vmem:[%s2242 + $0xd8] sm:$0xff]
    %v2271 = vld [vmem:[%s2242 + $0xe0] sm:$0xff]
    %v2272 = vld [vmem:[%s2242 + $0xe8] sm:$0xff]
    %v2273 = vld [vmem:[%s2242 + $0xf0] sm:$0xff]
    %v2274 = vld [vmem:[%s2242 + $0xf8] sm:$0xff]
    %v2275 = vld [vmem:[%s2242 + $0x100] sm:$0xff]
    %v2276 = vld [vmem:[%s2242 + $0x108] sm:$0xff]
    %v2277 = vld [vmem:[%s2242 + $0x110] sm:$0xff]
    %v2278 = vld [vmem:[%s2242 + $0x118] sm:$0xff]
    %v2279 = vld [vmem:[%s2242 + $0x120] sm:$0xff]
    %v2280 = vld [vmem:[%s2242 + $0x128] sm:$0xff]
    %v2281 = vld [vmem:[%s2242 + $0x130] sm:$0xff]
    %v2282 = vld [vmem:[%s2242 + $0x138] sm:$0xff]
    %v2283 = vld [vmem:[%s2242 + $0x140] sm:$0xff]
    %v2284 = vld [vmem:[%s2242 + $0x148] sm:$0xff]
    %v2285 = vld [vmem:[%s2242 + $0x150] sm:$0xff]
    %v2286 = vld [vmem:[%s2242 + $0x158] sm:$0xff]
    %v2287 = vld [vmem:[%s2242 + $0x160] sm:$0xff]
    %v2288 = vld [vmem:[%s2242 + $0x168] sm:$0xff]
    %v2289 = vld [vmem:[%s2242 + $0x170] sm:$0xff]
    %v2290 = vld [vmem:[%s2242 + $0x178] sm:$0xff]
    %v2291 = vld [vmem:[%s2242 + $0x180] sm:$0xff]
    %v2292 = vld [vmem:[%s2242 + $0x188] sm:$0xff]
    %v2293 = vld [vmem:[%s2242 + $0x190] sm:$0xff]
    %v2294 = vld [vmem:[%s2242 + $0x198] sm:$0xff]
    %v2295 = vld [vmem:[%s2242 + $0x1a0] sm:$0xff]
    %v2296 = vld [vmem:[%s2242 + $0x1a8] sm:$0xff]
    %v2297 = vld [vmem:[%s2242 + $0x1b0] sm:$0xff]
    %v2298 = vld [vmem:[%s2242 + $0x1b8] sm:$0xff]
    %v2299 = vld [vmem:[%s2242 + $0x1c0] sm:$0x1]
    %v2300 = vld [vmem:[%s2242 + $0x1c8] sm:$0x1]
    %v2301 = vld [vmem:[%s2242 + $0x1d0] sm:$0x1]
    %v2302 = vld [vmem:[%s2242 + $0x1d8] sm:$0x1]
    %v2303 = vld [vmem:[%s2242 + $0x1e0] sm:$0x1]
    %v2304 = vld [vmem:[%s2242 + $0x1e8] sm:$0x1]
    %v2305 = vld [vmem:[%s2242 + $0x1f0] sm:$0x1]
    %v2307 = vsel %vm465, %v2299, 0
    %v2310 = vsel %vm465, %v2300, 0
    %v2313 = vsel %vm465, %v2301, 0
    %v2316 = vsel %vm465, %v2302, 0
    %v2319 = vsel %vm465, %v2303, 0
    %v2322 = vsel %vm465, %v2304, 0
    %v2325 = vsel %vm465, %v2305, 0
    %2327 = vmatprep.subr.mxu0 %v2244
    %2328 = vmatpush1.msra.mxu0 %v2243
    %2329 = vmatprep.subr.mxu0 %v2251
    %2330 = vmatpush1.msra.mxu0 %v2250
    %2331 = vmatprep.subr.mxu0 %v2258
    %2332 = vmatpush1.msra.mxu0 %v2257
    %2333 = vmatprep.subr.mxu0 %v2265
    %2334 = vmatpush1.msra.mxu0 %v2264
    %2335 = vmatprep.subr.mxu0 %v2272
    %2336 = vmatpush1.msra.mxu0 %v2271
    %2337 = vmatprep.subr.mxu0 %v2279
    %2338 = vmatpush1.msra.mxu0 %v2278
    %2339 = vmatprep.subr.mxu0 %v2286
    %2340 = vmatpush1.msra.mxu0 %v2285
    %2341 = vmatprep.subr.mxu0 %v2293
    %2342 = vmatpush1.msra.mxu0 %v2292
    %2343 = vmatprep.subr.mxu0 %v2310
    %2344 = vmatpush1.msra.mxu0 %v2307
    %2345 = vmatprep.subr.mxu0 0.0
    %2346 = vmatpush1.msra.mxu0 0.0
    %2347 = vmatprep.subr.mxu0 0.0
    %2348 = vmatpush1.msra.mxu0 0.0
    %2349 = vmatprep.subr.mxu0 0.0
    %2350 = vmatpush1.msra.mxu0 0.0
    %2351 = vmatprep.subr.mxu0 0.0
    %2352 = vmatpush1.msra.mxu0 0.0
    %2353 = vmatprep.subr.mxu0 0.0
    %2354 = vmatpush1.msra.mxu0 0.0
    %2355 = vmatprep.subr.mxu0 0.0
    %2356 = vmatpush1.msra.mxu0 0.0
    %2357 = vmatprep.subr.mxu0 0.0
    %2358 = vmatpush1.msra.mxu0 0.0
    %2359 = vmatprep.subr.mxu0 0.0
    %2360 = vmatpush1.msra.mxu0 0.0
    %2361 = vmatprep.subr.mxu0 0.0
    %2362 = vmatpush1.msra.mxu0 0.0
    %2363 = vmatprep.subr.mxu0 0.0
    %2364 = vmatpush1.msra.mxu0 0.0
    %2365 = vmatprep.subr.mxu0 0.0
    %2366 = vmatpush1.msra.mxu0 0.0
    %2367 = vmatprep.subr.mxu0 0.0
    %2368 = vmatpush1.msra.mxu0 0.0
    %2369 = vmatprep.subr.mxu0 0.0
    %2370 = vmatpush1.msra.mxu0 0.0
    %2371 = vmatprep.subr.mxu0 0.0
    %2372 = vmatpush1.msra.mxu0 0.0
    %2373 = vmatprep.subr.mxu0 0.0
    %2374 = vmatpush1.msra.mxu0 0.0
    %2375 = vmatprep.subr.mxu0 0.0
    %2376 = vmatpush1.msra.mxu0 0.0
    %2377 = vmatprep.subr.mxu0 0.0
    %2378 = vmatpush1.msra.mxu0 0.0
    %2379 = vmatprep.subr.mxu0 0.0
    %2380 = vmatpush1.msra.mxu0 0.0
    %2381 = vmatprep.subr.mxu0 0.0
    %2382 = vmatpush1.msra.mxu0 0.0
    %2383 = vmatprep.subr.mxu0 0.0
    %2384 = vmatpush1.msra.mxu0 0.0
    %2385 = vmatprep.subr.mxu0 0.0
    %2386 = vmatpush1.msra.mxu0 0.0
    %2387 = vmatprep.subr.mxu0 0.0
    %2388 = vmatpush1.msra.mxu0 0.0
    %2389 = vmatprep.subr.mxu0 0.0
    %2390 = vmatpush1.msra.mxu0 0.0
    %2391 = vmatprep.mubr.f32.mxu0 0.0
    %2392 = vmatmul.mubr.f32.gmra.mrb[0].mxu0 %v463
    %v2393 = vpop.f32.mrb[0].mxu0
    %v2394 = vadd.f32 0.0, %v2393
    %v2395 = vpop.f32.mrb[0].mxu0
    %v2396 = vadd.f32 0.0, %v2395
    %2397 = vdwg.mxu0
    %2398 = vmatprep.subr.mxu0 %v2246
    %2399 = vmatpush1.msra.mxu0 %v2245
    %2400 = vmatprep.subr.mxu0 %v2253
    %2401 = vmatpush1.msra.mxu0 %v2252
    %2402 = vmatprep.subr.mxu0 %v2260
    %2403 = vmatpush1.msra.mxu0 %v2259
    %2404 = vmatprep.subr.mxu0 %v2267
    %2405 = vmatpush1.msra.mxu0 %v2266
    %2406 = vmatprep.subr.mxu0 %v2274
    %2407 = vmatpush1.msra.mxu0 %v2273
    %2408 = vmatprep.subr.mxu0 %v2281
    %2409 = vmatpush1.msra.mxu0 %v2280
    %2410 = vmatprep.subr.mxu0 %v2288
    %2411 = vmatpush1.msra.mxu0 %v2287
    %2412 = vmatprep.subr.mxu0 %v2295
    %2413 = vmatpush1.msra.mxu0 %v2294
    %2414 = vmatprep.subr.mxu0 %v2316
    %2415 = vmatpush1.msra.mxu0 %v2313
    %2416 = vmatprep.subr.mxu0 0.0
    %2417 = vmatpush1.msra.mxu0 0.0
    %2418 = vmatprep.subr.mxu0 0.0
    %2419 = vmatpush1.msra.mxu0 0.0
    %2420 = vmatprep.subr.mxu0 0.0
    %2421 = vmatpush1.msra.mxu0 0.0
    %2422 = vmatprep.subr.mxu0 0.0
    %2423 = vmatpush1.msra.mxu0 0.0
    %2424 = vmatprep.subr.mxu0 0.0
    %2425 = vmatpush1.msra.mxu0 0.0
    %2426 = vmatprep.subr.mxu0 0.0
    %2427 = vmatpush1.msra.mxu0 0.0
    %2428 = vmatprep.subr.mxu0 0.0
    %2429 = vmatpush1.msra.mxu0 0.0
    %2430 = vmatprep.subr.mxu0 0.0
    %2431 = vmatpush1.msra.mxu0 0.0
    %2432 = vmatprep.subr.mxu0 0.0
    %2433 = vmatpush1.msra.mxu0 0.0
    %2434 = vmatprep.subr.mxu0 0.0
    %2435 = vmatpush1.msra.mxu0 0.0
    %2436 = vmatprep.subr.mxu0 0.0
    %2437 = vmatpush1.msra.mxu0 0.0
    %2438 = vmatprep.subr.mxu0 0.0
    %2439 = vmatpush1.msra.mxu0 0.0
    %2440 = vmatprep.subr.mxu0 0.0
    %2441 = vmatpush1.msra.mxu0 0.0
    %2442 = vmatprep.subr.mxu0 0.0
    %2443 = vmatpush1.msra.mxu0 0.0
    %2444 = vmatprep.subr.mxu0 0.0
    %2445 = vmatpush1.msra.mxu0 0.0
    %2446 = vmatprep.subr.mxu0 0.0
    %2447 = vmatpush1.msra.mxu0 0.0
    %2448 = vmatprep.subr.mxu0 0.0
    %2449 = vmatpush1.msra.mxu0 0.0
    %2450 = vmatprep.subr.mxu0 0.0
    %2451 = vmatpush1.msra.mxu0 0.0
    %2452 = vmatprep.subr.mxu0 0.0
    %2453 = vmatpush1.msra.mxu0 0.0
    %2454 = vmatprep.subr.mxu0 0.0
    %2455 = vmatpush1.msra.mxu0 0.0
    %2456 = vmatprep.subr.mxu0 0.0
    %2457 = vmatpush1.msra.mxu0 0.0
    %2458 = vmatprep.subr.mxu0 0.0
    %2459 = vmatpush1.msra.mxu0 0.0
    %2460 = vmatprep.subr.mxu0 0.0
    %2461 = vmatpush1.msra.mxu0 0.0
    %2462 = vmatprep.mubr.f32.mxu0 0.0
    %2463 = vmatmul.mubr.f32.gmra.mrb[0].mxu0 %v463
    %v2464 = vpop.f32.mrb[0].mxu0
    %v2465 = vadd.f32 0.0, %v2464
    %v2466 = vpop.f32.mrb[0].mxu0
    %v2467 = vadd.f32 0.0, %v2466
    %2468 = vdwg.mxu0
    %2469 = vmatprep.subr.mxu0 %v2248
    %2470 = vmatpush1.msra.mxu0 %v2247
    %2471 = vmatprep.subr.mxu0 %v2255
    %2472 = vmatpush1.msra.mxu0 %v2254
    %2473 = vmatprep.subr.mxu0 %v2262
    %2474 = vmatpush1.msra.mxu0 %v2261
    %2475 = vmatprep.subr.mxu0 %v2269
    %2476 = vmatpush1.msra.mxu0 %v2268
    %2477 = vmatprep.subr.mxu0 %v2276
    %2478 = vmatpush1.msra.mxu0 %v2275
    %2479 = vmatprep.subr.mxu0 %v2283
    %2480 = vmatpush1.msra.mxu0 %v2282
    %2481 = vmatprep.subr.mxu0 %v2290
    %2482 = vmatpush1.msra.mxu0 %v2289
    %2483 = vmatprep.subr.mxu0 %v2297
    %2484 = vmatpush1.msra.mxu0 %v2296
    %2485 = vmatprep.subr.mxu0 %v2322
    %2486 = vmatpush1.msra.mxu0 %v2319
    %2487 = vmatprep.subr.mxu0 0.0
    %2488 = vmatpush1.msra.mxu0 0.0
    %2489 = vmatprep.subr.mxu0 0.0
    %2490 = vmatpush1.msra.mxu0 0.0
    %2491 = vmatprep.subr.mxu0 0.0
    %2492 = vmatpush1.msra.mxu0 0.0
    %2493 = vmatprep.subr.mxu0 0.0
    %2494 = vmatpush1.msra.mxu0 0.0
    %2495 = vmatprep.subr.mxu0 0.0
    %2496 = vmatpush1.msra.mxu0 0.0
    %2497 = vmatprep.subr.mxu0 0.0
    %2498 = vmatpush1.msra.mxu0 0.0
    %2499 = vmatprep.subr.mxu0 0.0
    %2500 = vmatpush1.msra.mxu0 0.0
    %2501 = vmatprep.subr.mxu0 0.0
    %2502 = vmatpush1.msra.mxu0 0.0
    %2503 = vmatprep.subr.mxu0 0.0
    %2504 = vmatpush1.msra.mxu0 0.0
    %2505 = vmatprep.subr.mxu0 0.0
    %2506 = vmatpush1.msra.mxu0 0.0
    %2507 = vmatprep.subr.mxu0 0.0
    %2508 = vmatpush1.msra.mxu0 0.0
    %2509 = vmatprep.subr.mxu0 0.0
    %2510 = vmatpush1.msra.mxu0 0.0
    %2511 = vmatprep.subr.mxu0 0.0
    %2512 = vmatpush1.msra.mxu0 0.0
    %2513 = vmatprep.subr.mxu0 0.0
    %2514 = vmatpush1.msra.mxu0 0.0
    %2515 = vmatprep.subr.mxu0 0.0
    %2516 = vmatpush1.msra.mxu0 0.0
    %2517 = vmatprep.subr.mxu0 0.0
    %2518 = vmatpush1.msra.mxu0 0.0
    %2519 = vmatprep.subr.mxu0 0.0
    %2520 = vmatpush1.msra.mxu0 0.0
    %2521 = vmatprep.subr.mxu0 0.0
    %2522 = vmatpush1.msra.mxu0 0.0
    %2523 = vmatprep.subr.mxu0 0.0
    %2524 = vmatpush1.msra.mxu0 0.0
    %2525 = vmatprep.subr.mxu0 0.0
    %2526 = vmatpush1.msra.mxu0 0.0
    %2527 = vmatprep.subr.mxu0 0.0
    %2528 = vmatpush1.msra.mxu0 0.0
    %2529 = vmatprep.subr.mxu0 0.0
    %2530 = vmatpush1.msra.mxu0 0.0
    %2531 = vmatprep.subr.mxu0 0.0
    %2532 = vmatpush1.msra.mxu0 0.0
    %2533 = vmatprep.mubr.f32.mxu0 0.0
    %2534 = vmatmul.mubr.f32.gmra.mrb[0].mxu0 %v463
    %v2535 = vpop.f32.mrb[0].mxu0
    %v2536 = vadd.f32 0.0, %v2535
    %v2537 = vpop.f32.mrb[0].mxu0
    %v2538 = vadd.f32 0.0, %v2537
    %2539 = vdwg.mxu0
    %2540 = vmatprep.subr.mxu0 0.0
    %2541 = vmatpush1.msra.mxu0 %v2249
    %2542 = vmatprep.subr.mxu0 0.0
    %2543 = vmatpush1.msra.mxu0 %v2256
    %2544 = vmatprep.subr.mxu0 0.0
    %2545 = vmatpush1.msra.mxu0 %v2263
    %2546 = vmatprep.subr.mxu0 0.0
    %2547 = vmatpush1.msra.mxu0 %v2270
    %2548 = vmatprep.subr.mxu0 0.0
    %2549 = vmatpush1.msra.mxu0 %v2277
    %2550 = vmatprep.subr.mxu0 0.0
    %2551 = vmatpush1.msra.mxu0 %v2284
    %2552 = vmatprep.subr.mxu0 0.0
    %2553 = vmatpush1.msra.mxu0 %v2291
    %2554 = vmatprep.subr.mxu0 0.0
    %2555 = vmatpush1.msra.mxu0 %v2298
    %2556 = vmatprep.subr.mxu0 0.0
    %2557 = vmatpush1.msra.mxu0 %v2325
    %2558 = vmatprep.subr.mxu0 0.0
    %2559 = vmatpush1.msra.mxu0 0.0
    %2560 = vmatprep.subr.mxu0 0.0
    %2561 = vmatpush1.msra.mxu0 0.0
    %2562 = vmatprep.subr.mxu0 0.0
    %2563 = vmatpush1.msra.mxu0 0.0
    %2564 = vmatprep.subr.mxu0 0.0
    %2565 = vmatpush1.msra.mxu0 0.0
    %2566 = vmatprep.subr.mxu0 0.0
    %2567 = vmatpush1.msra.mxu0 0.0
    %2568 = vmatprep.subr.mxu0 0.0
    %2569 = vmatpush1.msra.mxu0 0.0
    %2570 = vmatprep.subr.mxu0 0.0
    %2571 = vmatpush1.msra.mxu0 0.0
    %2572 = vmatprep.subr.mxu0 0.0
    %2573 = vmatpush1.msra.mxu0 0.0
    %2574 = vmatprep.subr.mxu0 0.0
    %2575 = vmatpush1.msra.mxu0 0.0
    %2576 = vmatprep.subr.mxu0 0.0
    %2577 = vmatpush1.msra.mxu0 0.0
    %2578 = vmatprep.subr.mxu0 0.0
    %2579 = vmatpush1.msra.mxu0 0.0
    %2580 = vmatprep.subr.mxu0 0.0
    %2581 = vmatpush1.msra.mxu0 0.0
    %2582 = vmatprep.subr.mxu0 0.0
    %2583 = vmatpush1.msra.mxu0 0.0
    %2584 = vmatprep.subr.mxu0 0.0
    %2585 = vmatpush1.msra.mxu0 0.0
    %2586 = vmatprep.subr.mxu0 0.0
    %2587 = vmatpush1.msra.mxu0 0.0
    %2588 = vmatprep.subr.mxu0 0.0
    %2589 = vmatpush1.msra.mxu0 0.0
    %2590 = vmatprep.subr.mxu0 0.0
    %2591 = vmatpush1.msra.mxu0 0.0
    %2592 = vmatprep.subr.mxu0 0.0
    %2593 = vmatpush1.msra.mxu0 0.0
    %2594 = vmatprep.subr.mxu0 0.0
    %2595 = vmatpush1.msra.mxu0 0.0
    %2596 = vmatprep.subr.mxu0 0.0
    %2597 = vmatpush1.msra.mxu0 0.0
    %2598 = vmatprep.subr.mxu0 0.0
    %2599 = vmatpush1.msra.mxu0 0.0
    %2600 = vmatprep.subr.mxu0 0.0
    %2601 = vmatpush1.msra.mxu0 0.0
    %2602 = vmatprep.subr.mxu0 0.0
    %2603 = vmatpush1.msra.mxu0 0.0
    %2604 = vmatprep.mubr.f32.mxu0 0.0
    %2605 = vmatmul.mubr.f32.gmra.mrb[0].mxu0 %v463
    %v2606 = vpop.f32.mrb[0].mxu0
    %v2607 = vadd.f32 0.0, %v2606
    %v2608 = vpop.f32.mrb[0].mxu0
    %2609 = vdwg.mxu0
    %s2610 = scalar_lea.vmem %s2, 3024
    %v2611 = vld [vmem:[%s2610] sm:$0xff]
    %v2612 = vld [vmem:[%s2610 + $0x8] sm:$0xff]
    %v2613 = vld [vmem:[%s2610 + $0x10] sm:$0xff]
    %v2614 = vld [vmem:[%s2610 + $0x18] sm:$0xff]
    %v2615 = vld [vmem:[%s2610 + $0x20] sm:$0xff]
    %v2616 = vld [vmem:[%s2610 + $0x28] sm:$0xff]
    %v2617 = vld [vmem:[%s2610 + $0x30] sm:$0xff]
    %v2618 = vld [vmem:[%s2610 + $0x38] sm:$0xff]
    %v2619 = vld [vmem:[%s2610 + $0x40] sm:$0xff]
    %v2620 = vld [vmem:[%s2610 + $0x48] sm:$0xff]
    %v2621 = vld [vmem:[%s2610 + $0x50] sm:$0xff]
    %v2622 = vld [vmem:[%s2610 + $0x58] sm:$0xff]
    %v2623 = vld [vmem:[%s2610 + $0x60] sm:$0xff]
    %v2624 = vld [vmem:[%s2610 + $0x68] sm:$0xff]
    %v2625 = vld [vmem:[%s2610 + $0x70] sm:$0xff]
    %v2626 = vld [vmem:[%s2610 + $0x78] sm:$0xff]
    %v2627 = vld [vmem:[%s2610 + $0x80] sm:$0xff]
    %v2628 = vld [vmem:[%s2610 + $0x88] sm:$0xff]
    %v2629 = vld [vmem:[%s2610 + $0x90] sm:$0xff]
    %v2630 = vld [vmem:[%s2610 + $0x98] sm:$0xff]
    %v2631 = vld [vmem:[%s2610 + $0xa0] sm:$0xff]
    %v2632 = vld [vmem:[%s2610 + $0xa8] sm:$0xff]
    %v2633 = vld [vmem:[%s2610 + $0xb0] sm:$0xff]
    %v2634 = vld [vmem:[%s2610 + $0xb8] sm:$0xff]
    %v2635 = vld [vmem:[%s2610 + $0xc0] sm:$0xff]
    %v2636 = vld [vmem:[%s2610 + $0xc8] sm:$0xff]
    %v2637 = vld [vmem:[%s2610 + $0xd0] sm:$0xff]
    %v2638 = vld [vmem:[%s2610 + $0xd8] sm:$0xff]
    %v2639 = vld [vmem:[%s2610 + $0xe0] sm:$0xff]
    %v2640 = vld [vmem:[%s2610 + $0xe8] sm:$0xff]
    %v2641 = vld [vmem:[%s2610 + $0xf0] sm:$0xff]
    %v2642 = vld [vmem:[%s2610 + $0xf8] sm:$0xff]
    %v2643 = vld [vmem:[%s2610 + $0x100] sm:$0xff]
    %v2644 = vld [vmem:[%s2610 + $0x108] sm:$0xff]
    %v2645 = vld [vmem:[%s2610 + $0x110] sm:$0xff]
    %v2646 = vld [vmem:[%s2610 + $0x118] sm:$0xff]
    %v2647 = vld [vmem:[%s2610 + $0x120] sm:$0xff]
    %v2648 = vld [vmem:[%s2610 + $0x128] sm:$0xff]
    %v2649 = vld [vmem:[%s2610 + $0x130] sm:$0xff]
    %v2650 = vld [vmem:[%s2610 + $0x138] sm:$0xff]
    %v2651 = vld [vmem:[%s2610 + $0x140] sm:$0xff]
    %v2652 = vld [vmem:[%s2610 + $0x148] sm:$0xff]
    %v2653 = vld [vmem:[%s2610 + $0x150] sm:$0xff]
    %v2654 = vld [vmem:[%s2610 + $0x158] sm:$0xff]
    %v2655 = vld [vmem:[%s2610 + $0x160] sm:$0xff]
    %v2656 = vld [vmem:[%s2610 + $0x168] sm:$0xff]
    %v2657 = vld [vmem:[%s2610 + $0x170] sm:$0xff]
    %v2658 = vld [vmem:[%s2610 + $0x178] sm:$0xff]
    %v2659 = vld [vmem:[%s2610 + $0x180] sm:$0xff]
    %v2660 = vld [vmem:[%s2610 + $0x188] sm:$0xff]
    %v2661 = vld [vmem:[%s2610 + $0x190] sm:$0xff]
    %v2662 = vld [vmem:[%s2610 + $0x198] sm:$0xff]
    %v2663 = vld [vmem:[%s2610 + $0x1a0] sm:$0xff]
    %v2664 = vld [vmem:[%s2610 + $0x1a8] sm:$0xff]
    %v2665 = vld [vmem:[%s2610 + $0x1b0] sm:$0xff]
    %v2666 = vld [vmem:[%s2610 + $0x1b8] sm:$0xff]
    %v2667 = vld [vmem:[%s2610 + $0x1c0] sm:$0x1]
    %v2668 = vld [vmem:[%s2610 + $0x1c8] sm:$0x1]
    %v2669 = vld [vmem:[%s2610 + $0x1d0] sm:$0x1]
    %v2670 = vld [vmem:[%s2610 + $0x1d8] sm:$0x1]
    %v2671 = vld [vmem:[%s2610 + $0x1e0] sm:$0x1]
    %v2672 = vld [vmem:[%s2610 + $0x1e8] sm:$0x1]
    %v2673 = vld [vmem:[%s2610 + $0x1f0] sm:$0x1]
    %v2675 = vsel %vm465, %v2667, 0
    %v2678 = vsel %vm465, %v2668, 0
    %v2681 = vsel %vm465, %v2669, 0
    %v2684 = vsel %vm465, %v2670, 0
    %v2687 = vsel %vm465, %v2671, 0
    %v2690 = vsel %vm465, %v2672, 0
    %v2693 = vsel %vm465, %v2673, 0
    %2695 = vmatprep.subr.mxu0 %v2612
    %2696 = vmatpush1.msra.mxu0 %v2611
    %2697 = vmatprep.subr.mxu0 %v2619
    %2698 = vmatpush1.msra.mxu0 %v2618
    %2699 = vmatprep.subr.mxu0 %v2626
    %2700 = vmatpush1.msra.mxu0 %v2625
    %2701 = vmatprep.subr.mxu0 %v2633
    %2702 = vmatpush1.msra.mxu0 %v2632
    %2703 = vmatprep.subr.mxu0 %v2640
    %2704 = vmatpush1.msra.mxu0 %v2639
    %2705 = vmatprep.subr.mxu0 %v2647
    %2706 = vmatpush1.msra.mxu0 %v2646
    %2707 = vmatprep.subr.mxu0 %v2654
    %2708 = vmatpush1.msra.mxu0 %v2653
    %2709 = vmatprep.subr.mxu0 %v2661
    %2710 = vmatpush1.msra.mxu0 %v2660
    %2711 = vmatprep.subr.mxu0 %v2678
    %2712 = vmatpush1.msra.mxu0 %v2675
    %2713 = vmatprep.subr.mxu0 0.0
    %2714 = vmatpush1.msra.mxu0 0.0
    %2715 = vmatprep.subr.mxu0 0.0
    %2716 = vmatpush1.msra.mxu0 0.0
    %2717 = vmatprep.subr.mxu0 0.0
    %2718 = vmatpush1.msra.mxu0 0.0
    %2719 = vmatprep.subr.mxu0 0.0
    %2720 = vmatpush1.msra.mxu0 0.0
    %2721 = vmatprep.subr.mxu0 0.0
    %2722 = vmatpush1.msra.mxu0 0.0
    %2723 = vmatprep.subr.mxu0 0.0
    %2724 = vmatpush1.msra.mxu0 0.0
    %2725 = vmatprep.subr.mxu0 0.0
    %2726 = vmatpush1.msra.mxu0 0.0
    %2727 = vmatprep.subr.mxu0 0.0
    %2728 = vmatpush1.msra.mxu0 0.0
    %2729 = vmatprep.subr.mxu0 0.0
    %2730 = vmatpush1.msra.mxu0 0.0
    %2731 = vmatprep.subr.mxu0 0.0
    %2732 = vmatpush1.msra.mxu0 0.0
    %2733 = vmatprep.subr.mxu0 0.0
    %2734 = vmatpush1.msra.mxu0 0.0
    %2735 = vmatprep.subr.mxu0 0.0
    %2736 = vmatpush1.msra.mxu0 0.0
    %2737 = vmatprep.subr.mxu0 0.0
    %2738 = vmatpush1.msra.mxu0 0.0
    %2739 = vmatprep.subr.mxu0 0.0
    %2740 = vmatpush1.msra.mxu0 0.0
    %2741 = vmatprep.subr.mxu0 0.0
    %2742 = vmatpush1.msra.mxu0 0.0
    %2743 = vmatprep.subr.mxu0 0.0
    %2744 = vmatpush1.msra.mxu0 0.0
    %2745 = vmatprep.subr.mxu0 0.0
    %2746 = vmatpush1.msra.mxu0 0.0
    %2747 = vmatprep.subr.mxu0 0.0
    %2748 = vmatpush1.msra.mxu0 0.0
    %2749 = vmatprep.subr.mxu0 0.0
    %2750 = vmatpush1.msra.mxu0 0.0
    %2751 = vmatprep.subr.mxu0 0.0
    %2752 = vmatpush1.msra.mxu0 0.0
    %2753 = vmatprep.subr.mxu0 0.0
    %2754 = vmatpush1.msra.mxu0 0.0
    %2755 = vmatprep.subr.mxu0 0.0
    %2756 = vmatpush1.msra.mxu0 0.0
    %2757 = vmatprep.subr.mxu0 0.0
    %2758 = vmatpush1.msra.mxu0 0.0
    %2759 = vmatprep.mubr.f32.mxu0 0.0
    %2760 = vmatmul.mubr.f32.gmra.mrb[0].mxu0 %v463
    %v2761 = vpop.f32.mrb[0].mxu0
    %v2762 = vadd.f32 0.0, %v2761
    %v2763 = vpop.f32.mrb[0].mxu0
    %v2764 = vadd.f32 0.0, %v2763
    %2765 = vdwg.mxu0
    %2766 = vmatprep.subr.mxu0 %v2614
    %2767 = vmatpush1.msra.mxu0 %v2613
    %2768 = vmatprep.subr.mxu0 %v2621
    %2769 = vmatpush1.msra.mxu0 %v2620
    %2770 = vmatprep.subr.mxu0 %v2628
    %2771 = vmatpush1.msra.mxu0 %v2627
    %2772 = vmatprep.subr.mxu0 %v2635
    %2773 = vmatpush1.msra.mxu0 %v2634
    %2774 = vmatprep.subr.mxu0 %v2642
    %2775 = vmatpush1.msra.mxu0 %v2641
    %2776 = vmatprep.subr.mxu0 %v2649
    %2777 = vmatpush1.msra.mxu0 %v2648
    %2778 = vmatprep.subr.mxu0 %v2656
    %2779 = vmatpush1.msra.mxu0 %v2655
    %2780 = vmatprep.subr.mxu0 %v2663
    %2781 = vmatpush1.msra.mxu0 %v2662
    %2782 = vmatprep.subr.mxu0 %v2684
    %2783 = vmatpush1.msra.mxu0 %v2681
    %2784 = vmatprep.subr.mxu0 0.0
    %2785 = vmatpush1.msra.mxu0 0.0
    %2786 = vmatprep.subr.mxu0 0.0
    %2787 = vmatpush1.msra.mxu0 0.0
    %2788 = vmatprep.subr.mxu0 0.0
    %2789 = vmatpush1.msra.mxu0 0.0
    %2790 = vmatprep.subr.mxu0 0.0
    %2791 = vmatpush1.msra.mxu0 0.0
    %2792 = vmatprep.subr.mxu0 0.0
    %2793 = vmatpush1.msra.mxu0 0.0
    %2794 = vmatprep.subr.mxu0 0.0
    %2795 = vmatpush1.msra.mxu0 0.0
    %2796 = vmatprep.subr.mxu0 0.0
    %2797 = vmatpush1.msra.mxu0 0.0
    %2798 = vmatprep.subr.mxu0 0.0
    %2799 = vmatpush1.msra.mxu0 0.0
    %2800 = vmatprep.subr.mxu0 0.0
    %2801 = vmatpush1.msra.mxu0 0.0
    %2802 = vmatprep.subr.mxu0 0.0
    %2803 = vmatpush1.msra.mxu0 0.0
    %2804 = vmatprep.subr.mxu0 0.0
    %2805 = vmatpush1.msra.mxu0 0.0
    %2806 = vmatprep.subr.mxu0 0.0
    %2807 = vmatpush1.msra.mxu0 0.0
    %2808 = vmatprep.subr.mxu0 0.0
    %2809 = vmatpush1.msra.mxu0 0.0
    %2810 = vmatprep.subr.mxu0 0.0
    %2811 = vmatpush1.msra.mxu0 0.0
    %2812 = vmatprep.subr.mxu0 0.0
    %2813 = vmatpush1.msra.mxu0 0.0
    %2814 = vmatprep.subr.mxu0 0.0
    %2815 = vmatpush1.msra.mxu0 0.0
    %2816 = vmatprep.subr.mxu0 0.0
    %2817 = vmatpush1.msra.mxu0 0.0
    %2818 = vmatprep.subr.mxu0 0.0
    %2819 = vmatpush1.msra.mxu0 0.0
    %2820 = vmatprep.subr.mxu0 0.0
    %2821 = vmatpush1.msra.mxu0 0.0
    %2822 = vmatprep.subr.mxu0 0.0
    %2823 = vmatpush1.msra.mxu0 0.0
    %2824 = vmatprep.subr.mxu0 0.0
    %2825 = vmatpush1.msra.mxu0 0.0
    %2826 = vmatprep.subr.mxu0 0.0
    %2827 = vmatpush1.msra.mxu0 0.0
    %2828 = vmatprep.subr.mxu0 0.0
    %2829 = vmatpush1.msra.mxu0 0.0
    %2830 = vmatprep.mubr.f32.mxu0 0.0
    %2831 = vmatmul.mubr.f32.gmra.mrb[0].mxu0 %v463
    %v2832 = vpop.f32.mrb[0].mxu0
    %v2833 = vadd.f32 0.0, %v2832
    %v2834 = vpop.f32.mrb[0].mxu0
    %v2835 = vadd.f32 0.0, %v2834
    %2836 = vdwg.mxu0
    %2837 = vmatprep.subr.mxu0 %v2616
    %2838 = vmatpush1.msra.mxu0 %v2615
    %2839 = vmatprep.subr.mxu0 %v2623
    %2840 = vmatpush1.msra.mxu0 %v2622
    %2841 = vmatprep.subr.mxu0 %v2630
    %2842 = vmatpush1.msra.mxu0 %v2629
    %2843 = vmatprep.subr.mxu0 %v2637
    %2844 = vmatpush1.msra.mxu0 %v2636
    %2845 = vmatprep.subr.mxu0 %v2644
    %2846 = vmatpush1.msra.mxu0 %v2643
    %2847 = vmatprep.subr.mxu0 %v2651
    %2848 = vmatpush1.msra.mxu0 %v2650
    %2849 = vmatprep.subr.mxu0 %v2658
    %2850 = vmatpush1.msra.mxu0 %v2657
    %2851 = vmatprep.subr.mxu0 %v2665
    %2852 = vmatpush1.msra.mxu0 %v2664
    %2853 = vmatprep.subr.mxu0 %v2690
    %2854 = vmatpush1.msra.mxu0 %v2687
    %2855 = vmatprep.subr.mxu0 0.0
    %2856 = vmatpush1.msra.mxu0 0.0
    %2857 = vmatprep.subr.mxu0 0.0
    %2858 = vmatpush1.msra.mxu0 0.0
    %2859 = vmatprep.subr.mxu0 0.0
    %2860 = vmatpush1.msra.mxu0 0.0
    %2861 = vmatprep.subr.mxu0 0.0
    %2862 = vmatpush1.msra.mxu0 0.0
    %2863 = vmatprep.subr.mxu0 0.0
    %2864 = vmatpush1.msra.mxu0 0.0
    %2865 = vmatprep.subr.mxu0 0.0
    %2866 = vmatpush1.msra.mxu0 0.0
    %2867 = vmatprep.subr.mxu0 0.0
    %2868 = vmatpush1.msra.mxu0 0.0
    %2869 = vmatprep.subr.mxu0 0.0
    %2870 = vmatpush1.msra.mxu0 0.0
    %2871 = vmatprep.subr.mxu0 0.0
    %2872 = vmatpush1.msra.mxu0 0.0
    %2873 = vmatprep.subr.mxu0 0.0
    %2874 = vmatpush1.msra.mxu0 0.0
    %2875 = vmatprep.subr.mxu0 0.0
    %2876 = vmatpush1.msra.mxu0 0.0
    %2877 = vmatprep.subr.mxu0 0.0
    %2878 = vmatpush1.msra.mxu0 0.0
    %2879 = vmatprep.subr.mxu0 0.0
    %2880 = vmatpush1.msra.mxu0 0.0
    %2881 = vmatprep.subr.mxu0 0.0
    %2882 = vmatpush1.msra.mxu0 0.0
    %2883 = vmatprep.subr.mxu0 0.0
    %2884 = vmatpush1.msra.mxu0 0.0
    %2885 = vmatprep.subr.mxu0 0.0
    %2886 = vmatpush1.msra.mxu0 0.0
    %2887 = vmatprep.subr.mxu0 0.0
    %2888 = vmatpush1.msra.mxu0 0.0
    %2889 = vmatprep.subr.mxu0 0.0
    %2890 = vmatpush1.msra.mxu0 0.0
    %2891 = vmatprep.subr.mxu0 0.0
    %2892 = vmatpush1.msra.mxu0 0.0
    %2893 = vmatprep.subr.mxu0 0.0
    %2894 = vmatpush1.msra.mxu0 0.0
    %2895 = vmatprep.subr.mxu0 0.0
    %2896 = vmatpush1.msra.mxu0 0.0
    %2897 = vmatprep.subr.mxu0 0.0
    %2898 = vmatpush1.msra.mxu0 0.0
    %2899 = vmatprep.subr.mxu0 0.0
    %2900 = vmatpush1.msra.mxu0 0.0
    %2901 = vmatprep.mubr.f32.mxu0 0.0
    %2902 = vmatmul.mubr.f32.gmra.mrb[0].mxu0 %v463
    %v2903 = vpop.f32.mrb[0].mxu0
    %v2904 = vadd.f32 0.0, %v2903
    %v2905 = vpop.f32.mrb[0].mxu0
    %v2906 = vadd.f32 0.0, %v2905
    %2907 = vdwg.mxu0
    %2908 = vmatprep.subr.mxu0 0.0
    %2909 = vmatpush1.msra.mxu0 %v2617
    %2910 = vmatprep.subr.mxu0 0.0
    %2911 = vmatpush1.msra.mxu0 %v2624
    %2912 = vmatprep.subr.mxu0 0.0
    %2913 = vmatpush1.msra.mxu0 %v2631
    %2914 = vmatprep.subr.mxu0 0.0
    %2915 = vmatpush1.msra.mxu0 %v2638
    %2916 = vmatprep.subr.mxu0 0.0
    %2917 = vmatpush1.msra.mxu0 %v2645
    %2918 = vmatprep.subr.mxu0 0.0
    %2919 = vmatpush1.msra.mxu0 %v2652
    %2920 = vmatprep.subr.mxu0 0.0
    %2921 = vmatpush1.msra.mxu0 %v2659
    %2922 = vmatprep.subr.mxu0 0.0
    %2923 = vmatpush1.msra.mxu0 %v2666
    %2924 = vmatprep.subr.mxu0 0.0
    %2925 = vmatpush1.msra.mxu0 %v2693
    %2926 = vmatprep.subr.mxu0 0.0
    %2927 = vmatpush1.msra.mxu0 0.0
    %2928 = vmatprep.subr.mxu0 0.0
    %2929 = vmatpush1.msra.mxu0 0.0
    %2930 = vmatprep.subr.mxu0 0.0
    %2931 = vmatpush1.msra.mxu0 0.0
    %2932 = vmatprep.subr.mxu0 0.0
    %2933 = vmatpush1.msra.mxu0 0.0
    %2934 = vmatprep.subr.mxu0 0.0
    %2935 = vmatpush1.msra.mxu0 0.0
    %2936 = vmatprep.subr.mxu0 0.0
    %2937 = vmatpush1.msra.mxu0 0.0
    %2938 = vmatprep.subr.mxu0 0.0
    %2939 = vmatpush1.msra.mxu0 0.0
    %2940 = vmatprep.subr.mxu0 0.0
    %2941 = vmatpush1.msra.mxu0 0.0
    %2942 = vmatprep.subr.mxu0 0.0
    %2943 = vmatpush1.msra.mxu0 0.0
    %2944 = vmatprep.subr.mxu0 0.0
    %2945 = vmatpush1.msra.mxu0 0.0
    %2946 = vmatprep.subr.mxu0 0.0
    %2947 = vmatpush1.msra.mxu0 0.0
    %2948 = vmatprep.subr.mxu0 0.0
    %2949 = vmatpush1.msra.mxu0 0.0
    %2950 = vmatprep.subr.mxu0 0.0
    %2951 = vmatpush1.msra.mxu0 0.0
    %2952 = vmatprep.subr.mxu0 0.0
    %2953 = vmatpush1.msra.mxu0 0.0
    %2954 = vmatprep.subr.mxu0 0.0
    %2955 = vmatpush1.msra.mxu0 0.0
    %2956 = vmatprep.subr.mxu0 0.0
    %2957 = vmatpush1.msra.mxu0 0.0
    %2958 = vmatprep.subr.mxu0 0.0
    %2959 = vmatpush1.msra.mxu0 0.0
    %2960 = vmatprep.subr.mxu0 0.0
    %2961 = vmatpush1.msra.mxu0 0.0
    %2962 = vmatprep.subr.mxu0 0.0
    %2963 = vmatpush1.msra.mxu0 0.0
    %2964 = vmatprep.subr.mxu0 0.0
    %2965 = vmatpush1.msra.mxu0 0.0
    %2966 = vmatprep.subr.mxu0 0.0
    %2967 = vmatpush1.msra.mxu0 0.0
    %2968 = vmatprep.subr.mxu0 0.0
    %2969 = vmatpush1.msra.mxu0 0.0
    %2970 = vmatprep.subr.mxu0 0.0
    %2971 = vmatpush1.msra.mxu0 0.0
    %2972 = vmatprep.mubr.f32.mxu0 0.0
    %2973 = vmatmul.mubr.f32.gmra.mrb[0].mxu0 %v463
    %v2974 = vpop.f32.mrb[0].mxu0
    %v2975 = vadd.f32 0.0, %v2974
    %v2976 = vpop.f32.mrb[0].mxu0
    %2977 = vdwg.mxu0
    %s2978 = scalar_lea.vmem %s2, 3528
    %v2979 = vld [vmem:[%s2978] sm:$0xff]
    %v2980 = vld [vmem:[%s2978 + $0x8] sm:$0xff]
    %v2981 = vld [vmem:[%s2978 + $0x10] sm:$0xff]
    %v2982 = vld [vmem:[%s2978 + $0x18] sm:$0xff]
    %v2983 = vld [vmem:[%s2978 + $0x20] sm:$0xff]
    %v2984 = vld [vmem:[%s2978 + $0x28] sm:$0xff]
    %v2985 = vld [vmem:[%s2978 + $0x30] sm:$0xff]
    %v2986 = vld [vmem:[%s2978 + $0x38] sm:$0xff]
    %v2987 = vld [vmem:[%s2978 + $0x40] sm:$0xff]
    %v2988 = vld [vmem:[%s2978 + $0x48] sm:$0xff]
    %v2989 = vld [vmem:[%s2978 + $0x50] sm:$0xff]
    %v2990 = vld [vmem:[%s2978 + $0x58] sm:$0xff]
    %v2991 = vld [vmem:[%s2978 + $0x60] sm:$0xff]
    %v2992 = vld [vmem:[%s2978 + $0x68] sm:$0xff]
    %v2993 = vld [vmem:[%s2978 + $0x70] sm:$0xff]
    %v2994 = vld [vmem:[%s2978 + $0x78] sm:$0xff]
    %v2995 = vld [vmem:[%s2978 + $0x80] sm:$0xff]
    %v2996 = vld [vmem:[%s2978 + $0x88] sm:$0xff]
    %v2997 = vld [vmem:[%s2978 + $0x90] sm:$0xff]
    %v2998 = vld [vmem:[%s2978 + $0x98] sm:$0xff]
    %v2999 = vld [vmem:[%s2978 + $0xa0] sm:$0xff]
    %v3000 = vld [vmem:[%s2978 + $0xa8] sm:$0xff]
    %v3001 = vld [vmem:[%s2978 + $0xb0] sm:$0xff]
    %v3002 = vld [vmem:[%s2978 + $0xb8] sm:$0xff]
    %v3003 = vld [vmem:[%s2978 + $0xc0] sm:$0xff]
    %v3004 = vld [vmem:[%s2978 + $0xc8] sm:$0xff]
    %v3005 = vld [vmem:[%s2978 + $0xd0] sm:$0xff]
    %v3006 = vld [vmem:[%s2978 + $0xd8] sm:$0xff]
    %v3007 = vld [vmem:[%s2978 + $0xe0] sm:$0xff]
    %v3008 = vld [vmem:[%s2978 + $0xe8] sm:$0xff]
    %v3009 = vld [vmem:[%s2978 + $0xf0] sm:$0xff]
    %v3010 = vld [vmem:[%s2978 + $0xf8] sm:$0xff]
    %v3011 = vld [vmem:[%s2978 + $0x100] sm:$0xff]
    %v3012 = vld [vmem:[%s2978 + $0x108] sm:$0xff]
    %v3013 = vld [vmem:[%s2978 + $0x110] sm:$0xff]
    %v3014 = vld [vmem:[%s2978 + $0x118] sm:$0xff]
    %v3015 = vld [vmem:[%s2978 + $0x120] sm:$0xff]
    %v3016 = vld [vmem:[%s2978 + $0x128] sm:$0xff]
    %v3017 = vld [vmem:[%s2978 + $0x130] sm:$0xff]
    %v3018 = vld [vmem:[%s2978 + $0x138] sm:$0xff]
    %v3019 = vld [vmem:[%s2978 + $0x140] sm:$0xff]
    %v3020 = vld [vmem:[%s2978 + $0x148] sm:$0xff]
    %v3021 = vld [vmem:[%s2978 + $0x150] sm:$0xff]
    %v3022 = vld [vmem:[%s2978 + $0x158] sm:$0xff]
    %v3023 = vld [vmem:[%s2978 + $0x160] sm:$0xff]
    %v3024 = vld [vmem:[%s2978 + $0x168] sm:$0xff]
    %v3025 = vld [vmem:[%s2978 + $0x170] sm:$0xff]
    %v3026 = vld [vmem:[%s2978 + $0x178] sm:$0xff]
    %v3027 = vld [vmem:[%s2978 + $0x180] sm:$0xff]
    %v3028 = vld [vmem:[%s2978 + $0x188] sm:$0xff]
    %v3029 = vld [vmem:[%s2978 + $0x190] sm:$0xff]
    %v3030 = vld [vmem:[%s2978 + $0x198] sm:$0xff]
    %v3031 = vld [vmem:[%s2978 + $0x1a0] sm:$0xff]
    %v3032 = vld [vmem:[%s2978 + $0x1a8] sm:$0xff]
    %v3033 = vld [vmem:[%s2978 + $0x1b0] sm:$0xff]
    %v3034 = vld [vmem:[%s2978 + $0x1b8] sm:$0xff]
    %v3035 = vld [vmem:[%s2978 + $0x1c0] sm:$0x1]
    %v3036 = vld [vmem:[%s2978 + $0x1c8] sm:$0x1]
    %v3037 = vld [vmem:[%s2978 + $0x1d0] sm:$0x1]
    %v3038 = vld [vmem:[%s2978 + $0x1d8] sm:$0x1]
    %v3039 = vld [vmem:[%s2978 + $0x1e0] sm:$0x1]
    %v3040 = vld [vmem:[%s2978 + $0x1e8] sm:$0x1]
    %v3041 = vld [vmem:[%s2978 + $0x1f0] sm:$0x1]
    %v3043 = vsel %vm465, %v3035, 0
    %v3046 = vsel %vm465, %v3036, 0
    %v3049 = vsel %vm465, %v3037, 0
    %v3052 = vsel %vm465, %v3038, 0
    %v3055 = vsel %vm465, %v3039, 0
    %v3058 = vsel %vm465, %v3040, 0
    %v3061 = vsel %vm465, %v3041, 0
    %3063 = vmatprep.subr.mxu0 %v2980
    %3064 = vmatpush1.msra.mxu0 %v2979
    %3065 = vmatprep.subr.mxu0 %v2987
    %3066 = vmatpush1.msra.mxu0 %v2986
    %3067 = vmatprep.subr.mxu0 %v2994
    %3068 = vmatpush1.msra.mxu0 %v2993
    %3069 = vmatprep.subr.mxu0 %v3001
    %3070 = vmatpush1.msra.mxu0 %v3000
    %3071 = vmatprep.subr.mxu0 %v3008
    %3072 = vmatpush1.msra.mxu0 %v3007
    %3073 = vmatprep.subr.mxu0 %v3015
    %3074 = vmatpush1.msra.mxu0 %v3014
    %3075 = vmatprep.subr.mxu0 %v3022
    %3076 = vmatpush1.msra.mxu0 %v3021
    %3077 = vmatprep.subr.mxu0 %v3029
    %3078 = vmatpush1.msra.mxu0 %v3028
    %3079 = vmatprep.subr.mxu0 %v3046
    %3080 = vmatpush1.msra.mxu0 %v3043
    %3081 = vmatprep.subr.mxu0 0.0
    %3082 = vmatpush1.msra.mxu0 0.0
    %3083 = vmatprep.subr.mxu0 0.0
    %3084 = vmatpush1.msra.mxu0 0.0
    %3085 = vmatprep.subr.mxu0 0.0
    %3086 = vmatpush1.msra.mxu0 0.0
    %3087 = vmatprep.subr.mxu0 0.0
    %3088 = vmatpush1.msra.mxu0 0.0
    %3089 = vmatprep.subr.mxu0 0.0
    %3090 = vmatpush1.msra.mxu0 0.0
    %3091 = vmatprep.subr.mxu0 0.0
    %3092 = vmatpush1.msra.mxu0 0.0
    %3093 = vmatprep.subr.mxu0 0.0
    %3094 = vmatpush1.msra.mxu0 0.0
    %3095 = vmatprep.subr.mxu0 0.0
    %3096 = vmatpush1.msra.mxu0 0.0
    %3097 = vmatprep.subr.mxu0 0.0
    %3098 = vmatpush1.msra.mxu0 0.0
    %3099 = vmatprep.subr.mxu0 0.0
    %3100 = vmatpush1.msra.mxu0 0.0
    %3101 = vmatprep.subr.mxu0 0.0
    %3102 = vmatpush1.msra.mxu0 0.0
    %3103 = vmatprep.subr.mxu0 0.0
    %3104 = vmatpush1.msra.mxu0 0.0
    %3105 = vmatprep.subr.mxu0 0.0
    %3106 = vmatpush1.msra.mxu0 0.0
    %3107 = vmatprep.subr.mxu0 0.0
    %3108 = vmatpush1.msra.mxu0 0.0
    %3109 = vmatprep.subr.mxu0 0.0
    %3110 = vmatpush1.msra.mxu0 0.0
    %3111 = vmatprep.subr.mxu0 0.0
    %3112 = vmatpush1.msra.mxu0 0.0
    %3113 = vmatprep.subr.mxu0 0.0
    %3114 = vmatpush1.msra.mxu0 0.0
    %3115 = vmatprep.subr.mxu0 0.0
    %3116 = vmatpush1.msra.mxu0 0.0
    %3117 = vmatprep.subr.mxu0 0.0
    %3118 = vmatpush1.msra.mxu0 0.0
    %3119 = vmatprep.subr.mxu0 0.0
    %3120 = vmatpush1.msra.mxu0 0.0
    %3121 = vmatprep.subr.mxu0 0.0
    %3122 = vmatpush1.msra.mxu0 0.0
    %3123 = vmatprep.subr.mxu0 0.0
    %3124 = vmatpush1.msra.mxu0 0.0
    %3125 = vmatprep.subr.mxu0 0.0
    %3126 = vmatpush1.msra.mxu0 0.0
    %3127 = vmatprep.mubr.f32.mxu0 0.0
    %3128 = vmatmul.mubr.f32.gmra.mrb[0].mxu0 %v463
    %v3129 = vpop.f32.mrb[0].mxu0
    %v3130 = vadd.f32 0.0, %v3129
    %v3131 = vpop.f32.mrb[0].mxu0
    %v3132 = vadd.f32 0.0, %v3131
    %3133 = vdwg.mxu0
    %3134 = vmatprep.subr.mxu0 %v2982
    %3135 = vmatpush1.msra.mxu0 %v2981
    %3136 = vmatprep.subr.mxu0 %v2989
    %3137 = vmatpush1.msra.mxu0 %v2988
    %3138 = vmatprep.subr.mxu0 %v2996
    %3139 = vmatpush1.msra.mxu0 %v2995
    %3140 = vmatprep.subr.mxu0 %v3003
    %3141 = vmatpush1.msra.mxu0 %v3002
    %3142 = vmatprep.subr.mxu0 %v3010
    %3143 = vmatpush1.msra.mxu0 %v3009
    %3144 = vmatprep.subr.mxu0 %v3017
    %3145 = vmatpush1.msra.mxu0 %v3016
    %3146 = vmatprep.subr.mxu0 %v3024
    %3147 = vmatpush1.msra.mxu0 %v3023
    %3148 = vmatprep.subr.mxu0 %v3031
    %3149 = vmatpush1.msra.mxu0 %v3030
    %3150 = vmatprep.subr.mxu0 %v3052
    %3151 = vmatpush1.msra.mxu0 %v3049
    %3152 = vmatprep.subr.mxu0 0.0
    %3153 = vmatpush1.msra.mxu0 0.0
    %3154 = vmatprep.subr.mxu0 0.0
    %3155 = vmatpush1.msra.mxu0 0.0
    %3156 = vmatprep.subr.mxu0 0.0
    %3157 = vmatpush1.msra.mxu0 0.0
    %3158 = vmatprep.subr.mxu0 0.0
    %3159 = vmatpush1.msra.mxu0 0.0
    %3160 = vmatprep.subr.mxu0 0.0
    %3161 = vmatpush1.msra.mxu0 0.0
    %3162 = vmatprep.subr.mxu0 0.0
    %3163 = vmatpush1.msra.mxu0 0.0
    %3164 = vmatprep.subr.mxu0 0.0
    %3165 = vmatpush1.msra.mxu0 0.0
    %3166 = vmatprep.subr.mxu0 0.0
    %3167 = vmatpush1.msra.mxu0 0.0
    %3168 = vmatprep.subr.mxu0 0.0
    %3169 = vmatpush1.msra.mxu0 0.0
    %3170 = vmatprep.subr.mxu0 0.0
    %3171 = vmatpush1.msra.mxu0 0.0
    %3172 = vmatprep.subr.mxu0 0.0
    %3173 = vmatpush1.msra.mxu0 0.0
    %3174 = vmatprep.subr.mxu0 0.0
    %3175 = vmatpush1.msra.mxu0 0.0
    %3176 = vmatprep.subr.mxu0 0.0
    %3177 = vmatpush1.msra.mxu0 0.0
    %3178 = vmatprep.subr.mxu0 0.0
    %3179 = vmatpush1.msra.mxu0 0.0
    %3180 = vmatprep.subr.mxu0 0.0
    %3181 = vmatpush1.msra.mxu0 0.0
    %3182 = vmatprep.subr.mxu0 0.0
    %3183 = vmatpush1.msra.mxu0 0.0
    %3184 = vmatprep.subr.mxu0 0.0
    %3185 = vmatpush1.msra.mxu0 0.0
    %3186 = vmatprep.subr.mxu0 0.0
    %3187 = vmatpush1.msra.mxu0 0.0
    %3188 = vmatprep.subr.mxu0 0.0
    %3189 = vmatpush1.msra.mxu0 0.0
    %3190 = vmatprep.subr.mxu0 0.0
    %3191 = vmatpush1.msra.mxu0 0.0
    %3192 = vmatprep.subr.mxu0 0.0
    %3193 = vmatpush1.msra.mxu0 0.0
    %3194 = vmatprep.subr.mxu0 0.0
    %3195 = vmatpush1.msra.mxu0 0.0
    %3196 = vmatprep.subr.mxu0 0.0
    %3197 = vmatpush1.msra.mxu0 0.0
    %3198 = vmatprep.mubr.f32.mxu0 0.0
    %3199 = vmatmul.mubr.f32.gmra.mrb[0].mxu0 %v463
    %v3200 = vpop.f32.mrb[0].mxu0
    %v3201 = vadd.f32 0.0, %v3200
    %v3202 = vpop.f32.mrb[0].mxu0
    %v3203 = vadd.f32 0.0, %v3202
    %3204 = vdwg.mxu0
    %3205 = vmatprep.subr.mxu0 %v2984
    %3206 = vmatpush1.msra.mxu0 %v2983
    %3207 = vmatprep.subr.mxu0 %v2991
    %3208 = vmatpush1.msra.mxu0 %v2990
    %3209 = vmatprep.subr.mxu0 %v2998
    %3210 = vmatpush1.msra.mxu0 %v2997
    %3211 = vmatprep.subr.mxu0 %v3005
    %3212 = vmatpush1.msra.mxu0 %v3004
    %3213 = vmatprep.subr.mxu0 %v3012
    %3214 = vmatpush1.msra.mxu0 %v3011
    %3215 = vmatprep.subr.mxu0 %v3019
    %3216 = vmatpush1.msra.mxu0 %v3018
    %3217 = vmatprep.subr.mxu0 %v3026
    %3218 = vmatpush1.msra.mxu0 %v3025
    %3219 = vmatprep.subr.mxu0 %v3033
    %3220 = vmatpush1.msra.mxu0 %v3032
    %3221 = vmatprep.subr.mxu0 %v3058
    %3222 = vmatpush1.msra.mxu0 %v3055
    %3223 = vmatprep.subr.mxu0 0.0
    %3224 = vmatpush1.msra.mxu0 0.0
    %3225 = vmatprep.subr.mxu0 0.0
    %3226 = vmatpush1.msra.mxu0 0.0
    %3227 = vmatprep.subr.mxu0 0.0
    %3228 = vmatpush1.msra.mxu0 0.0
    %3229 = vmatprep.subr.mxu0 0.0
    %3230 = vmatpush1.msra.mxu0 0.0
    %3231 = vmatprep.subr.mxu0 0.0
    %3232 = vmatpush1.msra.mxu0 0.0
    %3233 = vmatprep.subr.mxu0 0.0
    %3234 = vmatpush1.msra.mxu0 0.0
    %3235 = vmatprep.subr.mxu0 0.0
    %3236 = vmatpush1.msra.mxu0 0.0
    %3237 = vmatprep.subr.mxu0 0.0
    %3238 = vmatpush1.msra.mxu0 0.0
    %3239 = vmatprep.subr.mxu0 0.0
    %3240 = vmatpush1.msra.mxu0 0.0
    %3241 = vmatprep.subr.mxu0 0.0
    %3242 = vmatpush1.msra.mxu0 0.0
    %3243 = vmatprep.subr.mxu0 0.0
    %3244 = vmatpush1.msra.mxu0 0.0
    %3245 = vmatprep.subr.mxu0 0.0
    %3246 = vmatpush1.msra.mxu0 0.0
    %3247 = vmatprep.subr.mxu0 0.0
    %3248 = vmatpush1.msra.mxu0 0.0
    %3249 = vmatprep.subr.mxu0 0.0
    %3250 = vmatpush1.msra.mxu0 0.0
    %3251 = vmatprep.subr.mxu0 0.0
    %3252 = vmatpush1.msra.mxu0 0.0
    %3253 = vmatprep.subr.mxu0 0.0
    %3254 = vmatpush1.msra.mxu0 0.0
    %3255 = vmatprep.subr.mxu0 0.0
    %3256 = vmatpush1.msra.mxu0 0.0
    %3257 = vmatprep.subr.mxu0 0.0
    %3258 = vmatpush1.msra.mxu0 0.0
    %3259 = vmatprep.subr.mxu0 0.0
    %3260 = vmatpush1.msra.mxu0 0.0
    %3261 = vmatprep.subr.mxu0 0.0
    %3262 = vmatpush1.msra.mxu0 0.0
    %3263 = vmatprep.subr.mxu0 0.0
    %3264 = vmatpush1.msra.mxu0 0.0
    %3265 = vmatprep.subr.mxu0 0.0
    %3266 = vmatpush1.msra.mxu0 0.0
    %3267 = vmatprep.subr.mxu0 0.0
    %3268 = vmatpush1.msra.mxu0 0.0
    %3269 = vmatprep.mubr.f32.mxu0 0.0
    %3270 = vmatmul.mubr.f32.gmra.mrb[0].mxu0 %v463
    %v3271 = vpop.f32.mrb[0].mxu0
    %v3272 = vadd.f32 0.0, %v3271
    %v3273 = vpop.f32.mrb[0].mxu0
    %v3274 = vadd.f32 0.0, %v3273
    %3275 = vdwg.mxu0
    %3276 = vmatprep.subr.mxu0 0.0
    %3277 = vmatpush1.msra.mxu0 %v2985
    %3278 = vmatprep.subr.mxu0 0.0
    %3279 = vmatpush1.msra.mxu0 %v2992
    %3280 = vmatprep.subr.mxu0 0.0
    %3281 = vmatpush1.msra.mxu0 %v2999
    %3282 = vmatprep.subr.mxu0 0.0
    %3283 = vmatpush1.msra.mxu0 %v3006
    %3284 = vmatprep.subr.mxu0 0.0
    %3285 = vmatpush1.msra.mxu0 %v3013
    %3286 = vmatprep.subr.mxu0 0.0
    %3287 = vmatpush1.msra.mxu0 %v3020
    %3288 = vmatprep.subr.mxu0 0.0
    %3289 = vmatpush1.msra.mxu0 %v3027
    %3290 = vmatprep.subr.mxu0 0.0
    %3291 = vmatpush1.msra.mxu0 %v3034
    %3292 = vmatprep.subr.mxu0 0.0
    %3293 = vmatpush1.msra.mxu0 %v3061
    %3294 = vmatprep.subr.mxu0 0.0
    %3295 = vmatpush1.msra.mxu0 0.0
    %3296 = vmatprep.subr.mxu0 0.0
    %3297 = vmatpush1.msra.mxu0 0.0
    %3298 = vmatprep.subr.mxu0 0.0
    %3299 = vmatpush1.msra.mxu0 0.0
    %3300 = vmatprep.subr.mxu0 0.0
    %3301 = vmatpush1.msra.mxu0 0.0
    %3302 = vmatprep.subr.mxu0 0.0
    %3303 = vmatpush1.msra.mxu0 0.0
    %3304 = vmatprep.subr.mxu0 0.0
    %3305 = vmatpush1.msra.mxu0 0.0
    %3306 = vmatprep.subr.mxu0 0.0
    %3307 = vmatpush1.msra.mxu0 0.0
    %3308 = vmatprep.subr.mxu0 0.0
    %3309 = vmatpush1.msra.mxu0 0.0
    %3310 = vmatprep.subr.mxu0 0.0
    %3311 = vmatpush1.msra.mxu0 0.0
    %3312 = vmatprep.subr.mxu0 0.0
    %3313 = vmatpush1.msra.mxu0 0.0
    %3314 = vmatprep.subr.mxu0 0.0
    %3315 = vmatpush1.msra.mxu0 0.0
    %3316 = vmatprep.subr.mxu0 0.0
    %3317 = vmatpush1.msra.mxu0 0.0
    %3318 = vmatprep.subr.mxu0 0.0
    %3319 = vmatpush1.msra.mxu0 0.0
    %3320 = vmatprep.subr.mxu0 0.0
    %3321 = vmatpush1.msra.mxu0 0.0
    %3322 = vmatprep.subr.mxu0 0.0
    %3323 = vmatpush1.msra.mxu0 0.0
    %3324 = vmatprep.subr.mxu0 0.0
    %3325 = vmatpush1.msra.mxu0 0.0
    %3326 = vmatprep.subr.mxu0 0.0
    %3327 = vmatpush1.msra.mxu0 0.0
    %3328 = vmatprep.subr.mxu0 0.0
    %3329 = vmatpush1.msra.mxu0 0.0
    %3330 = vmatprep.subr.mxu0 0.0
    %3331 = vmatpush1.msra.mxu0 0.0
    %3332 = vmatprep.subr.mxu0 0.0
    %3333 = vmatpush1.msra.mxu0 0.0
    %3334 = vmatprep.subr.mxu0 0.0
    %3335 = vmatpush1.msra.mxu0 0.0
    %3336 = vmatprep.subr.mxu0 0.0
    %3337 = vmatpush1.msra.mxu0 0.0
    %3338 = vmatprep.subr.mxu0 0.0
    %3339 = vmatpush1.msra.mxu0 0.0
    %3340 = vmatprep.mubr.f32.mxu0 0.0
    %3341 = vmatmul.mubr.f32.gmra.mrb[0].mxu0 %v463
    %v3342 = vpop.f32.mrb[0].mxu0
    %v3343 = vadd.f32 0.0, %v3342
    %v3344 = vpop.f32.mrb[0].mxu0
    %3345 = vdwg.mxu0
    %v3353 = vrot.slane %v922, 7
    %v3354 = vrot.slane %v924, 7
    %v3355 = vrot.slane %v993, 7
    %v3356 = vrot.slane %v995, 7
    %v3357 = vrot.slane %v1064, 7
    %v3358 = vrot.slane %v1066, 7
    %v3359 = vrot.slane %v1135, 7
    %v3374 = vrot.slane %v1290, 6
    %v3375 = vrot.slane %v1292, 6
    %v3376 = vrot.slane %v1361, 6
    %v3377 = vrot.slane %v1363, 6
    %v3378 = vrot.slane %v1432, 6
    %v3379 = vrot.slane %v1434, 6
    %v3380 = vrot.slane %v1503, 6
    %v3395 = vrot.slane %v1658, 5
    %v3396 = vrot.slane %v1660, 5
    %v3397 = vrot.slane %v1729, 5
    %v3398 = vrot.slane %v1731, 5
    %v3399 = vrot.slane %v1800, 5
    %v3400 = vrot.slane %v1802, 5
    %v3401 = vrot.slane %v1871, 5
    %v3416 = vrot.slane %v2026, 4
    %v3417 = vrot.slane %v2028, 4
    %v3418 = vrot.slane %v2097, 4
    %v3419 = vrot.slane %v2099, 4
    %v3420 = vrot.slane %v2168, 4
    %v3421 = vrot.slane %v2170, 4
    %v3422 = vrot.slane %v2239, 4
    %v3437 = vrot.slane %v2394, 3
    %v3438 = vrot.slane %v2396, 3
    %v3439 = vrot.slane %v2465, 3
    %v3440 = vrot.slane %v2467, 3
    %v3441 = vrot.slane %v2536, 3
    %v3442 = vrot.slane %v2538, 3
    %v3443 = vrot.slane %v2607, 3
    %v3458 = vrot.slane %v2762, 2
    %v3459 = vrot.slane %v2764, 2
    %v3460 = vrot.slane %v2833, 2
    %v3461 = vrot.slane %v2835, 2
    %v3462 = vrot.slane %v2904, 2
    %v3463 = vrot.slane %v2906, 2
    %v3464 = vrot.slane %v2975, 2
    %v3479 = vrot.slane %v3130, 1
    %v3480 = vrot.slane %v3132, 1
    %v3481 = vrot.slane %v3201, 1
    %v3482 = vrot.slane %v3203, 1
    %v3483 = vrot.slane %v3272, 1
    %v3484 = vrot.slane %v3274, 1
    %v3485 = vrot.slane %v3343, 1
    %v3493 = vsel %vm465, %v554, %v3353
    %v3494 = vsel %vm465, %v556, %v3354
    %v3495 = vsel %vm465, %v625, %v3355
    %v3496 = vsel %vm465, %v627, %v3356
    %v3497 = vsel %vm465, %v696, %v3357
    %v3498 = vsel %vm465, %v698, %v3358
    %v3499 = vsel %vm465, %v767, %v3359
    %vm3500 = vcmask 1041408
    %v3501 = vsel %vm3500, %v3493, %v3374
    %v3502 = vsel %vm3500, %v3494, %v3375
    %v3503 = vsel %vm3500, %v3495, %v3376
    %v3504 = vsel %vm3500, %v3496, %v3377
    %v3505 = vsel %vm3500, %v3497, %v3378
    %v3506 = vsel %vm3500, %v3498, %v3379
    %v3507 = vsel %vm3500, %v3499, %v3380
    %vm3508 = vcmask 1042432
    %v3509 = vsel %vm3508, %v3501, %v3395
    %v3510 = vsel %vm3508, %v3502, %v3396
    %v3511 = vsel %vm3508, %v3503, %v3397
    %v3512 = vsel %vm3508, %v3504, %v3398
    %v3513 = vsel %vm3508, %v3505, %v3399
    %v3514 = vsel %vm3508, %v3506, %v3400
    %v3515 = vsel %vm3508, %v3507, %v3401
    %vm3516 = vcmask 1043456
    %v3517 = vsel %vm3516, %v3509, %v3416
    %v3518 = vsel %vm3516, %v3510, %v3417
    %v3519 = vsel %vm3516, %v3511, %v3418
    %v3520 = vsel %vm3516, %v3512, %v3419
    %v3521 = vsel %vm3516, %v3513, %v3420
    %v3522 = vsel %vm3516, %v3514, %v3421
    %v3523 = vsel %vm3516, %v3515, %v3422
    %vm3524 = vcmask 1044480
    %v3525 = vsel %vm3524, %v3517, %v3437
    %v3526 = vsel %vm3524, %v3518, %v3438
    %v3527 = vsel %vm3524, %v3519, %v3439
    %v3528 = vsel %vm3524, %v3520, %v3440
    %v3529 = vsel %vm3524, %v3521, %v3441
    %v3530 = vsel %vm3524, %v3522, %v3442
    %v3531 = vsel %vm3524, %v3523, %v3443
    %vm3532 = vcmask 1045504
    %v3533 = vsel %vm3532, %v3525, %v3458
    %v3534 = vsel %vm3532, %v3526, %v3459
    %v3535 = vsel %vm3532, %v3527, %v3460
    %v3536 = vsel %vm3532, %v3528, %v3461
    %v3537 = vsel %vm3532, %v3529, %v3462
    %v3538 = vsel %vm3532, %v3530, %v3463
    %v3539 = vsel %vm3532, %v3531, %v3464
    %vm3540 = vcmask 1046528
    %v3541 = vsel %vm3540, %v3533, %v3479
    %v3542 = vsel %vm3540, %v3534, %v3480
    %v3543 = vsel %vm3540, %v3535, %v3481
    %v3544 = vsel %vm3540, %v3536, %v3482
    %v3545 = vsel %vm3540, %v3537, %v3483
    %v3546 = vsel %vm3540, %v3538, %v3484
    %v3547 = vsel %vm3540, %v3539, %v3485
    %v3548 = vcombine.high %v15, %v15
    %v3550 = vunpack.c.l.s4 1983009808
    %v3551 = vunpack.c.0.s8 %v3550
    %v3552 = vlaneseq
    %v3553 = vshrl.u32 %v3552, 7
    %v3554 = vsub.s32 %v3551, %v3553
    %v3555 = vrot.slane %v15, %v3554
    %v3557 = vunpack.c.l.s4 1983009808
    %v3558 = vunpack.c.0.s8 %v3557
    %v3559 = vlaneseq
    %v3560 = vshrl.u32 %v3559, 7
    %v3561 = vsub.s32 %v3558, %v3560
    %v3562 = vrot.slane %v3548, %v3561
    %v3563 = vcombine.high %v3555, %v3555
    %v3564 = vcombine.high %v3562, %v3562
    %v3565 = vcombine.high %v16, %v16
    %v3567 = vunpack.c.l.s4 1983009808
    %v3568 = vunpack.c.0.s8 %v3567
    %v3569 = vlaneseq
    %v3570 = vshrl.u32 %v3569, 7
    %v3571 = vsub.s32 %v3568, %v3570
    %v3572 = vrot.slane %v16, %v3571
    %v3574 = vunpack.c.l.s4 1983009808
    %v3575 = vunpack.c.0.s8 %v3574
    %v3576 = vlaneseq
    %v3577 = vshrl.u32 %v3576, 7
    %v3578 = vsub.s32 %v3575, %v3577
    %v3579 = vrot.slane %v3565, %v3578
    %v3580 = vcombine.high %v3572, %v3572
    %3588 = vmatprep.subr.mxu0 %v3542
    %3589 = vmatpush1.xpose.msra.mxu0 %v3541
    %3590 = vmatprep.subr.mxu0 0.0
    %3591 = vmatpush1.xpose.msra.mxu0 0.0
    %3592 = vmatprep.subr.mxu0 0.0
    %3593 = vmatpush1.xpose.msra.mxu0 0.0
    %3594 = vmatprep.subr.mxu0 0.0
    %3595 = vmatpush1.xpose.msra.mxu0 0.0
    %3596 = vmatprep.subr.mxu0 0.0
    %3597 = vmatpush1.xpose.msra.mxu0 0.0
    %3598 = vmatprep.subr.mxu0 0.0
    %3599 = vmatpush1.xpose.msra.mxu0 0.0
    %3600 = vmatprep.subr.mxu0 0.0
    %3601 = vmatpush1.xpose.msra.mxu0 0.0
    %3602 = vmatprep.subr.mxu0 0.0
    %3603 = vmatpush1.xpose.msra.mxu0 0.0
    %3604 = vmatprep.subr.mxu0 0.0
    %3605 = vmatpush1.xpose.msra.mxu0 0.0
    %3606 = vmatprep.subr.mxu0 0.0
    %3607 = vmatpush1.xpose.msra.mxu0 0.0
    %3608 = vmatprep.subr.mxu0 0.0
    %3609 = vmatpush1.xpose.msra.mxu0 0.0
    %3610 = vmatprep.subr.mxu0 0.0
    %3611 = vmatpush1.xpose.msra.mxu0 0.0
    %3612 = vmatprep.subr.mxu0 0.0
    %3613 = vmatpush1.xpose.msra.mxu0 0.0
    %3614 = vmatprep.subr.mxu0 0.0
    %3615 = vmatpush1.xpose.msra.mxu0 0.0
    %3616 = vmatprep.subr.mxu0 0.0
    %3617 = vmatpush1.xpose.msra.mxu0 0.0
    %3618 = vmatprep.subr.mxu0 0.0
    %3619 = vmatpush1.xpose.msra.mxu0 0.0
    %3620 = vmatprep.subr.mxu0 0.0
    %3621 = vmatpush1.xpose.msra.mxu0 0.0
    %3622 = vmatprep.subr.mxu0 0.0
    %3623 = vmatpush1.xpose.msra.mxu0 0.0
    %3624 = vmatprep.subr.mxu0 0.0
    %3625 = vmatpush1.xpose.msra.mxu0 0.0
    %3626 = vmatprep.subr.mxu0 0.0
    %3627 = vmatpush1.xpose.msra.mxu0 0.0
    %3628 = vmatprep.subr.mxu0 0.0
    %3629 = vmatpush1.xpose.msra.mxu0 0.0
    %3630 = vmatprep.subr.mxu0 0.0
    %3631 = vmatpush1.xpose.msra.mxu0 0.0
    %3632 = vmatprep.subr.mxu0 0.0
    %3633 = vmatpush1.xpose.msra.mxu0 0.0
    %3634 = vmatprep.subr.mxu0 0.0
    %3635 = vmatpush1.xpose.msra.mxu0 0.0
    %3636 = vmatprep.subr.mxu0 0.0
    %3637 = vmatpush1.xpose.msra.mxu0 0.0
    %3638 = vmatprep.subr.mxu0 0.0
    %3639 = vmatpush1.xpose.msra.mxu0 0.0
    %3640 = vmatprep.subr.mxu0 0.0
    %3641 = vmatpush1.xpose.msra.mxu0 0.0
    %3642 = vmatprep.subr.mxu0 0.0
    %3643 = vmatpush1.xpose.msra.mxu0 0.0
    %3644 = vmatprep.subr.mxu0 0.0
    %3645 = vmatpush1.xpose.msra.mxu0 0.0
    %3646 = vmatprep.subr.mxu0 0.0
    %3647 = vmatpush1.xpose.msra.mxu0 0.0
    %3648 = vmatprep.subr.mxu0 0.0
    %3649 = vmatpush1.xpose.msra.mxu0 0.0
    %3650 = vmatprep.subr.mxu0 0.0
    %3651 = vmatpush1.xpose.msra.mxu0 0.0
    %3652 = vmatprep.mubr.f32.mxu0 %v3563
    %3653 = vmatmul.mubr.f32.gmra.mrb[0].mxu0 %v3555
    %v3654 = vpop.f32.mrb[0].mxu0
    %v3655 = vadd.f32 0.0, %v3654
    %v3656 = vpop.f32.mrb[0].mxu0
    %3657 = vdwg.mxu0
    %3658 = vmatprep.subr.mxu0 %v3544
    %3659 = vmatpush1.xpose.msra.mxu0 %v3543
    %3660 = vmatprep.subr.mxu0 0.0
    %3661 = vmatpush1.xpose.msra.mxu0 0.0
    %3662 = vmatprep.subr.mxu0 0.0
    %3663 = vmatpush1.xpose.msra.mxu0 0.0
    %3664 = vmatprep.subr.mxu0 0.0
    %3665 = vmatpush1.xpose.msra.mxu0 0.0
    %3666 = vmatprep.subr.mxu0 0.0
    %3667 = vmatpush1.xpose.msra.mxu0 0.0
    %3668 = vmatprep.subr.mxu0 0.0
    %3669 = vmatpush1.xpose.msra.mxu0 0.0
    %3670 = vmatprep.subr.mxu0 0.0
    %3671 = vmatpush1.xpose.msra.mxu0 0.0
    %3672 = vmatprep.subr.mxu0 0.0
    %3673 = vmatpush1.xpose.msra.mxu0 0.0
    %3674 = vmatprep.subr.mxu0 0.0
    %3675 = vmatpush1.xpose.msra.mxu0 0.0
    %3676 = vmatprep.subr.mxu0 0.0
    %3677 = vmatpush1.xpose.msra.mxu0 0.0
    %3678 = vmatprep.subr.mxu0 0.0
    %3679 = vmatpush1.xpose.msra.mxu0 0.0
    %3680 = vmatprep.subr.mxu0 0.0
    %3681 = vmatpush1.xpose.msra.mxu0 0.0
    %3682 = vmatprep.subr.mxu0 0.0
    %3683 = vmatpush1.xpose.msra.mxu0 0.0
    %3684 = vmatprep.subr.mxu0 0.0
    %3685 = vmatpush1.xpose.msra.mxu0 0.0
    %3686 = vmatprep.subr.mxu0 0.0
    %3687 = vmatpush1.xpose.msra.mxu0 0.0
    %3688 = vmatprep.subr.mxu0 0.0
    %3689 = vmatpush1.xpose.msra.mxu0 0.0
    %3690 = vmatprep.subr.mxu0 0.0
    %3691 = vmatpush1.xpose.msra.mxu0 0.0
    %3692 = vmatprep.subr.mxu0 0.0
    %3693 = vmatpush1.xpose.msra.mxu0 0.0
    %3694 = vmatprep.subr.mxu0 0.0
    %3695 = vmatpush1.xpose.msra.mxu0 0.0
    %3696 = vmatprep.subr.mxu0 0.0
    %3697 = vmatpush1.xpose.msra.mxu0 0.0
    %3698 = vmatprep.subr.mxu0 0.0
    %3699 = vmatpush1.xpose.msra.mxu0 0.0
    %3700 = vmatprep.subr.mxu0 0.0
    %3701 = vmatpush1.xpose.msra.mxu0 0.0
    %3702 = vmatprep.subr.mxu0 0.0
    %3703 = vmatpush1.xpose.msra.mxu0 0.0
    %3704 = vmatprep.subr.mxu0 0.0
    %3705 = vmatpush1.xpose.msra.mxu0 0.0
    %3706 = vmatprep.subr.mxu0 0.0
    %3707 = vmatpush1.xpose.msra.mxu0 0.0
    %3708 = vmatprep.subr.mxu0 0.0
    %3709 = vmatpush1.xpose.msra.mxu0 0.0
    %3710 = vmatprep.subr.mxu0 0.0
    %3711 = vmatpush1.xpose.msra.mxu0 0.0
    %3712 = vmatprep.subr.mxu0 0.0
    %3713 = vmatpush1.xpose.msra.mxu0 0.0
    %3714 = vmatprep.subr.mxu0 0.0
    %3715 = vmatpush1.xpose.msra.mxu0 0.0
    %3716 = vmatprep.subr.mxu0 0.0
    %3717 = vmatpush1.xpose.msra.mxu0 0.0
    %3718 = vmatprep.subr.mxu0 0.0
    %3719 = vmatpush1.xpose.msra.mxu0 0.0
    %3720 = vmatprep.subr.mxu0 0.0
    %3721 = vmatpush1.xpose.msra.mxu0 0.0
    %3722 = vmatprep.mubr.f32.mxu0 %v3564
    %3723 = vmatmul.mubr.f32.gmra.mrb[0].mxu0 %v3562
    %v3724 = vpop.f32.mrb[0].mxu0
    %v3725 = vadd.f32 %v3655, %v3724
    %v3726 = vpop.f32.mrb[0].mxu0
    %3727 = vdwg.mxu0
    %3728 = vmatprep.subr.mxu0 %v3546
    %3729 = vmatpush1.xpose.msra.mxu0 %v3545
    %3730 = vmatprep.subr.mxu0 0.0
    %3731 = vmatpush1.xpose.msra.mxu0 0.0
    %3732 = vmatprep.subr.mxu0 0.0
    %3733 = vmatpush1.xpose.msra.mxu0 0.0
    %3734 = vmatprep.subr.mxu0 0.0
    %3735 = vmatpush1.xpose.msra.mxu0 0.0
    %3736 = vmatprep.subr.mxu0 0.0
    %3737 = vmatpush1.xpose.msra.mxu0 0.0
    %3738 = vmatprep.subr.mxu0 0.0
    %3739 = vmatpush1.xpose.msra.mxu0 0.0
    %3740 = vmatprep.subr.mxu0 0.0
    %3741 = vmatpush1.xpose.msra.mxu0 0.0
    %3742 = vmatprep.subr.mxu0 0.0
    %3743 = vmatpush1.xpose.msra.mxu0 0.0
    %3744 = vmatprep.subr.mxu0 0.0
    %3745 = vmatpush1.xpose.msra.mxu0 0.0
    %3746 = vmatprep.subr.mxu0 0.0
    %3747 = vmatpush1.xpose.msra.mxu0 0.0
    %3748 = vmatprep.subr.mxu0 0.0
    %3749 = vmatpush1.xpose.msra.mxu0 0.0
    %3750 = vmatprep.subr.mxu0 0.0
    %3751 = vmatpush1.xpose.msra.mxu0 0.0
    %3752 = vmatprep.subr.mxu0 0.0
    %3753 = vmatpush1.xpose.msra.mxu0 0.0
    %3754 = vmatprep.subr.mxu0 0.0
    %3755 = vmatpush1.xpose.msra.mxu0 0.0
    %3756 = vmatprep.subr.mxu0 0.0
    %3757 = vmatpush1.xpose.msra.mxu0 0.0
    %3758 = vmatprep.subr.mxu0 0.0
    %3759 = vmatpush1.xpose.msra.mxu0 0.0
    %3760 = vmatprep.subr.mxu0 0.0
    %3761 = vmatpush1.xpose.msra.mxu0 0.0
    %3762 = vmatprep.subr.mxu0 0.0
    %3763 = vmatpush1.xpose.msra.mxu0 0.0
    %3764 = vmatprep.subr.mxu0 0.0
    %3765 = vmatpush1.xpose.msra.mxu0 0.0
    %3766 = vmatprep.subr.mxu0 0.0
    %3767 = vmatpush1.xpose.msra.mxu0 0.0
    %3768 = vmatprep.subr.mxu0 0.0
    %3769 = vmatpush1.xpose.msra.mxu0 0.0
    %3770 = vmatprep.subr.mxu0 0.0
    %3771 = vmatpush1.xpose.msra.mxu0 0.0
    %3772 = vmatprep.subr.mxu0 0.0
    %3773 = vmatpush1.xpose.msra.mxu0 0.0
    %3774 = vmatprep.subr.mxu0 0.0
    %3775 = vmatpush1.xpose.msra.mxu0 0.0
    %3776 = vmatprep.subr.mxu0 0.0
    %3777 = vmatpush1.xpose.msra.mxu0 0.0
    %3778 = vmatprep.subr.mxu0 0.0
    %3779 = vmatpush1.xpose.msra.mxu0 0.0
    %3780 = vmatprep.subr.mxu0 0.0
    %3781 = vmatpush1.xpose.msra.mxu0 0.0
    %3782 = vmatprep.subr.mxu0 0.0
    %3783 = vmatpush1.xpose.msra.mxu0 0.0
    %3784 = vmatprep.subr.mxu0 0.0
    %3785 = vmatpush1.xpose.msra.mxu0 0.0
    %3786 = vmatprep.subr.mxu0 0.0
    %3787 = vmatpush1.xpose.msra.mxu0 0.0
    %3788 = vmatprep.subr.mxu0 0.0
    %3789 = vmatpush1.xpose.msra.mxu0 0.0
    %3790 = vmatprep.subr.mxu0 0.0
    %3791 = vmatpush1.xpose.msra.mxu0 0.0
    %3792 = vmatprep.mubr.f32.mxu0 %v3580
    %3793 = vmatmul.mubr.f32.gmra.mrb[0].mxu0 %v3572
    %v3794 = vpop.f32.mrb[0].mxu0
    %v3795 = vadd.f32 %v3725, %v3794
    %v3796 = vpop.f32.mrb[0].mxu0
    %3797 = vdwg.mxu0
    %3798 = vmatprep.subr.mxu0 0.0
    %3799 = vmatpush1.xpose.msra.mxu0 %v3547
    %3800 = vmatprep.subr.mxu0 0.0
    %3801 = vmatpush1.xpose.msra.mxu0 0.0
    %3802 = vmatprep.subr.mxu0 0.0
    %3803 = vmatpush1.xpose.msra.mxu0 0.0
    %3804 = vmatprep.subr.mxu0 0.0
    %3805 = vmatpush1.xpose.msra.mxu0 0.0
    %3806 = vmatprep.subr.mxu0 0.0
    %3807 = vmatpush1.xpose.msra.mxu0 0.0
    %3808 = vmatprep.subr.mxu0 0.0
    %3809 = vmatpush1.xpose.msra.mxu0 0.0
    %3810 = vmatprep.subr.mxu0 0.0
    %3811 = vmatpush1.xpose.msra.mxu0 0.0
    %3812 = vmatprep.subr.mxu0 0.0
    %3813 = vmatpush1.xpose.msra.mxu0 0.0
    %3814 = vmatprep.subr.mxu0 0.0
    %3815 = vmatpush1.xpose.msra.mxu0 0.0
    %3816 = vmatprep.subr.mxu0 0.0
    %3817 = vmatpush1.xpose.msra.mxu0 0.0
    %3818 = vmatprep.subr.mxu0 0.0
    %3819 = vmatpush1.xpose.msra.mxu0 0.0
    %3820 = vmatprep.subr.mxu0 0.0
    %3821 = vmatpush1.xpose.msra.mxu0 0.0
    %3822 = vmatprep.subr.mxu0 0.0
    %3823 = vmatpush1.xpose.msra.mxu0 0.0
    %3824 = vmatprep.subr.mxu0 0.0
    %3825 = vmatpush1.xpose.msra.mxu0 0.0
    %3826 = vmatprep.subr.mxu0 0.0
    %3827 = vmatpush1.xpose.msra.mxu0 0.0
    %3828 = vmatprep.subr.mxu0 0.0
    %3829 = vmatpush1.xpose.msra.mxu0 0.0
    %3830 = vmatprep.subr.mxu0 0.0
    %3831 = vmatpush1.xpose.msra.mxu0 0.0
    %3832 = vmatprep.subr.mxu0 0.0
    %3833 = vmatpush1.xpose.msra.mxu0 0.0
    %3834 = vmatprep.subr.mxu0 0.0
    %3835 = vmatpush1.xpose.msra.mxu0 0.0
    %3836 = vmatprep.subr.mxu0 0.0
    %3837 = vmatpush1.xpose.msra.mxu0 0.0
    %3838 = vmatprep.subr.mxu0 0.0
    %3839 = vmatpush1.xpose.msra.mxu0 0.0
    %3840 = vmatprep.subr.mxu0 0.0
    %3841 = vmatpush1.xpose.msra.mxu0 0.0
    %3842 = vmatprep.subr.mxu0 0.0
    %3843 = vmatpush1.xpose.msra.mxu0 0.0
    %3844 = vmatprep.subr.mxu0 0.0
    %3845 = vmatpush1.xpose.msra.mxu0 0.0
    %3846 = vmatprep.subr.mxu0 0.0
    %3847 = vmatpush1.xpose.msra.mxu0 0.0
    %3848 = vmatprep.subr.mxu0 0.0
    %3849 = vmatpush1.xpose.msra.mxu0 0.0
    %3850 = vmatprep.subr.mxu0 0.0
    %3851 = vmatpush1.xpose.msra.mxu0 0.0
    %3852 = vmatprep.subr.mxu0 0.0
    %3853 = vmatpush1.xpose.msra.mxu0 0.0
    %3854 = vmatprep.subr.mxu0 0.0
    %3855 = vmatpush1.xpose.msra.mxu0 0.0
    %3856 = vmatprep.subr.mxu0 0.0
    %3857 = vmatpush1.xpose.msra.mxu0 0.0
    %3858 = vmatprep.subr.mxu0 0.0
    %3859 = vmatpush1.xpose.msra.mxu0 0.0
    %3860 = vmatprep.subr.mxu0 0.0
    %3861 = vmatpush1.xpose.msra.mxu0 0.0
    %3862 = vmatprep.mubr.f32.mxu0 0.0
    %3863 = vmatmul.mubr.f32.gmra.mrb[0].mxu0 %v3579
    %v3864 = vpop.f32.mrb[0].mxu0
    %v3865 = vadd.f32 %v3795, %v3864
    %v3866 = vpop.f32.mrb[0].mxu0
    %3867 = vdwg.mxu0
    %vm3868 = vcmask 58368
    %3869 = vst.msk [vmem:[#allocation2] sm:$0x3] %vm3868, %v3865
    // Predicated region
    $region14: #{one_up_forward.1} parent=1 // pred_check
      _
    $region15: #{one_up_forward.1} parent=1 // pred_check_branch
      %3871 = sbr.rel (0) target = $region17
    $region16: #{one_up_forward.1} parent=1 // pred_region
      %s3873 = ssub.s32 32, 32
      %3874 = vsyncadd [#allocation3], %s3873
      %s3876 = sshll.u32 [#allocation2], 4
      %s3877 = int_to_ptr.vmem [resolvable:$true] %s3876
      %3879 = dma.vmem_to_hbm [thread:$0]  %s3877, 32, %s3, [#allocation3]
    $region17: #{one_up_forward.1} parent=1 // pred_fallthru
      _
    // Predicated region
    $region18: #{one_up_forward.1} parent=1 // pred_check
      _
    $region19: #{one_up_forward.1} parent=1 // pred_check_branch
      %3881 = sbr.rel (0) target = $region21
    $region20: #{one_up_forward.1} parent=1 // pred_region
      %3882 = dma.done [#allocation3], 32
    $region21: #{one_up_forward.1} parent=1 // pred_fallthru
      _
    %3883 = vsyncpa [#allocation3], 1

</llo_original>
